<compile_context>
chip_gen: v5e
topology: v5e:2x2
jax: 0.10.0
libtpu: 0.0.40
codegen_flags: <defaults>
</compile_context>

<pallas_src>
import functools

import jax
import jax.numpy as jnp
from jax.experimental import pallas as pl
from jax.experimental.pallas import tpu as pltpu


# ------------------------------- helpers -----------------------------------

def _round_up(v, m):
    return (v + m - 1) // m * m


def _pad_to(a, axis, size):
    pad = [(0, 0)] * a.ndim
    pad[axis] = (0, size - a.shape[axis])
    return jnp.pad(a, pad)


def _fold_bn(gamma, beta, mean, var, eps=1e-5):
    scale = gamma / jnp.sqrt(var + eps)
    bias = beta - mean * scale
    return scale.astype(jnp.float32), bias.astype(jnp.float32)


# ----------------------------- fused kernel --------------------------------

def _bottleneck_kernel(x_ref, w1_ref, s1_ref, b1_ref, w2_ref, s2_ref, b2_ref,
                       w3_ref, s3_ref, b3_ref, sm_ref, lm_ref, rm_ref,
                       o_ref, h1p_ref, acc_ref, *, H, W):
    HW = H * W
    TOP = W + 8            # zero rows above the h1 image (vertical halo + slack)
    BOT = W + 8            # zero rows below
    cw = h1p_ref.shape[1]

    # ---- stage 1: conv1x1 + bn1 + relu (bf16 MXU matmul, f32 epilogue) ----
    x2d = x_ref[0]                                            # (HW, Cin_p) bf16
    y1 = jnp.dot(x2d, w1_ref[...], preferred_element_type=jnp.float32)
    y1 = jnp.maximum(y1 * s1_ref[...] + b1_ref[...], 0.0)

    # Zero the halo rows each step (scratch persists across grid steps), then
    # store h1 contiguously: pixel (h, w) lives at scratch row TOP + h*W + w.
    h1p_ref[pl.ds(0, TOP), :] = jnp.zeros((TOP, cw), jnp.bfloat16)
    h1p_ref[pl.ds(TOP + HW, BOT), :] = jnp.zeros((BOT, cw), jnp.bfloat16)
    h1p_ref[pl.ds(TOP, HW), :] = y1.astype(jnp.bfloat16)

    # ---- stage 2: conv3x3 (stride 1, pad 1) as 9 shifted row-slices ----
    # Output row j = h*W + w needs h1_padded[h+kh-1, w+kw-1], which is scratch
    # row j + (kh*W + kw + 7).  The flat layout would wrap across image rows at
    # the left/right borders; the bf16 column masks zero those contributions.
    lmask = lm_ref[...]                                       # (HW, 1) bf16
    rmask = rm_ref[...]
    for kh in range(3):
        for kw in range(3):
            off = kh * W + kw + 7                             # static offset
            patch = h1p_ref[pl.ds(off, HW), :]                # (HW, Cw_p) bf16
            if kw == 0:
                patch = patch * lmask
            elif kw == 2:
                patch = patch * rmask
            tap = jnp.dot(patch, w2_ref[kh * 3 + kw],
                          preferred_element_type=jnp.float32)
            if kh == 0 and kw == 0:
                acc_ref[...] = tap                            # init accumulator
            else:
                acc_ref[...] += tap

    h2 = jnp.maximum(acc_ref[...] * s2_ref[...] + b2_ref[...], 0.0)
    h2 = h2.astype(jnp.bfloat16)

    # ---- stage 3: conv1x1 + bn3 + residual + relu + sigmoid(mask) ----
    y3 = jnp.dot(h2, w3_ref[...], preferred_element_type=jnp.float32)
    y3 = y3 * s3_ref[...] + b3_ref[...]
    y3 = jnp.maximum(y3 + x2d.astype(jnp.float32), 0.0)
    o_ref[0] = (sm_ref[...] * y3).astype(o_ref.dtype)


# ------------------------------ JAX wrapper --------------------------------

def bottleneck_forward(x_nchw, params):
    """x_nchw: (N, Cin, H, W) float32 (PyTorch layout). Returns same layout."""
    N, Cin, H, W = x_nchw.shape
    width = params["w1"].shape[1]
    cout = params["w3"].shape[1]
    assert Cin == cout, "stride=1 / downsample=None requires Cin == Cout"

    HW = H * W
    cin_p = _round_up(Cin, 128)
    cw_p = _round_up(width, 128)
    cout_p = _round_up(cout, 128)
    assert cin_p == cout_p

    # glue: NCHW -> (N, H*W, C), channel-pad to lane-dense 128 multiple, bf16
    x2d = jnp.transpose(x_nchw, (0, 2, 3, 1)).reshape(N, HW, Cin)
    x2d = _pad_to(x2d, 2, cin_p).astype(jnp.bfloat16)

    w1 = _pad_to(_pad_to(params["w1"], 0, cin_p), 1, cw_p).astype(jnp.bfloat16)
    w2 = params["w2"].reshape(9, width, width)
    w2 = _pad_to(_pad_to(w2, 1, cw_p), 2, cw_p).astype(jnp.bfloat16)
    w3 = _pad_to(_pad_to(params["w3"], 0, cw_p), 1, cout_p).astype(jnp.bfloat16)

    s1, b1 = _fold_bn(*params["bn1"])
    s2, b2 = _fold_bn(*params["bn2"])
    s3, b3 = _fold_bn(*params["bn3"])
    s1 = _pad_to(s1, 0, cw_p)[None];   b1 = _pad_to(b1, 0, cw_p)[None]
    s2 = _pad_to(s2, 0, cw_p)[None];   b2 = _pad_to(b2, 0, cw_p)[None]
    s3 = _pad_to(s3, 0, cout_p)[None]; b3 = _pad_to(b3, 0, cout_p)[None]

    # hoisted: sigmoid(mask) computed once, not per grid step
    sm = jax.nn.sigmoid(params["mask"].reshape(-1).astype(jnp.float32))
    sm = _pad_to(sm, 0, cout_p)[None]

    # left/right image-border masks for the 3x3 taps (bf16 so matmul stays bf16)
    col = jnp.arange(HW, dtype=jnp.int32) % W
    lmask = (col != 0).astype(jnp.bfloat16).reshape(HW, 1)
    rmask = (col != W - 1).astype(jnp.bfloat16).reshape(HW, 1)

    def _full_spec(a):
        return pl.BlockSpec(a.shape, lambda n, nd=a.ndim: (0,) * nd)

    grid_spec = pltpu.PrefetchScalarGridSpec(
        num_scalar_prefetch=0,
        grid=(N,),
        in_specs=[
            pl.BlockSpec((1, HW, cin_p), lambda n: (n, 0, 0)),   # x
            _full_spec(w1), _full_spec(s1), _full_spec(b1),
            _full_spec(w2), _full_spec(s2), _full_spec(b2),
            _full_spec(w3), _full_spec(s3), _full_spec(b3),
            _full_spec(sm), _full_spec(lmask), _full_spec(rmask),
        ],
        out_specs=pl.BlockSpec((1, HW, cout_p), lambda n: (n, 0, 0)),
        scratch_shapes=[
            pltpu.VMEM((HW + 2 * W + 16, cw_p), jnp.bfloat16),   # zero-haloed h1
            pltpu.VMEM((HW, cw_p), jnp.float32),                 # 3x3 accumulator
        ],
    )

    out = pl.pallas_call(
        functools.partial(_bottleneck_kernel, H=H, W=W),
        out_shape=jax.ShapeDtypeStruct((N, HW, cout_p), jnp.bfloat16),
        grid_spec=grid_spec,
        compiler_params=pltpu.CompilerParams(
            dimension_semantics=("parallel",),      # batch axis -> megacore/2 TCs
            vmem_limit_bytes=48 * 1024 * 1024,      # fits v7x's 64 MiB VMEM
        ),
    )(x2d, w1, s1, b1, w2, s2, b2, w3, s3, b3, sm, lmask, rmask)

    out = out[:, :, :cout].astype(jnp.float32).reshape(N, H, W, cout)
    # TODO(synk): in a full network keep activations NHWC end-to-end and drop
    #             these boundary transposes.
    return jnp.transpose(out, (0, 3, 1, 2))


# -------------------------- reference (pure JAX) ---------------------------

def bottleneck_reference(x_nchw, params):
    x = jnp.transpose(x_nchw, (0, 2, 3, 1))
    N, H, W, Cin = x.shape
    s1, b1 = _fold_bn(*params["bn1"])
    s2, b2 = _fold_bn(*params["bn2"])
    s3, b3 = _fold_bn(*params["bn3"])

    h = jnp.maximum(x @ params["w1"] * s1 + b1, 0.0)
    hp = jnp.pad(h, ((0, 0), (1, 1), (1, 1), (0, 0)))
    acc = jnp.zeros((N, H, W, params["w2"].shape[-1]), jnp.float32)
    for dh in range(3):
        for dw in range(3):
            acc = acc + hp[:, dh:dh + H, dw:dw + W, :] @ params["w2"][dh, dw]
    h = jnp.maximum(acc * s2 + b2, 0.0)
    h = h @ params["w3"] * s3 + b3
    h = jnp.maximum(h + x, 0.0)
    h = jax.nn.sigmoid(params["mask"].reshape(1, 1, 1, -1)) * h
    return jnp.transpose(h, (0, 3, 1, 2))


# ------------------------------- parameters --------------------------------

def init_params(key, inplanes, planes, base_width=64, groups=1, expansion=4):
    width = int(planes * (base_width / 64.0)) * groups
    cout = planes * expansion
    ks = jax.random.split(key, 12)

    def bn(kg, kb, km, kv, c):
        gamma = jax.random.uniform(kg, (c,), jnp.float32, 0.5, 1.5)
        beta = jax.random.normal(kb, (c,), jnp.float32) * 0.1
        mean = jax.random.normal(km, (c,), jnp.float32) * 0.1
        var = jax.random.uniform(kv, (c,), jnp.float32, 0.5, 1.5)
        return (gamma, beta, mean, var)

    # conv weights stored channels-last: (Cin, Cout) for 1x1, (3,3,Cin,Cout)
    # for 3x3 (transposed from PyTorch's (Cout, Cin, kh, kw)).
    return {
        "w1": jax.random.normal(ks[0], (inplanes, width), jnp.float32) * 0.1,
        "bn1": bn(ks[1], ks[2], ks[3], ks[4], width),
        "w2": jax.random.normal(ks[5], (3, 3, width, width), jnp.float32) * 0.1,
        "bn2": bn(ks[6], ks[7], ks[8], ks[9], width),
        "w3": jax.random.normal(ks[10], (width, cout), jnp.float32) * 0.1,
        "bn3": bn(*jax.random.split(ks[11], 4), cout),
        # Mask parameter (1, cout, 1, 1), as in the PyTorch module.
        "mask": jax.random.normal(jax.random.fold_in(key, 99),
                                  (1, cout, 1, 1), jnp.float32),
    }


# ---------------------------------- main ------------------------------------

if __name__ == "__main__":
    key = jax.random.PRNGKey(0)
    N, inplanes, planes, H, W = 2, 16, 4, 16, 16   # cout = planes*4 = inplanes
    kx, kp = jax.random.split(key)
    x = jax.random.normal(kx, (N, inplanes, H, W), jnp.float32)
    params = init_params(kp, inplanes, planes)

    out = jax.block_until_ready(bottleneck_forward(x, params))
    ref = bottleneck_reference(x, params)

    assert out.shape == (N, inplanes, H, W)
    assert bool(jnp.all(jnp.isfinite(out)))
    assert bool(jnp.allclose(out, ref, rtol=5e-2, atol=5e-2))
    print("KERNEL_OK")
</pallas_src>

<mosaic_0001>
module attributes {stable_mosaic.version = 11 : i64} {
  func.func @_bottleneck_kernel(%arg0: i32, %arg1: memref<1x256x128xbf16, #tpu.memory_space<vmem>>, %arg2: memref<128x128xbf16, #tpu.memory_space<vmem>>, %arg3: memref<1x128xf32, #tpu.memory_space<vmem>>, %arg4: memref<1x128xf32, #tpu.memory_space<vmem>>, %arg5: memref<9x128x128xbf16, #tpu.memory_space<vmem>>, %arg6: memref<1x128xf32, #tpu.memory_space<vmem>>, %arg7: memref<1x128xf32, #tpu.memory_space<vmem>>, %arg8: memref<128x128xbf16, #tpu.memory_space<vmem>>, %arg9: memref<1x128xf32, #tpu.memory_space<vmem>>, %arg10: memref<1x128xf32, #tpu.memory_space<vmem>>, %arg11: memref<1x128xf32, #tpu.memory_space<vmem>>, %arg12: memref<256x1xbf16, #tpu.memory_space<vmem>>, %arg13: memref<256x1xbf16, #tpu.memory_space<vmem>>, %arg14: memref<1x256x128xbf16, #tpu.memory_space<vmem>>, %arg15: memref<304x128xbf16, #tpu.memory_space<vmem>>, %arg16: memref<256x128xf32, #tpu.memory_space<vmem>>) attributes {dimension_semantics = [#tpu.dimension_semantics<parallel>], iteration_bounds = array<i64: 2>, scalar_prefetch = 0 : i64, scratch_operands = 2 : i64, tpu.core_type = #tpu.core_type<tc>, window_params = [{transform_indices = @transform_0, window_bounds = array<i64: 1, 256, 128>}, {pipeline_mode = #tpu.pipeline_mode<synchronous>, transform_indices = @transform_1, window_bounds = array<i64: 128, 128>}, {pipeline_mode = #tpu.pipeline_mode<synchronous>, transform_indices = @transform_2, window_bounds = array<i64: 1, 128>}, {pipeline_mode = #tpu.pipeline_mode<synchronous>, transform_indices = @transform_3, window_bounds = array<i64: 1, 128>}, {pipeline_mode = #tpu.pipeline_mode<synchronous>, transform_indices = @transform_4, window_bounds = array<i64: 9, 128, 128>}, {pipeline_mode = #tpu.pipeline_mode<synchronous>, transform_indices = @transform_5, window_bounds = array<i64: 1, 128>}, {pipeline_mode = #tpu.pipeline_mode<synchronous>, transform_indices = @transform_6, window_bounds = array<i64: 1, 128>}, {pipeline_mode = #tpu.pipeline_mode<synchronous>, transform_indices = @transform_7, window_bounds = array<i64: 128, 128>}, {pipeline_mode = #tpu.pipeline_mode<synchronous>, transform_indices = @transform_8, window_bounds = array<i64: 1, 128>}, {pipeline_mode = #tpu.pipeline_mode<synchronous>, transform_indices = @transform_9, window_bounds = array<i64: 1, 128>}, {pipeline_mode = #tpu.pipeline_mode<synchronous>, transform_indices = @transform_10, window_bounds = array<i64: 1, 128>}, {pipeline_mode = #tpu.pipeline_mode<synchronous>, transform_indices = @transform_11, window_bounds = array<i64: 256, 1>}, {pipeline_mode = #tpu.pipeline_mode<synchronous>, transform_indices = @transform_12, window_bounds = array<i64: 256, 1>}, {transform_indices = @transform_13, window_bounds = array<i64: 1, 256, 128>}]} {
    %c0 = arith.constant 0 : index
    %c0_0 = arith.constant 0 : index
    %c0_1 = arith.constant 0 : index
    %0 = vector.load %arg1[%c0, %c0_0, %c0_1] : memref<1x256x128xbf16, #tpu.memory_space<vmem>>, vector<1x256x128xbf16>
    %1 = vector.shape_cast %0 : vector<1x256x128xbf16> to vector<256x128xbf16>
    %c0_2 = arith.constant 0 : index
    %c0_3 = arith.constant 0 : index
    %2 = vector.load %arg2[%c0_2, %c0_3] : memref<128x128xbf16, #tpu.memory_space<vmem>>, vector<128x128xbf16>
    %cst = arith.constant dense<0.000000e+00> : vector<256x128xf32>
    %3 = tpu.matmul %1, %2, %cst {dimension_numbers = #tpu.dot_dimension_numbers<[1], [0], [0], [1], [0, 0, 1, 1], [], []>} : vector<256x128xbf16>, vector<128x128xbf16>, vector<256x128xf32> -> vector<256x128xf32>
    %c0_4 = arith.constant 0 : index
    %c0_5 = arith.constant 0 : index
    %4 = vector.load %arg3[%c0_4, %c0_5] : memref<1x128xf32, #tpu.memory_space<vmem>>, vector<1x128xf32>
    %5 = vector.broadcast %4 : vector<1x128xf32> to vector<256x128xf32>
    %6 = arith.mulf %3, %5 : vector<256x128xf32>
    %c0_6 = arith.constant 0 : index
    %c0_7 = arith.constant 0 : index
    %7 = vector.load %arg4[%c0_6, %c0_7] : memref<1x128xf32, #tpu.memory_space<vmem>>, vector<1x128xf32>
    %8 = vector.broadcast %7 : vector<1x128xf32> to vector<256x128xf32>
    %9 = arith.addf %6, %8 : vector<256x128xf32>
    %cst_8 = arith.constant 0.000000e+00 : f32
    %10 = vector.broadcast %cst_8 : f32 to vector<256x128xf32>
    %11 = arith.maximumf %9, %10 : vector<256x128xf32>
    %cst_9 = arith.constant 0.000000e+00 : bf16
    %12 = vector.broadcast %cst_9 : bf16 to vector<24x128xbf16>
    %c0_10 = arith.constant 0 : index
    %c0_11 = arith.constant 0 : index
    %13 = vector.load %arg15[%c0_10, %c0_11] : memref<304x128xbf16, #tpu.memory_space<vmem>>, vector<24x128xbf16>
    tpu.vector_store %arg15[%c0_10, %c0_11], %12 {strides = array<i32>} : memref<304x128xbf16, #tpu.memory_space<vmem>>, vector<24x128xbf16>,
    %cst_12 = arith.constant 0.000000e+00 : bf16
    %14 = vector.broadcast %cst_12 : bf16 to vector<24x128xbf16>
    %c280 = arith.constant 280 : index
    %c0_13 = arith.constant 0 : index
    %15 = vector.load %arg15[%c280, %c0_13] : memref<304x128xbf16, #tpu.memory_space<vmem>>, vector<24x128xbf16>
    tpu.vector_store %arg15[%c280, %c0_13], %14 {strides = array<i32>} : memref<304x128xbf16, #tpu.memory_space<vmem>>, vector<24x128xbf16>,
    %16 = arith.truncf %11 : vector<256x128xf32> to vector<256x128xbf16>
    %c24 = arith.constant 24 : index
    %c0_14 = arith.constant 0 : index
    %17 = vector.load %arg15[%c24, %c0_14] : memref<304x128xbf16, #tpu.memory_space<vmem>>, vector<256x128xbf16>
    tpu.vector_store %arg15[%c24, %c0_14], %16 {strides = array<i32>} : memref<304x128xbf16, #tpu.memory_space<vmem>>, vector<256x128xbf16>,
    %c0_15 = arith.constant 0 : index
    %c0_16 = arith.constant 0 : index
    %18 = vector.load %arg12[%c0_15, %c0_16] : memref<256x1xbf16, #tpu.memory_space<vmem>>, vector<256x1xbf16>
    %c0_17 = arith.constant 0 : index
    %c0_18 = arith.constant 0 : index
    %19 = vector.load %arg13[%c0_17, %c0_18] : memref<256x1xbf16, #tpu.memory_space<vmem>>, vector<256x1xbf16>
    %c7 = arith.constant 7 : index
    %c0_19 = arith.constant 0 : index
    %20 = vector.load %arg15[%c7, %c0_19] : memref<304x128xbf16, #tpu.memory_space<vmem>>, vector<256x128xbf16>
    %21 = vector.broadcast %18 : vector<256x1xbf16> to vector<256x128xbf16>
    %22 = arith.mulf %20, %21 : vector<256x128xbf16>
    %c0_20 = arith.constant 0 : index
    %c0_21 = arith.constant 0 : index
    %c0_22 = arith.constant 0 : index
    %23 = vector.load %arg5[%c0_20, %c0_21, %c0_22] : memref<9x128x128xbf16, #tpu.memory_space<vmem>>, vector<1x128x128xbf16>
    %24 = vector.shape_cast %23 : vector<1x128x128xbf16> to vector<128x128xbf16>
    %cst_23 = arith.constant dense<0.000000e+00> : vector<256x128xf32>
    %25 = tpu.matmul %22, %24, %cst_23 {dimension_numbers = #tpu.dot_dimension_numbers<[1], [0], [0], [1], [0, 0, 1, 1], [], []>} : vector<256x128xbf16>, vector<128x128xbf16>, vector<256x128xf32> -> vector<256x128xf32>
    %c0_24 = arith.constant 0 : index
    %c0_25 = arith.constant 0 : index
    %26 = vector.load %arg16[%c0_24, %c0_25] : memref<256x128xf32, #tpu.memory_space<vmem>>, vector<256x128xf32>
    tpu.vector_store %arg16[%c0_24, %c0_25], %25 {strides = array<i32>} : memref<256x128xf32, #tpu.memory_space<vmem>>, vector<256x128xf32>,
    %c8 = arith.constant 8 : index
    %c0_26 = arith.constant 0 : index
    %27 = vector.load %arg15[%c8, %c0_26] : memref<304x128xbf16, #tpu.memory_space<vmem>>, vector<256x128xbf16>
    %c1 = arith.constant 1 : index
    %c0_27 = arith.constant 0 : index
    %c0_28 = arith.constant 0 : index
    %28 = vector.load %arg5[%c1, %c0_27, %c0_28] : memref<9x128x128xbf16, #tpu.memory_space<vmem>>, vector<1x128x128xbf16>
    %29 = vector.shape_cast %28 : vector<1x128x128xbf16> to vector<128x128xbf16>
    %cst_29 = arith.constant dense<0.000000e+00> : vector<256x128xf32>
    %30 = tpu.matmul %27, %29, %cst_29 {dimension_numbers = #tpu.dot_dimension_numbers<[1], [0], [0], [1], [0, 0, 1, 1], [], []>} : vector<256x128xbf16>, vector<128x128xbf16>, vector<256x128xf32> -> vector<256x128xf32>
    %c0_30 = arith.constant 0 : index
    %c0_31 = arith.constant 0 : index
    %31 = vector.load %arg16[%c0_30, %c0_31] : memref<256x128xf32, #tpu.memory_space<vmem>>, vector<256x128xf32>
    %32 = arith.addf %31, %30 : vector<256x128xf32>
    %c0_32 = arith.constant 0 : index
    %c0_33 = arith.constant 0 : index
    %33 = vector.load %arg16[%c0_32, %c0_33] : memref<256x128xf32, #tpu.memory_space<vmem>>, vector<256x128xf32>
    tpu.vector_store %arg16[%c0_32, %c0_33], %32 {strides = array<i32>} : memref<256x128xf32, #tpu.memory_space<vmem>>, vector<256x128xf32>,
    %c9 = arith.constant 9 : index
    %c0_34 = arith.constant 0 : index
    %34 = vector.load %arg15[%c9, %c0_34] : memref<304x128xbf16, #tpu.memory_space<vmem>>, vector<256x128xbf16>
    %35 = vector.broadcast %19 : vector<256x1xbf16> to vector<256x128xbf16>
    %36 = arith.mulf %34, %35 : vector<256x128xbf16>
    %c2 = arith.constant 2 : index
    %c0_35 = arith.constant 0 : index
    %c0_36 = arith.constant 0 : index
    %37 = vector.load %arg5[%c2, %c0_35, %c0_36] : memref<9x128x128xbf16, #tpu.memory_space<vmem>>, vector<1x128x128xbf16>
    %38 = vector.shape_cast %37 : vector<1x128x128xbf16> to vector<128x128xbf16>
    %cst_37 = arith.constant dense<0.000000e+00> : vector<256x128xf32>
    %39 = tpu.matmul %36, %38, %cst_37 {dimension_numbers = #tpu.dot_dimension_numbers<[1], [0], [0], [1], [0, 0, 1, 1], [], []>} : vector<256x128xbf16>, vector<128x128xbf16>, vector<256x128xf32> -> vector<256x128xf32>
    %c0_38 = arith.constant 0 : index
    %c0_39 = arith.constant 0 : index
    %40 = vector.load %arg16[%c0_38, %c0_39] : memref<256x128xf32, #tpu.memory_space<vmem>>, vector<256x128xf32>
    %41 = arith.addf %40, %39 : vector<256x128xf32>
    %c0_40 = arith.constant 0 : index
    %c0_41 = arith.constant 0 : index
    %42 = vector.load %arg16[%c0_40, %c0_41] : memref<256x128xf32, #tpu.memory_space<vmem>>, vector<256x128xf32>
    tpu.vector_store %arg16[%c0_40, %c0_41], %41 {strides = array<i32>} : memref<256x128xf32, #tpu.memory_space<vmem>>, vector<256x128xf32>,
    %c23 = arith.constant 23 : index
    %c0_42 = arith.constant 0 : index
    %43 = vector.load %arg15[%c23, %c0_42] : memref<304x128xbf16, #tpu.memory_space<vmem>>, vector<256x128xbf16>
    %44 = vector.broadcast %18 : vector<256x1xbf16> to vector<256x128xbf16>
    %45 = arith.mulf %43, %44 : vector<256x128xbf16>
    %c3 = arith.constant 3 : index
    %c0_43 = arith.constant 0 : index
    %c0_44 = arith.constant 0 : index
    %46 = vector.load %arg5[%c3, %c0_43, %c0_44] : memref<9x128x128xbf16, #tpu.memory_space<vmem>>, vector<1x128x128xbf16>
    %47 = vector.shape_cast %46 : vector<1x128x128xbf16> to vector<128x128xbf16>
    %cst_45 = arith.constant dense<0.000000e+00> : vector<256x128xf32>
    %48 = tpu.matmul %45, %47, %cst_45 {dimension_numbers = #tpu.dot_dimension_numbers<[1], [0], [0], [1], [0, 0, 1, 1], [], []>} : vector<256x128xbf16>, vector<128x128xbf16>, vector<256x128xf32> -> vector<256x128xf32>
    %c0_46 = arith.constant 0 : index
    %c0_47 = arith.constant 0 : index
    %49 = vector.load %arg16[%c0_46, %c0_47] : memref<256x128xf32, #tpu.memory_space<vmem>>, vector<256x128xf32>
    %50 = arith.addf %49, %48 : vector<256x128xf32>
    %c0_48 = arith.constant 0 : index
    %c0_49 = arith.constant 0 : index
    %51 = vector.load %arg16[%c0_48, %c0_49] : memref<256x128xf32, #tpu.memory_space<vmem>>, vector<256x128xf32>
    tpu.vector_store %arg16[%c0_48, %c0_49], %50 {strides = array<i32>} : memref<256x128xf32, #tpu.memory_space<vmem>>, vector<256x128xf32>,
    %c24_50 = arith.constant 24 : index
    %c0_51 = arith.constant 0 : index
    %52 = vector.load %arg15[%c24_50, %c0_51] : memref<304x128xbf16, #tpu.memory_space<vmem>>, vector<256x128xbf16>
    %c4 = arith.constant 4 : index
    %c0_52 = arith.constant 0 : index
    %c0_53 = arith.constant 0 : index
    %53 = vector.load %arg5[%c4, %c0_52, %c0_53] : memref<9x128x128xbf16, #tpu.memory_space<vmem>>, vector<1x128x128xbf16>
    %54 = vector.shape_cast %53 : vector<1x128x128xbf16> to vector<128x128xbf16>
    %cst_54 = arith.constant dense<0.000000e+00> : vector<256x128xf32>
    %55 = tpu.matmul %52, %54, %cst_54 {dimension_numbers = #tpu.dot_dimension_numbers<[1], [0], [0], [1], [0, 0, 1, 1], [], []>} : vector<256x128xbf16>, vector<128x128xbf16>, vector<256x128xf32> -> vector<256x128xf32>
    %c0_55 = arith.constant 0 : index
    %c0_56 = arith.constant 0 : index
    %56 = vector.load %arg16[%c0_55, %c0_56] : memref<256x128xf32, #tpu.memory_space<vmem>>, vector<256x128xf32>
    %57 = arith.addf %56, %55 : vector<256x128xf32>
    %c0_57 = arith.constant 0 : index
    %c0_58 = arith.constant 0 : index
    %58 = vector.load %arg16[%c0_57, %c0_58] : memref<256x128xf32, #tpu.memory_space<vmem>>, vector<256x128xf32>
    tpu.vector_store %arg16[%c0_57, %c0_58], %57 {strides = array<i32>} : memref<256x128xf32, #tpu.memory_space<vmem>>, vector<256x128xf32>,
    %c25 = arith.constant 25 : index
    %c0_59 = arith.constant 0 : index
    %59 = vector.load %arg15[%c25, %c0_59] : memref<304x128xbf16, #tpu.memory_space<vmem>>, vector<256x128xbf16>
    %60 = vector.broadcast %19 : vector<256x1xbf16> to vector<256x128xbf16>
    %61 = arith.mulf %59, %60 : vector<256x128xbf16>
    %c5 = arith.constant 5 : index
    %c0_60 = arith.constant 0 : index
    %c0_61 = arith.constant 0 : index
    %62 = vector.load %arg5[%c5, %c0_60, %c0_61] : memref<9x128x128xbf16, #tpu.memory_space<vmem>>, vector<1x128x128xbf16>
    %63 = vector.shape_cast %62 : vector<1x128x128xbf16> to vector<128x128xbf16>
    %cst_62 = arith.constant dense<0.000000e+00> : vector<256x128xf32>
    %64 = tpu.matmul %61, %63, %cst_62 {dimension_numbers = #tpu.dot_dimension_numbers<[1], [0], [0], [1], [0, 0, 1, 1], [], []>} : vector<256x128xbf16>, vector<128x128xbf16>, vector<256x128xf32> -> vector<256x128xf32>
    %c0_63 = arith.constant 0 : index
    %c0_64 = arith.constant 0 : index
    %65 = vector.load %arg16[%c0_63, %c0_64] : memref<256x128xf32, #tpu.memory_space<vmem>>, vector<256x128xf32>
    %66 = arith.addf %65, %64 : vector<256x128xf32>
    %c0_65 = arith.constant 0 : index
    %c0_66 = arith.constant 0 : index
    %67 = vector.load %arg16[%c0_65, %c0_66] : memref<256x128xf32, #tpu.memory_space<vmem>>, vector<256x128xf32>
    tpu.vector_store %arg16[%c0_65, %c0_66], %66 {strides = array<i32>} : memref<256x128xf32, #tpu.memory_space<vmem>>, vector<256x128xf32>,
    %c39 = arith.constant 39 : index
    %c0_67 = arith.constant 0 : index
    %68 = vector.load %arg15[%c39, %c0_67] : memref<304x128xbf16, #tpu.memory_space<vmem>>, vector<256x128xbf16>
    %69 = vector.broadcast %18 : vector<256x1xbf16> to vector<256x128xbf16>
    %70 = arith.mulf %68, %69 : vector<256x128xbf16>
    %c6 = arith.constant 6 : index
    %c0_68 = arith.constant 0 : index
    %c0_69 = arith.constant 0 : index
    %71 = vector.load %arg5[%c6, %c0_68, %c0_69] : memref<9x128x128xbf16, #tpu.memory_space<vmem>>, vector<1x128x128xbf16>
    %72 = vector.shape_cast %71 : vector<1x128x128xbf16> to vector<128x128xbf16>
    %cst_70 = arith.constant dense<0.000000e+00> : vector<256x128xf32>
    %73 = tpu.matmul %70, %72, %cst_70 {dimension_numbers = #tpu.dot_dimension_numbers<[1], [0], [0], [1], [0, 0, 1, 1], [], []>} : vector<256x128xbf16>, vector<128x128xbf16>, vector<256x128xf32> -> vector<256x128xf32>
    %c0_71 = arith.constant 0 : index
    %c0_72 = arith.constant 0 : index
    %74 = vector.load %arg16[%c0_71, %c0_72] : memref<256x128xf32, #tpu.memory_space<vmem>>, vector<256x128xf32>
    %75 = arith.addf %74, %73 : vector<256x128xf32>
    %c0_73 = arith.constant 0 : index
    %c0_74 = arith.constant 0 : index
    %76 = vector.load %arg16[%c0_73, %c0_74] : memref<256x128xf32, #tpu.memory_space<vmem>>, vector<256x128xf32>
    tpu.vector_store %arg16[%c0_73, %c0_74], %75 {strides = array<i32>} : memref<256x128xf32, #tpu.memory_space<vmem>>, vector<256x128xf32>,
    %c40 = arith.constant 40 : index
    %c0_75 = arith.constant 0 : index
    %77 = vector.load %arg15[%c40, %c0_75] : memref<304x128xbf16, #tpu.memory_space<vmem>>, vector<256x128xbf16>
    %c7_76 = arith.constant 7 : index
    %c0_77 = arith.constant 0 : index
    %c0_78 = arith.constant 0 : index
    %78 = vector.load %arg5[%c7_76, %c0_77, %c0_78] : memref<9x128x128xbf16, #tpu.memory_space<vmem>>, vector<1x128x128xbf16>
    %79 = vector.shape_cast %78 : vector<1x128x128xbf16> to vector<128x128xbf16>
    %cst_79 = arith.constant dense<0.000000e+00> : vector<256x128xf32>
    %80 = tpu.matmul %77, %79, %cst_79 {dimension_numbers = #tpu.dot_dimension_numbers<[1], [0], [0], [1], [0, 0, 1, 1], [], []>} : vector<256x128xbf16>, vector<128x128xbf16>, vector<256x128xf32> -> vector<256x128xf32>
    %c0_80 = arith.constant 0 : index
    %c0_81 = arith.constant 0 : index
    %81 = vector.load %arg16[%c0_80, %c0_81] : memref<256x128xf32, #tpu.memory_space<vmem>>, vector<256x128xf32>
    %82 = arith.addf %81, %80 : vector<256x128xf32>
    %c0_82 = arith.constant 0 : index
    %c0_83 = arith.constant 0 : index
    %83 = vector.load %arg16[%c0_82, %c0_83] : memref<256x128xf32, #tpu.memory_space<vmem>>, vector<256x128xf32>
    tpu.vector_store %arg16[%c0_82, %c0_83], %82 {strides = array<i32>} : memref<256x128xf32, #tpu.memory_space<vmem>>, vector<256x128xf32>,
    %c41 = arith.constant 41 : index
    %c0_84 = arith.constant 0 : index
    %84 = vector.load %arg15[%c41, %c0_84] : memref<304x128xbf16, #tpu.memory_space<vmem>>, vector<256x128xbf16>
    %85 = vector.broadcast %19 : vector<256x1xbf16> to vector<256x128xbf16>
    %86 = arith.mulf %84, %85 : vector<256x128xbf16>
    %c8_85 = arith.constant 8 : index
    %c0_86 = arith.constant 0 : index
    %c0_87 = arith.constant 0 : index
    %87 = vector.load %arg5[%c8_85, %c0_86, %c0_87] : memref<9x128x128xbf16, #tpu.memory_space<vmem>>, vector<1x128x128xbf16>
    %88 = vector.shape_cast %87 : vector<1x128x128xbf16> to vector<128x128xbf16>
    %cst_88 = arith.constant dense<0.000000e+00> : vector<256x128xf32>
    %89 = tpu.matmul %86, %88, %cst_88 {dimension_numbers = #tpu.dot_dimension_numbers<[1], [0], [0], [1], [0, 0, 1, 1], [], []>} : vector<256x128xbf16>, vector<128x128xbf16>, vector<256x128xf32> -> vector<256x128xf32>
    %c0_89 = arith.constant 0 : index
    %c0_90 = arith.constant 0 : index
    %90 = vector.load %arg16[%c0_89, %c0_90] : memref<256x128xf32, #tpu.memory_space<vmem>>, vector<256x128xf32>
    %91 = arith.addf %90, %89 : vector<256x128xf32>
    %c0_91 = arith.constant 0 : index
    %c0_92 = arith.constant 0 : index
    %92 = vector.load %arg16[%c0_91, %c0_92] : memref<256x128xf32, #tpu.memory_space<vmem>>, vector<256x128xf32>
    tpu.vector_store %arg16[%c0_91, %c0_92], %91 {strides = array<i32>} : memref<256x128xf32, #tpu.memory_space<vmem>>, vector<256x128xf32>,
    %c0_93 = arith.constant 0 : index
    %c0_94 = arith.constant 0 : index
    %93 = vector.load %arg16[%c0_93, %c0_94] : memref<256x128xf32, #tpu.memory_space<vmem>>, vector<256x128xf32>
    %c0_95 = arith.constant 0 : index
    %c0_96 = arith.constant 0 : index
    %94 = vector.load %arg6[%c0_95, %c0_96] : memref<1x128xf32, #tpu.memory_space<vmem>>, vector<1x128xf32>
    %95 = vector.broadcast %94 : vector<1x128xf32> to vector<256x128xf32>
    %96 = arith.mulf %93, %95 : vector<256x128xf32>
    %c0_97 = arith.constant 0 : index
    %c0_98 = arith.constant 0 : index
    %97 = vector.load %arg7[%c0_97, %c0_98] : memref<1x128xf32, #tpu.memory_space<vmem>>, vector<1x128xf32>
    %98 = vector.broadcast %97 : vector<1x128xf32> to vector<256x128xf32>
    %99 = arith.addf %96, %98 : vector<256x128xf32>
    %cst_99 = arith.constant 0.000000e+00 : f32
    %100 = vector.broadcast %cst_99 : f32 to vector<256x128xf32>
    %101 = arith.maximumf %99, %100 : vector<256x128xf32>
    %102 = arith.truncf %101 : vector<256x128xf32> to vector<256x128xbf16>
    %c0_100 = arith.constant 0 : index
    %c0_101 = arith.constant 0 : index
    %103 = vector.load %arg8[%c0_100, %c0_101] : memref<128x128xbf16, #tpu.memory_space<vmem>>, vector<128x128xbf16>
    %cst_102 = arith.constant dense<0.000000e+00> : vector<256x128xf32>
    %104 = tpu.matmul %102, %103, %cst_102 {dimension_numbers = #tpu.dot_dimension_numbers<[1], [0], [0], [1], [0, 0, 1, 1], [], []>} : vector<256x128xbf16>, vector<128x128xbf16>, vector<256x128xf32> -> vector<256x128xf32>
    %c0_103 = arith.constant 0 : index
    %c0_104 = arith.constant 0 : index
    %105 = vector.load %arg9[%c0_103, %c0_104] : memref<1x128xf32, #tpu.memory_space<vmem>>, vector<1x128xf32>
    %106 = vector.broadcast %105 : vector<1x128xf32> to vector<256x128xf32>
    %107 = arith.mulf %104, %106 : vector<256x128xf32>
    %c0_105 = arith.constant 0 : index
    %c0_106 = arith.constant 0 : index
    %108 = vector.load %arg10[%c0_105, %c0_106] : memref<1x128xf32, #tpu.memory_space<vmem>>, vector<1x128xf32>
    %109 = vector.broadcast %108 : vector<1x128xf32> to vector<256x128xf32>
    %110 = arith.addf %107, %109 : vector<256x128xf32>
    %111 = arith.extf %1 : vector<256x128xbf16> to vector<256x128xf32>
    %112 = arith.addf %110, %111 : vector<256x128xf32>
    %cst_107 = arith.constant 0.000000e+00 : f32
    %113 = vector.broadcast %cst_107 : f32 to vector<256x128xf32>
    %114 = arith.maximumf %112, %113 : vector<256x128xf32>
    %c0_108 = arith.constant 0 : index
    %c0_109 = arith.constant 0 : index
    %115 = vector.load %arg11[%c0_108, %c0_109] : memref<1x128xf32, #tpu.memory_space<vmem>>, vector<1x128xf32>
    %116 = vector.broadcast %115 : vector<1x128xf32> to vector<256x128xf32>
    %117 = arith.mulf %116, %114 : vector<256x128xf32>
    %118 = arith.truncf %117 : vector<256x128xf32> to vector<256x128xbf16>
    %c0_110 = arith.constant 0 : index
    %c0_111 = arith.constant 0 : index
    %c0_112 = arith.constant 0 : index
    %119 = vector.load %arg14[%c0_110, %c0_111, %c0_112] : memref<1x256x128xbf16, #tpu.memory_space<vmem>>, vector<1x256x128xbf16>
    %120 = vector.shape_cast %119 : vector<1x256x128xbf16> to vector<256x128xbf16>
    %121 = vector.shape_cast %118 : vector<256x128xbf16> to vector<1x256x128xbf16>
    tpu.vector_store %arg14[%c0_110, %c0_111, %c0_112], %121 {strides = array<i32>} : memref<1x256x128xbf16, #tpu.memory_space<vmem>>, vector<1x256x128xbf16>,
    return
  }
  func.func @transform_0(%arg0: i32) -> (i32, i32, i32) {
    %c0_i32 = arith.constant 0 : i32
    %c0_i32_0 = arith.constant 0 : i32
    %c0_i32_1 = arith.constant 0 : i32
    return %arg0, %c0_i32, %c0_i32_0 : i32, i32, i32
  }
  func.func @transform_1(%arg0: i32) -> (i32, i32) {
    %c0_i32 = arith.constant 0 : i32
    %c0_i32_0 = arith.constant 0 : i32
    %c0_i32_1 = arith.constant 0 : i32
    return %c0_i32, %c0_i32_0 : i32, i32
  }
  func.func @transform_2(%arg0: i32) -> (i32, i32) {
    %c0_i32 = arith.constant 0 : i32
    %c0_i32_0 = arith.constant 0 : i32
    %c0_i32_1 = arith.constant 0 : i32
    return %c0_i32, %c0_i32_0 : i32, i32
  }
  func.func @transform_3(%arg0: i32) -> (i32, i32) {
    %c0_i32 = arith.constant 0 : i32
    %c0_i32_0 = arith.constant 0 : i32
    %c0_i32_1 = arith.constant 0 : i32
    return %c0_i32, %c0_i32_0 : i32, i32
  }
  func.func @transform_4(%arg0: i32) -> (i32, i32, i32) {
    %c0_i32 = arith.constant 0 : i32
    %c0_i32_0 = arith.constant 0 : i32
    %c0_i32_1 = arith.constant 0 : i32
    %c0_i32_2 = arith.constant 0 : i32
    return %c0_i32, %c0_i32_0, %c0_i32_1 : i32, i32, i32
  }
  func.func @transform_5(%arg0: i32) -> (i32, i32) {
    %c0_i32 = arith.constant 0 : i32
    %c0_i32_0 = arith.constant 0 : i32
    %c0_i32_1 = arith.constant 0 : i32
    return %c0_i32, %c0_i32_0 : i32, i32
  }
  func.func @transform_6(%arg0: i32) -> (i32, i32) {
    %c0_i32 = arith.constant 0 : i32
    %c0_i32_0 = arith.constant 0 : i32
    %c0_i32_1 = arith.constant 0 : i32
    return %c0_i32, %c0_i32_0 : i32, i32
  }
  func.func @transform_7(%arg0: i32) -> (i32, i32) {
    %c0_i32 = arith.constant 0 : i32
    %c0_i32_0 = arith.constant 0 : i32
    %c0_i32_1 = arith.constant 0 : i32
    return %c0_i32, %c0_i32_0 : i32, i32
  }
  func.func @transform_8(%arg0: i32) -> (i32, i32) {
    %c0_i32 = arith.constant 0 : i32
    %c0_i32_0 = arith.constant 0 : i32
    %c0_i32_1 = arith.constant 0 : i32
    return %c0_i32, %c0_i32_0 : i32, i32
  }
  func.func @transform_9(%arg0: i32) -> (i32, i32) {
    %c0_i32 = arith.constant 0 : i32
    %c0_i32_0 = arith.constant 0 : i32
    %c0_i32_1 = arith.constant 0 : i32
    return %c0_i32, %c0_i32_0 : i32, i32
  }
  func.func @transform_10(%arg0: i32) -> (i32, i32) {
    %c0_i32 = arith.constant 0 : i32
    %c0_i32_0 = arith.constant 0 : i32
    %c0_i32_1 = arith.constant 0 : i32
    return %c0_i32, %c0_i32_0 : i32, i32
  }
  func.func @transform_11(%arg0: i32) -> (i32, i32) {
    %c0_i32 = arith.constant 0 : i32
    %c0_i32_0 = arith.constant 0 : i32
    %c0_i32_1 = arith.constant 0 : i32
    return %c0_i32, %c0_i32_0 : i32, i32
  }
  func.func @transform_12(%arg0: i32) -> (i32, i32) {
    %c0_i32 = arith.constant 0 : i32
    %c0_i32_0 = arith.constant 0 : i32
    %c0_i32_1 = arith.constant 0 : i32
    return %c0_i32, %c0_i32_0 : i32, i32
  }
  func.func @transform_13(%arg0: i32) -> (i32, i32, i32) {
    %c0_i32 = arith.constant 0 : i32
    %c0_i32_0 = arith.constant 0 : i32
    %c0_i32_1 = arith.constant 0 : i32
    return %arg0, %c0_i32, %c0_i32_0 : i32, i32, i32
  }
}

</mosaic_0001>

<llo_original>
// kernel: tpu_custom_call.1
$region0: #{tpu_custom_call.1}
  #allocation0 [shape = 'u32[]', space=smem, size = 0x4, offset = 0x4, fixed_abs, tag = 'smem constant byte address 0x4 - core index']
  #allocation1 [shape = 'u32[72,128]{1,0:T(1,128)}', space=vmem, size = 0x9000, scoped, tag = 'internal scratch']
  #allocation2 [shape = 'bf16[304,128]{1,0:T(8,128)(2,1)}', space=vmem, size = 0x13000, scoped, tag = 'scratch operand']
  #allocation3 [shape = 'f32[256,128]{1,0:T(8,128)}', space=vmem, size = 0x20000, scoped, tag = 'scratch operand']
  %s0 = inlined_call_operand.vmem [shape: bf16[2,256,128], index: 0, kind: input, shape index: {}]
  %s1 = inlined_call_operand.hbm [shape: bf16[128,128], index: 1, kind: input, shape index: {}]
  %s2 = inlined_call_operand.vmem [shape: f32[1,128], index: 2, kind: input, shape index: {}]
  %s3 = inlined_call_operand.vmem [shape: f32[1,128], index: 3, kind: input, shape index: {}]
  %s4 = inlined_call_operand.hbm [shape: bf16[9,128,128], index: 4, kind: input, shape index: {}]
  %s5 = inlined_call_operand.vmem [shape: f32[1,128], index: 5, kind: input, shape index: {}]
  %s6 = inlined_call_operand.vmem [shape: f32[1,128], index: 6, kind: input, shape index: {}]
  %s7 = inlined_call_operand.hbm [shape: bf16[128,128], index: 7, kind: input, shape index: {}]
  %s8 = inlined_call_operand.vmem [shape: f32[1,128], index: 8, kind: input, shape index: {}]
  %s9 = inlined_call_operand.vmem [shape: f32[1,128], index: 9, kind: input, shape index: {}]
  %s10 = inlined_call_operand.vmem [shape: f32[1,128], index: 10, kind: input, shape index: {}]
  %s11 = inlined_call_operand.vmem [shape: bf16[256,1], index: 11, kind: input, shape index: {}]
  %s12 = inlined_call_operand.vmem [shape: bf16[256,1], index: 12, kind: input, shape index: {}]
  %s13 = inlined_call_operand.hbm [shape: bf16[2,256,128], index: 13, kind: output, shape index: {}]
  %s14 = sld [smem:[#allocation0]]
  $region97: #{tpu_custom_call.1} parent=0
    _
  %s16 = ssub.s32 1, %s14
  %s17 = scalar_select 0, %s16, %s14
  $region1: #{tpu_custom_call.1} parent=0
    #allocation4 [shape = 'u8[32768]{0}', space=vmem, size = 0x8000, scoped, tag = 'input window, operand 1, single buffered']
    #allocation5 [shape = 's32[2]{0}', space=sflag, size = 0x8, scoped, tag = 'scoped memory for tpu_custom_call.1']
    #allocation6 [shape = 's32[2]{0}', space=sflag, size = 0x8, scoped, tag = 'scoped memory for tpu_custom_call.1']
    #allocation7 [shape = 'u8[294912]{0}', space=vmem, size = 0x48000, scoped, tag = 'input window, operand 4, single buffered']
    #allocation8 [shape = 's32[1]{0}', space=sflag, size = 0x4, scoped, tag = 'scoped memory for tpu_custom_call.1']
    #allocation9 [shape = 'u8[32768]{0}', space=vmem, size = 0x8000, scoped, tag = 'input window, operand 7, single buffered']
    #allocation10 [shape = 'u8[131072]{0}', space=vmem, size = 0x20000, scoped, tag = 'output window, operand 0']
    %18 = vsyncpa [#allocation5], 0
    %19 = vsyncpa [#allocation8], 0
    %20 = vsyncpa [#allocation6], 0
    %s21 = scalar_lea.sflag [#allocation6], 1
    %22 = vsyncpa %s21, 0
    loop: start=0, step=1, limit=4
    $region2: #{tpu_custom_call.1} parent=1 // loop_pre_header
      _
    $region3: #{tpu_custom_call.1} parent=1 // loop_header
      %s24 = sphi 0, %s28
      %p25 = scmp.ge.s32.totalorder %s24, 4
      %s34 = sphi 0, %s36
      %s37 = sphi 0, %s34
      %s38 = sphi 0, %s37
      %s54 = sphi 0, %s38
      %s58 = sphi 0, %s58
      %s60 = sphi 0, %s58
      %s61 = sphi 0, %s60
      %s75 = sphi 0, %s61
      %s79 = sphi 0, %s79
      %s81 = sphi 0, %s79
      %s82 = sphi 0, %s81
      %s96 = sphi 0, %s82
      %s100 = sphi 0, %s100
      %s102 = sphi 0, %s100
      %s103 = sphi 0, %s102
      %s117 = sphi 0, %s103
      %s121 = sphi 0, %s121
      %s123 = sphi 0, %s121
      %s124 = sphi 0, %s123
      %s138 = sphi 0, %s124
      %s142 = sphi 0, %s142
      %s144 = sphi 0, %s142
      %s145 = sphi 0, %s144
      %s159 = sphi 0, %s145
      %s163 = sphi 0, %s163
      %s165 = sphi 0, %s163
      %s166 = sphi 0, %s165
      %s180 = sphi 0, %s166
      %s184 = sphi 0, %s184
      %s186 = sphi 0, %s184
      %s187 = sphi 0, %s186
      %s201 = sphi 0, %s187
      %s205 = sphi 0, %s205
      %s207 = sphi 0, %s205
      %s208 = sphi 0, %s207
      %s222 = sphi 0, %s208
      %s226 = sphi 0, %s226
      %s228 = sphi 0, %s226
      %s229 = sphi 0, %s228
      %s243 = sphi 0, %s229
      %s247 = sphi 0, %s247
      %s249 = sphi 0, %s247
      %s250 = sphi 0, %s249
      %s264 = sphi 0, %s250
      %s268 = sphi 0, %s268
      %s270 = sphi 0, %s268
      %s271 = sphi 0, %s270
      %s285 = sphi 0, %s271
      %s289 = sphi 0, %s289
      %s291 = sphi 0, %s289
      %s292 = sphi 0, %s291
      %s306 = sphi 0, %s292
      %s312 = sphi 0, %s314
      %s315 = sphi 0, %s312
      %s316 = sphi 0, %s315
      %s332 = sphi 0, %s316
    $region4: #{tpu_custom_call.1} parent=1 // loop_header_branch
      %27 = sbr.rel (%p25) target = $region8
    $region5: #{tpu_custom_call.1} parent=1 // loop_body
      %s29 = ssub.s32 %s24, 1
      %s30 = ssub.s32 %s24, 2
      %s31 = sadd.s32 %s24, 1
      %s32 = ssub.s32 %s24, %s31
      %p33 = scmp.eq.s32.totalorder %s32, 0
      %s35 = sadd.s32 %s34, 1
      %s36 = scalar_select %p33, %s34, %s35
      %p39 = pneg %p33
      %p40 = scmp.eq.s32.totalorder %s24, 1
      %p41 = por %p39, %p40
      %p42 = scmp.ne.s32.totalorder %s34, %s37
      %p43 = scmp.eq.s32.totalorder %s24, 0
      %p44 = por %p42, %p43
      %p45 = scmp.ne.s32.totalorder %s34, %s37
      %p46 = scmp.eq.s32.totalorder %s29, 1
      %p47 = por %p45, %p46
      %p48 = scmp.ne.s32.totalorder %s37, %s38
      %p49 = scmp.eq.s32.totalorder %s29, 0
      %p50 = por %p48, %p49
      %p51 = scmp.ne.s32.totalorder %s37, %s38
      %p52 = scmp.eq.s32.totalorder %s30, 1
      %p53 = por %p51, %p52
      %p55 = scmp.ne.s32.totalorder %s38, %s54
      %p56 = scmp.eq.s32.totalorder %s30, 0
      %p57 = por %p55, %p56
      %s59 = sadd.s32 %s58, 1
      %p62 = scmp.eq.s32.totalorder %s24, 1
      %p63 = scmp.ne.s32.totalorder %s58, %s60
      %p64 = scmp.eq.s32.totalorder %s24, 0
      %p65 = por %p63, %p64
      %p66 = scmp.ne.s32.totalorder %s58, %s60
      %p67 = scmp.eq.s32.totalorder %s29, 1
      %p68 = por %p66, %p67
      %p69 = scmp.ne.s32.totalorder %s60, %s61
      %p70 = scmp.eq.s32.totalorder %s29, 0
      %p71 = por %p69, %p70
      %p72 = scmp.ne.s32.totalorder %s60, %s61
      %p73 = scmp.eq.s32.totalorder %s30, 1
      %p74 = por %p72, %p73
      %p76 = scmp.ne.s32.totalorder %s61, %s75
      %p77 = scmp.eq.s32.totalorder %s30, 0
      %p78 = por %p76, %p77
      %s80 = sadd.s32 %s79, 1
      %p83 = scmp.eq.s32.totalorder %s24, 1
      %p84 = scmp.ne.s32.totalorder %s79, %s81
      %p85 = scmp.eq.s32.totalorder %s24, 0
      %p86 = por %p84, %p85
      %p87 = scmp.ne.s32.totalorder %s79, %s81
      %p88 = scmp.eq.s32.totalorder %s29, 1
      %p89 = por %p87, %p88
      %p90 = scmp.ne.s32.totalorder %s81, %s82
      %p91 = scmp.eq.s32.totalorder %s29, 0
      %p92 = por %p90, %p91
      %p93 = scmp.ne.s32.totalorder %s81, %s82
      %p94 = scmp.eq.s32.totalorder %s30, 1
      %p95 = por %p93, %p94
      %p97 = scmp.ne.s32.totalorder %s82, %s96
      %p98 = scmp.eq.s32.totalorder %s30, 0
      %p99 = por %p97, %p98
      %s101 = sadd.s32 %s100, 1
      %p104 = scmp.eq.s32.totalorder %s24, 1
      %p105 = scmp.ne.s32.totalorder %s100, %s102
      %p106 = scmp.eq.s32.totalorder %s24, 0
      %p107 = por %p105, %p106
      %p108 = scmp.ne.s32.totalorder %s100, %s102
      %p109 = scmp.eq.s32.totalorder %s29, 1
      %p110 = por %p108, %p109
      %p111 = scmp.ne.s32.totalorder %s102, %s103
      %p112 = scmp.eq.s32.totalorder %s29, 0
      %p113 = por %p111, %p112
      %p114 = scmp.ne.s32.totalorder %s102, %s103
      %p115 = scmp.eq.s32.totalorder %s30, 1
      %p116 = por %p114, %p115
      %p118 = scmp.ne.s32.totalorder %s103, %s117
      %p119 = scmp.eq.s32.totalorder %s30, 0
      %p120 = por %p118, %p119
      %s122 = sadd.s32 %s121, 1
      %p125 = scmp.eq.s32.totalorder %s24, 1
      %p126 = scmp.ne.s32.totalorder %s121, %s123
      %p127 = scmp.eq.s32.totalorder %s24, 0
      %p128 = por %p126, %p127
      %p129 = scmp.ne.s32.totalorder %s121, %s123
      %p130 = scmp.eq.s32.totalorder %s29, 1
      %p131 = por %p129, %p130
      %p132 = scmp.ne.s32.totalorder %s123, %s124
      %p133 = scmp.eq.s32.totalorder %s29, 0
      %p134 = por %p132, %p133
      %p135 = scmp.ne.s32.totalorder %s123, %s124
      %p136 = scmp.eq.s32.totalorder %s30, 1
      %p137 = por %p135, %p136
      %p139 = scmp.ne.s32.totalorder %s124, %s138
      %p140 = scmp.eq.s32.totalorder %s30, 0
      %p141 = por %p139, %p140
      %s143 = sadd.s32 %s142, 1
      %p146 = scmp.eq.s32.totalorder %s24, 1
      %p147 = scmp.ne.s32.totalorder %s142, %s144
      %p148 = scmp.eq.s32.totalorder %s24, 0
      %p149 = por %p147, %p148
      %p150 = scmp.ne.s32.totalorder %s142, %s144
      %p151 = scmp.eq.s32.totalorder %s29, 1
      %p152 = por %p150, %p151
      %p153 = scmp.ne.s32.totalorder %s144, %s145
      %p154 = scmp.eq.s32.totalorder %s29, 0
      %p155 = por %p153, %p154
      %p156 = scmp.ne.s32.totalorder %s144, %s145
      %p157 = scmp.eq.s32.totalorder %s30, 1
      %p158 = por %p156, %p157
      %p160 = scmp.ne.s32.totalorder %s145, %s159
      %p161 = scmp.eq.s32.totalorder %s30, 0
      %p162 = por %p160, %p161
      %s164 = sadd.s32 %s163, 1
      %p167 = scmp.eq.s32.totalorder %s24, 1
      %p168 = scmp.ne.s32.totalorder %s163, %s165
      %p169 = scmp.eq.s32.totalorder %s24, 0
      %p170 = por %p168, %p169
      %p171 = scmp.ne.s32.totalorder %s163, %s165
      %p172 = scmp.eq.s32.totalorder %s29, 1
      %p173 = por %p171, %p172
      %p174 = scmp.ne.s32.totalorder %s165, %s166
      %p175 = scmp.eq.s32.totalorder %s29, 0
      %p176 = por %p174, %p175
      %p177 = scmp.ne.s32.totalorder %s165, %s166
      %p178 = scmp.eq.s32.totalorder %s30, 1
      %p179 = por %p177, %p178
      %p181 = scmp.ne.s32.totalorder %s166, %s180
      %p182 = scmp.eq.s32.totalorder %s30, 0
      %p183 = por %p181, %p182
      %s185 = sadd.s32 %s184, 1
      %p188 = scmp.eq.s32.totalorder %s24, 1
      %p189 = scmp.ne.s32.totalorder %s184, %s186
      %p190 = scmp.eq.s32.totalorder %s24, 0
      %p191 = por %p189, %p190
      %p192 = scmp.ne.s32.totalorder %s184, %s186
      %p193 = scmp.eq.s32.totalorder %s29, 1
      %p194 = por %p192, %p193
      %p195 = scmp.ne.s32.totalorder %s186, %s187
      %p196 = scmp.eq.s32.totalorder %s29, 0
      %p197 = por %p195, %p196
      %p198 = scmp.ne.s32.totalorder %s186, %s187
      %p199 = scmp.eq.s32.totalorder %s30, 1
      %p200 = por %p198, %p199
      %p202 = scmp.ne.s32.totalorder %s187, %s201
      %p203 = scmp.eq.s32.totalorder %s30, 0
      %p204 = por %p202, %p203
      %s206 = sadd.s32 %s205, 1
      %p209 = scmp.eq.s32.totalorder %s24, 1
      %p210 = scmp.ne.s32.totalorder %s205, %s207
      %p211 = scmp.eq.s32.totalorder %s24, 0
      %p212 = por %p210, %p211
      %p213 = scmp.ne.s32.totalorder %s205, %s207
      %p214 = scmp.eq.s32.totalorder %s29, 1
      %p215 = por %p213, %p214
      %p216 = scmp.ne.s32.totalorder %s207, %s208
      %p217 = scmp.eq.s32.totalorder %s29, 0
      %p218 = por %p216, %p217
      %p219 = scmp.ne.s32.totalorder %s207, %s208
      %p220 = scmp.eq.s32.totalorder %s30, 1
      %p221 = por %p219, %p220
      %p223 = scmp.ne.s32.totalorder %s208, %s222
      %p224 = scmp.eq.s32.totalorder %s30, 0
      %p225 = por %p223, %p224
      %s227 = sadd.s32 %s226, 1
      %p230 = scmp.eq.s32.totalorder %s24, 1
      %p231 = scmp.ne.s32.totalorder %s226, %s228
      %p232 = scmp.eq.s32.totalorder %s24, 0
      %p233 = por %p231, %p232
      %p234 = scmp.ne.s32.totalorder %s226, %s228
      %p235 = scmp.eq.s32.totalorder %s29, 1
      %p236 = por %p234, %p235
      %p237 = scmp.ne.s32.totalorder %s228, %s229
      %p238 = scmp.eq.s32.totalorder %s29, 0
      %p239 = por %p237, %p238
      %p240 = scmp.ne.s32.totalorder %s228, %s229
      %p241 = scmp.eq.s32.totalorder %s30, 1
      %p242 = por %p240, %p241
      %p244 = scmp.ne.s32.totalorder %s229, %s243
      %p245 = scmp.eq.s32.totalorder %s30, 0
      %p246 = por %p244, %p245
      %s248 = sadd.s32 %s247, 1
      %p251 = scmp.eq.s32.totalorder %s24, 1
      %p252 = scmp.ne.s32.totalorder %s247, %s249
      %p253 = scmp.eq.s32.totalorder %s24, 0
      %p254 = por %p252, %p253
      %p255 = scmp.ne.s32.totalorder %s247, %s249
      %p256 = scmp.eq.s32.totalorder %s29, 1
      %p257 = por %p255, %p256
      %p258 = scmp.ne.s32.totalorder %s249, %s250
      %p259 = scmp.eq.s32.totalorder %s29, 0
      %p260 = por %p258, %p259
      %p261 = scmp.ne.s32.totalorder %s249, %s250
      %p262 = scmp.eq.s32.totalorder %s30, 1
      %p263 = por %p261, %p262
      %p265 = scmp.ne.s32.totalorder %s250, %s264
      %p266 = scmp.eq.s32.totalorder %s30, 0
      %p267 = por %p265, %p266
      %s269 = sadd.s32 %s268, 1
      %p272 = scmp.eq.s32.totalorder %s24, 1
      %p273 = scmp.ne.s32.totalorder %s268, %s270
      %p274 = scmp.eq.s32.totalorder %s24, 0
      %p275 = por %p273, %p274
      %p276 = scmp.ne.s32.totalorder %s268, %s270
      %p277 = scmp.eq.s32.totalorder %s29, 1
      %p278 = por %p276, %p277
      %p279 = scmp.ne.s32.totalorder %s270, %s271
      %p280 = scmp.eq.s32.totalorder %s29, 0
      %p281 = por %p279, %p280
      %p282 = scmp.ne.s32.totalorder %s270, %s271
      %p283 = scmp.eq.s32.totalorder %s30, 1
      %p284 = por %p282, %p283
      %p286 = scmp.ne.s32.totalorder %s271, %s285
      %p287 = scmp.eq.s32.totalorder %s30, 0
      %p288 = por %p286, %p287
      %s290 = sadd.s32 %s289, 1
      %p293 = scmp.eq.s32.totalorder %s24, 1
      %p294 = scmp.ne.s32.totalorder %s289, %s291
      %p295 = scmp.eq.s32.totalorder %s24, 0
      %p296 = por %p294, %p295
      %p297 = scmp.ne.s32.totalorder %s289, %s291
      %p298 = scmp.eq.s32.totalorder %s29, 1
      %p299 = por %p297, %p298
      %p300 = scmp.ne.s32.totalorder %s291, %s292
      %p301 = scmp.eq.s32.totalorder %s29, 0
      %p302 = por %p300, %p301
      %p303 = scmp.ne.s32.totalorder %s291, %s292
      %p304 = scmp.eq.s32.totalorder %s30, 1
      %p305 = por %p303, %p304
      %p307 = scmp.ne.s32.totalorder %s292, %s306
      %p308 = scmp.eq.s32.totalorder %s30, 0
      %p309 = por %p307, %p308
      %s310 = ssub.s32 %s24, %s31
      %p311 = scmp.eq.s32.totalorder %s310, 0
      %s313 = sadd.s32 %s312, 1
      %s314 = scalar_select %p311, %s312, %s313
      %p317 = pneg %p311
      %p318 = scmp.eq.s32.totalorder %s24, 1
      %p319 = por %p317, %p318
      %p320 = scmp.ne.s32.totalorder %s312, %s315
      %p321 = scmp.eq.s32.totalorder %s24, 0
      %p322 = por %p320, %p321
      %p323 = scmp.ne.s32.totalorder %s312, %s315
      %p324 = scmp.eq.s32.totalorder %s29, 1
      %p325 = por %p323, %p324
      %p326 = scmp.ne.s32.totalorder %s315, %s316
      %p327 = scmp.eq.s32.totalorder %s29, 0
      %p328 = por %p326, %p327
      %p329 = scmp.ne.s32.totalorder %s315, %s316
      %p330 = scmp.eq.s32.totalorder %s30, 1
      %p331 = por %p329, %p330
      %p333 = scmp.ne.s32.totalorder %s316, %s332
      %p334 = scmp.eq.s32.totalorder %s30, 0
      %p335 = por %p333, %p334
      %p336 = scmp.le.s32.totalorder 1, %s24
      %p337 = scmp.lt.s32.totalorder %s24, 3
      %p338 = pnand %p336, %p337
      %p339 = pneg %p338
      // Predicated region
      $region9: #{tpu_custom_call.1} parent=5 // pred_check
        _
      $region10: #{tpu_custom_call.1} parent=5 // pred_check_branch
        %341 = sbr.rel (%p338) target = $region12
      $region11: #{tpu_custom_call.1} parent=5 // pred_region
        %s342 = ssub.s32 %s24, 1
        // Predicated region
        $region13: #{tpu_custom_call.1} parent=11 // pred_check
          %p343 = pneg %p71
        $region14: #{tpu_custom_call.1} parent=11 // pred_check_branch
          %345 = sbr.rel (%p343) target = $region16
        $region15: #{tpu_custom_call.1} parent=11 // pred_region
          %347 = vsyncadd [#allocation5], 0
          %s348 = sshll.u32 %s1, 4
          %s349 = int_to_ptr.hbm [resolvable:$true] %s348
          %s350 = sshll.u32 [#allocation4], 4
          %s351 = int_to_ptr.vmem [resolvable:$true] %s350
          %356 = dma.hbm_to_vmem [thread:$0]  %s349, 1024, %s351, [#allocation5], 64, 64, 4
        $region16: #{tpu_custom_call.1} parent=11 // pred_fallthru
          _
        // Predicated region
        $region17: #{tpu_custom_call.1} parent=11 // pred_check
          %p357 = pneg %p92
        $region18: #{tpu_custom_call.1} parent=11 // pred_check_branch
          %359 = sbr.rel (%p357) target = $region20
        $region19: #{tpu_custom_call.1} parent=11 // pred_region
          _
        $region20: #{tpu_custom_call.1} parent=11 // pred_fallthru
          _
        // Predicated region
        $region21: #{tpu_custom_call.1} parent=11 // pred_check
          %p360 = pneg %p113
        $region22: #{tpu_custom_call.1} parent=11 // pred_check_branch
          %362 = sbr.rel (%p360) target = $region24
        $region23: #{tpu_custom_call.1} parent=11 // pred_region
          _
        $region24: #{tpu_custom_call.1} parent=11 // pred_fallthru
          _
        // Predicated region
        $region25: #{tpu_custom_call.1} parent=11 // pred_check
          %p363 = pneg %p134
        $region26: #{tpu_custom_call.1} parent=11 // pred_check_branch
          %365 = sbr.rel (%p363) target = $region28
        $region27: #{tpu_custom_call.1} parent=11 // pred_region
          %367 = vsyncadd [#allocation8], 0
          %s368 = sshll.u32 %s4, 4
          %s369 = int_to_ptr.hbm [resolvable:$true] %s368
          %s370 = sshll.u32 [#allocation7], 4
          %s371 = int_to_ptr.vmem [resolvable:$true] %s370
          %376 = dma.hbm_to_vmem [thread:$0]  %s369, 9216, %s371, [#allocation8], 64, 64, 4
        $region28: #{tpu_custom_call.1} parent=11 // pred_fallthru
          _
        // Predicated region
        $region29: #{tpu_custom_call.1} parent=11 // pred_check
          %p377 = pneg %p155
        $region30: #{tpu_custom_call.1} parent=11 // pred_check_branch
          %379 = sbr.rel (%p377) target = $region32
        $region31: #{tpu_custom_call.1} parent=11 // pred_region
          _
        $region32: #{tpu_custom_call.1} parent=11 // pred_fallthru
          _
        // Predicated region
        $region33: #{tpu_custom_call.1} parent=11 // pred_check
          %p380 = pneg %p176
        $region34: #{tpu_custom_call.1} parent=11 // pred_check_branch
          %382 = sbr.rel (%p380) target = $region36
        $region35: #{tpu_custom_call.1} parent=11 // pred_region
          _
        $region36: #{tpu_custom_call.1} parent=11 // pred_fallthru
          _
        // Predicated region
        $region37: #{tpu_custom_call.1} parent=11 // pred_check
          %p383 = pneg %p197
        $region38: #{tpu_custom_call.1} parent=11 // pred_check_branch
          %385 = sbr.rel (%p383) target = $region40
        $region39: #{tpu_custom_call.1} parent=11 // pred_region
          %387 = vsyncadd [#allocation8], 0
          %s388 = sshll.u32 %s7, 4
          %s389 = int_to_ptr.hbm [resolvable:$true] %s388
          %s390 = sshll.u32 [#allocation9], 4
          %s391 = int_to_ptr.vmem [resolvable:$true] %s390
          %396 = dma.hbm_to_vmem [thread:$0]  %s389, 1024, %s391, [#allocation8], 64, 64, 4
        $region40: #{tpu_custom_call.1} parent=11 // pred_fallthru
          _
        // Predicated region
        $region41: #{tpu_custom_call.1} parent=11 // pred_check
          %p397 = pneg %p218
        $region42: #{tpu_custom_call.1} parent=11 // pred_check_branch
          %399 = sbr.rel (%p397) target = $region44
        $region43: #{tpu_custom_call.1} parent=11 // pred_region
          _
        $region44: #{tpu_custom_call.1} parent=11 // pred_fallthru
          _
        // Predicated region
        $region45: #{tpu_custom_call.1} parent=11 // pred_check
          %p400 = pneg %p239
        $region46: #{tpu_custom_call.1} parent=11 // pred_check_branch
          %402 = sbr.rel (%p400) target = $region48
        $region47: #{tpu_custom_call.1} parent=11 // pred_region
          _
        $region48: #{tpu_custom_call.1} parent=11 // pred_fallthru
          _
        // Predicated region
        $region49: #{tpu_custom_call.1} parent=11 // pred_check
          %p403 = pneg %p260
        $region50: #{tpu_custom_call.1} parent=11 // pred_check_branch
          %405 = sbr.rel (%p403) target = $region52
        $region51: #{tpu_custom_call.1} parent=11 // pred_region
          _
        $region52: #{tpu_custom_call.1} parent=11 // pred_fallthru
          _
        // Predicated region
        $region53: #{tpu_custom_call.1} parent=11 // pred_check
          %p406 = pneg %p281
        $region54: #{tpu_custom_call.1} parent=11 // pred_check_branch
          %408 = sbr.rel (%p406) target = $region56
        $region55: #{tpu_custom_call.1} parent=11 // pred_region
          _
        $region56: #{tpu_custom_call.1} parent=11 // pred_fallthru
          _
        // Predicated region
        $region57: #{tpu_custom_call.1} parent=11 // pred_check
          %p409 = pneg %p302
        $region58: #{tpu_custom_call.1} parent=11 // pred_check_branch
          %411 = sbr.rel (%p409) target = $region60
        $region59: #{tpu_custom_call.1} parent=11 // pred_region
          _
        $region60: #{tpu_custom_call.1} parent=11 // pred_fallthru
          _
      $region12: #{tpu_custom_call.1} parent=5 // pred_fallthru
        _
      %p412 = scmp.lt.s32.totalorder %s24, 2
      // Predicated region
      $region61: #{tpu_custom_call.1} parent=5 // pred_check
        %p413 = pneg %p412
      $region62: #{tpu_custom_call.1} parent=5 // pred_check_branch
        %415 = sbr.rel (%p413) target = $region64
      $region63: #{tpu_custom_call.1} parent=5 // pred_region
        // Predicated region
        $region65: #{tpu_custom_call.1} parent=63 // pred_check
          %p416 = pneg %p44
        $region66: #{tpu_custom_call.1} parent=63 // pred_check_branch
          %418 = sbr.rel (%p416) target = $region68
        $region67: #{tpu_custom_call.1} parent=63 // pred_region
          %p419 = scmp.lt.s32.totalorder %s24, 1
          %s420 = scalar_select %p419, %s24, 1
          %s421 = smul.addr %s420, 32
          %s422 = smul.addr %s421, 4
          %s423 = scalar_lea.vmem %s0, %s422
        $region68: #{tpu_custom_call.1} parent=63 // pred_fallthru
          _
      $region64: #{tpu_custom_call.1} parent=5 // pred_fallthru
        _
      %p424 = scmp.le.s32.totalorder 1, %s24
      %p425 = scmp.lt.s32.totalorder %s24, 3
      %p426 = pnand %p424, %p425
      %p427 = pneg %p426
      // Predicated region
      $region69: #{tpu_custom_call.1} parent=5 // pred_check
        _
      $region70: #{tpu_custom_call.1} parent=5 // pred_check_branch
        %429 = sbr.rel (%p426) target = $region72
      $region71: #{tpu_custom_call.1} parent=5 // pred_region
        %s430 = ssub.s32 %s24, 1
        // Predicated region
        $region73: #{tpu_custom_call.1} parent=71 // pred_check
          %p431 = pneg %p71
        $region74: #{tpu_custom_call.1} parent=71 // pred_check_branch
          %433 = sbr.rel (%p431) target = $region76
        $region75: #{tpu_custom_call.1} parent=71 // pred_region
          %435 = dma.done [#allocation5], 1024
        $region76: #{tpu_custom_call.1} parent=71 // pred_fallthru
          _
        // Predicated region
        $region77: #{tpu_custom_call.1} parent=71 // pred_check
          %p436 = pneg %p134
        $region78: #{tpu_custom_call.1} parent=71 // pred_check_branch
          %438 = sbr.rel (%p436) target = $region80
        $region79: #{tpu_custom_call.1} parent=71 // pred_region
          %440 = dma.done [#allocation8], 9216
        $region80: #{tpu_custom_call.1} parent=71 // pred_fallthru
          _
        // Predicated region
        $region81: #{tpu_custom_call.1} parent=71 // pred_check
          %p441 = pneg %p197
        $region82: #{tpu_custom_call.1} parent=71 // pred_check_branch
          %443 = sbr.rel (%p441) target = $region84
        $region83: #{tpu_custom_call.1} parent=71 // pred_region
          %445 = dma.done [#allocation8], 1024
        $region84: #{tpu_custom_call.1} parent=71 // pred_fallthru
          _
        %p446 = scmp.lt.s32.totalorder %s29, 1
        %s447 = scalar_select %p446, %s29, 1
        %s448 = smul.addr %s447, 32
        %s449 = smul.addr %s448, 4
        %s450 = scalar_lea.vmem %s0, %s449
        %p451 = pneg %p50
        %p452 = pneg %p47
        %p453 = pneg %p71
        %p454 = pneg %p68
        %p455 = pneg %p92
        %p456 = pneg %p89
        %p457 = pneg %p113
        %p458 = pneg %p110
        %p459 = pneg %p134
        %p460 = pneg %p131
        %p461 = pneg %p155
        %p462 = pneg %p152
        %p463 = pneg %p176
        %p464 = pneg %p173
        %p465 = pneg %p197
        %p466 = pneg %p194
        %p467 = pneg %p218
        %p468 = pneg %p215
        %p469 = pneg %p239
        %p470 = pneg %p236
        %p471 = pneg %p260
        %p472 = pneg %p257
        %p473 = pneg %p281
        %p474 = pneg %p278
        %p475 = pneg %p302
        %p476 = pneg %p299
        %p477 = pneg %p328
        %p478 = pneg %p325
        %s479 = sand.u32 %s315, 1
        %s480 = scalar_lea.sflag [#allocation6], %s479
        %s481 = sand.u32 %s315, 1
        %s482 = smul.addr %s481, 128
        %s483 = scalar_lea.vmem [#allocation10], %s482
        %p484 = scmp.lt.s32.totalorder %s29, 1
        %s485 = scalar_select %p484, %s29, 1
        %s486 = smul.addr %s485, 32
        %s487 = smul.addr %s486, 4
        %s488 = scalar_lea.vmem %s0, %s487
        %v490 = vld [vmem:[%s488] sm:$0xf]
        %v491 = vld [vmem:[%s488 + $0x4] sm:$0xf]
        %v492 = vld [vmem:[%s488 + $0x8] sm:$0xf]
        %v493 = vld [vmem:[%s488 + $0xc] sm:$0xf]
        %v494 = vld [vmem:[%s488 + $0x10] sm:$0xf]
        %v495 = vld [vmem:[%s488 + $0x14] sm:$0xf]
        %v496 = vld [vmem:[%s488 + $0x18] sm:$0xf]
        %v497 = vld [vmem:[%s488 + $0x1c] sm:$0xf]
        %v498 = vld [vmem:[%s488 + $0x20] sm:$0xf]
        %v499 = vld [vmem:[%s488 + $0x24] sm:$0xf]
        %v500 = vld [vmem:[%s488 + $0x28] sm:$0xf]
        %v501 = vld [vmem:[%s488 + $0x2c] sm:$0xf]
        %v502 = vld [vmem:[%s488 + $0x30] sm:$0xf]
        %v503 = vld [vmem:[%s488 + $0x34] sm:$0xf]
        %v504 = vld [vmem:[%s488 + $0x38] sm:$0xf]
        %v505 = vld [vmem:[%s488 + $0x3c] sm:$0xf]
        %v506 = vld [vmem:[%s488 + $0x40] sm:$0xf]
        %v507 = vld [vmem:[%s488 + $0x44] sm:$0xf]
        %v508 = vld [vmem:[%s488 + $0x48] sm:$0xf]
        %v509 = vld [vmem:[%s488 + $0x4c] sm:$0xf]
        %v510 = vld [vmem:[%s488 + $0x50] sm:$0xf]
        %v511 = vld [vmem:[%s488 + $0x54] sm:$0xf]
        %v512 = vld [vmem:[%s488 + $0x58] sm:$0xf]
        %v513 = vld [vmem:[%s488 + $0x5c] sm:$0xf]
        %v514 = vld [vmem:[%s488 + $0x60] sm:$0xf]
        %v515 = vld [vmem:[%s488 + $0x64] sm:$0xf]
        %v516 = vld [vmem:[%s488 + $0x68] sm:$0xf]
        %v517 = vld [vmem:[%s488 + $0x6c] sm:$0xf]
        %v518 = vld [vmem:[%s488 + $0x70] sm:$0xf]
        %v519 = vld [vmem:[%s488 + $0x74] sm:$0xf]
        %v520 = vld [vmem:[%s488 + $0x78] sm:$0xf]
        %v521 = vld [vmem:[%s488 + $0x7c] sm:$0xf]
        %v522 = vld [vmem:[#allocation4] sm:$0xf]
        %v523 = vld [vmem:[#allocation4 + $0x4] sm:$0xf]
        %v524 = vld [vmem:[#allocation4 + $0x8] sm:$0xf]
        %v525 = vld [vmem:[#allocation4 + $0xc] sm:$0xf]
        %v526 = vld [vmem:[#allocation4 + $0x10] sm:$0xf]
        %v527 = vld [vmem:[#allocation4 + $0x14] sm:$0xf]
        %v528 = vld [vmem:[#allocation4 + $0x18] sm:$0xf]
        %v529 = vld [vmem:[#allocation4 + $0x1c] sm:$0xf]
        %v530 = vld [vmem:[#allocation4 + $0x20] sm:$0xf]
        %v531 = vld [vmem:[#allocation4 + $0x24] sm:$0xf]
        %v532 = vld [vmem:[#allocation4 + $0x28] sm:$0xf]
        %v533 = vld [vmem:[#allocation4 + $0x2c] sm:$0xf]
        %v534 = vld [vmem:[#allocation4 + $0x30] sm:$0xf]
        %v535 = vld [vmem:[#allocation4 + $0x34] sm:$0xf]
        %v536 = vld [vmem:[#allocation4 + $0x38] sm:$0xf]
        %v537 = vld [vmem:[#allocation4 + $0x3c] sm:$0xf]
        %v570 = vunpack.c.l.b16 %v490
        %v571 = vunpack.c.l.b16 %v491
        %v572 = vunpack.c.l.b16 %v492
        %v573 = vunpack.c.l.b16 %v493
        %v574 = vunpack.c.l.b16 %v494
        %v575 = vunpack.c.l.b16 %v495
        %v576 = vunpack.c.l.b16 %v496
        %v577 = vunpack.c.l.b16 %v497
        %v578 = vunpack.c.l.b16 %v498
        %v579 = vunpack.c.l.b16 %v499
        %v580 = vunpack.c.l.b16 %v500
        %v581 = vunpack.c.l.b16 %v501
        %v582 = vunpack.c.l.b16 %v502
        %v583 = vunpack.c.l.b16 %v503
        %v584 = vunpack.c.l.b16 %v504
        %v585 = vunpack.c.l.b16 %v505
        %v586 = vunpack.c.l.b16 %v506
        %v587 = vunpack.c.l.b16 %v507
        %v588 = vunpack.c.l.b16 %v508
        %v589 = vunpack.c.l.b16 %v509
        %v590 = vunpack.c.l.b16 %v510
        %v591 = vunpack.c.l.b16 %v511
        %v592 = vunpack.c.l.b16 %v512
        %v593 = vunpack.c.l.b16 %v513
        %v594 = vunpack.c.l.b16 %v514
        %v595 = vunpack.c.l.b16 %v515
        %v596 = vunpack.c.l.b16 %v516
        %v597 = vunpack.c.l.b16 %v517
        %v598 = vunpack.c.l.b16 %v518
        %v599 = vunpack.c.l.b16 %v519
        %v600 = vunpack.c.l.b16 %v520
        %v601 = vunpack.c.l.b16 %v521
        %v602 = vpack.c.b16 %v571, %v570
        %v603 = vpack.c.b16 %v573, %v572
        %v604 = vpack.c.b16 %v575, %v574
        %v605 = vpack.c.b16 %v577, %v576
        %v606 = vpack.c.b16 %v579, %v578
        %v607 = vpack.c.b16 %v581, %v580
        %v608 = vpack.c.b16 %v583, %v582
        %v609 = vpack.c.b16 %v585, %v584
        %v610 = vpack.c.b16 %v587, %v586
        %v611 = vpack.c.b16 %v589, %v588
        %v612 = vpack.c.b16 %v591, %v590
        %v613 = vpack.c.b16 %v593, %v592
        %v614 = vpack.c.b16 %v595, %v594
        %v615 = vpack.c.b16 %v597, %v596
        %v616 = vpack.c.b16 %v599, %v598
        %v617 = vpack.c.b16 %v601, %v600
        %v650 = vunpack.c.l.b16 %v522
        %v651 = vunpack.c.l.b16 %v523
        %v652 = vunpack.c.l.b16 %v524
        %v653 = vunpack.c.l.b16 %v525
        %v654 = vunpack.c.l.b16 %v526
        %v655 = vunpack.c.l.b16 %v527
        %v656 = vunpack.c.l.b16 %v528
        %v657 = vunpack.c.l.b16 %v529
        %v658 = vunpack.c.l.b16 %v530
        %v659 = vunpack.c.l.b16 %v531
        %v660 = vunpack.c.l.b16 %v532
        %v661 = vunpack.c.l.b16 %v533
        %v662 = vunpack.c.l.b16 %v534
        %v663 = vunpack.c.l.b16 %v535
        %v664 = vunpack.c.l.b16 %v536
        %v665 = vunpack.c.l.b16 %v537
        %v666 = vpack.c.b16 %v651, %v650
        %v667 = vpack.c.b16 %v653, %v652
        %v668 = vpack.c.b16 %v655, %v654
        %v669 = vpack.c.b16 %v657, %v656
        %v670 = vpack.c.b16 %v659, %v658
        %v671 = vpack.c.b16 %v661, %v660
        %v672 = vpack.c.b16 %v663, %v662
        %v673 = vpack.c.b16 %v665, %v664
        %682 = vmatpush.bf16.msra.mxu0 %v673
        %683 = vmatpush.bf16.msra.mxu0 %v672
        %684 = vmatpush.bf16.msra.mxu0 %v671
        %685 = vmatpush.bf16.msra.mxu0 %v670
        %686 = vmatpush.bf16.msra.mxu0 %v669
        %687 = vmatpush.bf16.msra.mxu0 %v668
        %688 = vmatpush.bf16.msra.mxu0 %v667
        %689 = vmatpush.bf16.msra.mxu0 %v666
        %690 = vmatmul.bf16.gmra.mxu0 %v602
        %v691 = vpop.f32.mrf.mxu0
        %v692 = vadd.f32 0.0, %v691
        %v693 = vpop.f32.mrf.mxu0
        %v694 = vadd.f32 0.0, %v693
        %695 = vmatmul.bf16.gmra.mxu0 %v603
        %v696 = vpop.f32.mrf.mxu0
        %v697 = vadd.f32 0.0, %v696
        %v698 = vpop.f32.mrf.mxu0
        %v699 = vadd.f32 0.0, %v698
        %700 = vmatmul.bf16.gmra.mxu0 %v604
        %v701 = vpop.f32.mrf.mxu0
        %v702 = vadd.f32 0.0, %v701
        %v703 = vpop.f32.mrf.mxu0
        %v704 = vadd.f32 0.0, %v703
        %705 = vmatmul.bf16.gmra.mxu0 %v605
        %v706 = vpop.f32.mrf.mxu0
        %v707 = vadd.f32 0.0, %v706
        %v708 = vpop.f32.mrf.mxu0
        %v709 = vadd.f32 0.0, %v708
        %710 = vmatmul.bf16.gmra.mxu0 %v606
        %v711 = vpop.f32.mrf.mxu0
        %v712 = vadd.f32 0.0, %v711
        %v713 = vpop.f32.mrf.mxu0
        %v714 = vadd.f32 0.0, %v713
        %715 = vmatmul.bf16.gmra.mxu0 %v607
        %v716 = vpop.f32.mrf.mxu0
        %v717 = vadd.f32 0.0, %v716
        %v718 = vpop.f32.mrf.mxu0
        %v719 = vadd.f32 0.0, %v718
        %720 = vmatmul.bf16.gmra.mxu0 %v608
        %v721 = vpop.f32.mrf.mxu0
        %v722 = vadd.f32 0.0, %v721
        %v723 = vpop.f32.mrf.mxu0
        %v724 = vadd.f32 0.0, %v723
        %725 = vmatmul.bf16.gmra.mxu0 %v609
        %v726 = vpop.f32.mrf.mxu0
        %v727 = vadd.f32 0.0, %v726
        %v728 = vpop.f32.mrf.mxu0
        %v729 = vadd.f32 0.0, %v728
        %730 = vmatmul.bf16.gmra.mxu0 %v610
        %v731 = vpop.f32.mrf.mxu0
        %v732 = vadd.f32 0.0, %v731
        %v733 = vpop.f32.mrf.mxu0
        %v734 = vadd.f32 0.0, %v733
        %735 = vmatmul.bf16.gmra.mxu0 %v611
        %v736 = vpop.f32.mrf.mxu0
        %v737 = vadd.f32 0.0, %v736
        %v738 = vpop.f32.mrf.mxu0
        %v739 = vadd.f32 0.0, %v738
        %740 = vmatmul.bf16.gmra.mxu0 %v612
        %v741 = vpop.f32.mrf.mxu0
        %v742 = vadd.f32 0.0, %v741
        %v743 = vpop.f32.mrf.mxu0
        %v744 = vadd.f32 0.0, %v743
        %745 = vmatmul.bf16.gmra.mxu0 %v613
        %v746 = vpop.f32.mrf.mxu0
        %v747 = vadd.f32 0.0, %v746
        %v748 = vpop.f32.mrf.mxu0
        %v749 = vadd.f32 0.0, %v748
        %750 = vmatmul.bf16.gmra.mxu0 %v614
        %v751 = vpop.f32.mrf.mxu0
        %v752 = vadd.f32 0.0, %v751
        %v753 = vpop.f32.mrf.mxu0
        %v754 = vadd.f32 0.0, %v753
        %755 = vmatmul.bf16.gmra.mxu0 %v615
        %v756 = vpop.f32.mrf.mxu0
        %v757 = vadd.f32 0.0, %v756
        %v758 = vpop.f32.mrf.mxu0
        %v759 = vadd.f32 0.0, %v758
        %760 = vmatmul.bf16.gmra.mxu0 %v616
        %v761 = vpop.f32.mrf.mxu0
        %v762 = vadd.f32 0.0, %v761
        %v763 = vpop.f32.mrf.mxu0
        %v764 = vadd.f32 0.0, %v763
        %765 = vmatmul.bf16.gmra.mxu0 %v617
        %v766 = vpop.f32.mrf.mxu0
        %v767 = vadd.f32 0.0, %v766
        %v768 = vpop.f32.mrf.mxu0
        %v769 = vadd.f32 0.0, %v768
        %770 = vdwg.mxu0
        %v771 = vld [vmem:[%s2] sm:$0x1]
        %v773 = vperm.slane %v771, 0
        %v775 = vmul.f32 %v692, %v773
        %v776 = vmul.f32 %v694, %v773
        %v777 = vmul.f32 %v697, %v773
        %v778 = vmul.f32 %v699, %v773
        %v779 = vmul.f32 %v702, %v773
        %v780 = vmul.f32 %v704, %v773
        %v781 = vmul.f32 %v707, %v773
        %v782 = vmul.f32 %v709, %v773
        %v783 = vmul.f32 %v712, %v773
        %v784 = vmul.f32 %v714, %v773
        %v785 = vmul.f32 %v717, %v773
        %v786 = vmul.f32 %v719, %v773
        %v787 = vmul.f32 %v722, %v773
        %v788 = vmul.f32 %v724, %v773
        %v789 = vmul.f32 %v727, %v773
        %v790 = vmul.f32 %v729, %v773
        %v791 = vmul.f32 %v732, %v773
        %v792 = vmul.f32 %v734, %v773
        %v793 = vmul.f32 %v737, %v773
        %v794 = vmul.f32 %v739, %v773
        %v795 = vmul.f32 %v742, %v773
        %v796 = vmul.f32 %v744, %v773
        %v797 = vmul.f32 %v747, %v773
        %v798 = vmul.f32 %v749, %v773
        %v799 = vmul.f32 %v752, %v773
        %v800 = vmul.f32 %v754, %v773
        %v801 = vmul.f32 %v757, %v773
        %v802 = vmul.f32 %v759, %v773
        %v803 = vmul.f32 %v762, %v773
        %v804 = vmul.f32 %v764, %v773
        %v805 = vmul.f32 %v767, %v773
        %v806 = vmul.f32 %v769, %v773
        %v807 = vld [vmem:[%s3] sm:$0x1]
        %v809 = vperm.slane %v807, 0
        %v811 = vadd.f32 %v775, %v809
        %v812 = vadd.f32 %v776, %v809
        %v813 = vadd.f32 %v777, %v809
        %v814 = vadd.f32 %v778, %v809
        %v815 = vadd.f32 %v779, %v809
        %v816 = vadd.f32 %v780, %v809
        %v817 = vadd.f32 %v781, %v809
        %v818 = vadd.f32 %v782, %v809
        %v819 = vadd.f32 %v783, %v809
        %v820 = vadd.f32 %v784, %v809
        %v821 = vadd.f32 %v785, %v809
        %v822 = vadd.f32 %v786, %v809
        %v823 = vadd.f32 %v787, %v809
        %v824 = vadd.f32 %v788, %v809
        %v825 = vadd.f32 %v789, %v809
        %v826 = vadd.f32 %v790, %v809
        %v827 = vadd.f32 %v791, %v809
        %v828 = vadd.f32 %v792, %v809
        %v829 = vadd.f32 %v793, %v809
        %v830 = vadd.f32 %v794, %v809
        %v831 = vadd.f32 %v795, %v809
        %v832 = vadd.f32 %v796, %v809
        %v833 = vadd.f32 %v797, %v809
        %v834 = vadd.f32 %v798, %v809
        %v835 = vadd.f32 %v799, %v809
        %v836 = vadd.f32 %v800, %v809
        %v837 = vadd.f32 %v801, %v809
        %v838 = vadd.f32 %v802, %v809
        %v839 = vadd.f32 %v803, %v809
        %v840 = vadd.f32 %v804, %v809
        %v841 = vadd.f32 %v805, %v809
        %v842 = vadd.f32 %v806, %v809
        %v843 = vmax.f32 %v811, 0.0
        %v844 = vmax.f32 %v812, 0.0
        %v845 = vmax.f32 %v813, 0.0
        %v846 = vmax.f32 %v814, 0.0
        %v847 = vmax.f32 %v815, 0.0
        %v848 = vmax.f32 %v816, 0.0
        %v849 = vmax.f32 %v817, 0.0
        %v850 = vmax.f32 %v818, 0.0
        %v851 = vmax.f32 %v819, 0.0
        %v852 = vmax.f32 %v820, 0.0
        %v853 = vmax.f32 %v821, 0.0
        %v854 = vmax.f32 %v822, 0.0
        %v855 = vmax.f32 %v823, 0.0
        %v856 = vmax.f32 %v824, 0.0
        %v857 = vmax.f32 %v825, 0.0
        %v858 = vmax.f32 %v826, 0.0
        %v859 = vmax.f32 %v827, 0.0
        %v860 = vmax.f32 %v828, 0.0
        %v861 = vmax.f32 %v829, 0.0
        %v862 = vmax.f32 %v830, 0.0
        %v863 = vmax.f32 %v831, 0.0
        %v864 = vmax.f32 %v832, 0.0
        %v865 = vmax.f32 %v833, 0.0
        %v866 = vmax.f32 %v834, 0.0
        %v867 = vmax.f32 %v835, 0.0
        %v868 = vmax.f32 %v836, 0.0
        %v869 = vmax.f32 %v837, 0.0
        %v870 = vmax.f32 %v838, 0.0
        %v871 = vmax.f32 %v839, 0.0
        %v872 = vmax.f32 %v840, 0.0
        %v873 = vmax.f32 %v841, 0.0
        %v874 = vmax.f32 %v842, 0.0
        %875 = vst [vmem:[#allocation2] sm:$0xf] 0
        %876 = vst [vmem:[#allocation2 + $0x4] sm:$0xf] 0
        %877 = vst [vmem:[#allocation2 + $0x8] sm:$0xf] 0
        %878 = vst [vmem:[#allocation2 + $0x8c] sm:$0xf] 0
        %879 = vst [vmem:[#allocation2 + $0x90] sm:$0xf] 0
        %880 = vst [vmem:[#allocation2 + $0x94] sm:$0xf] 0
        %v881 = vpack.c.bf16 %v843, %v843
        %v882 = vpack.c.bf16 %v844, %v844
        %v883 = vpack.c.bf16 %v845, %v845
        %v884 = vpack.c.bf16 %v846, %v846
        %v885 = vpack.c.bf16 %v847, %v847
        %v886 = vpack.c.bf16 %v848, %v848
        %v887 = vpack.c.bf16 %v849, %v849
        %v888 = vpack.c.bf16 %v850, %v850
        %v889 = vpack.c.bf16 %v851, %v851
        %v890 = vpack.c.bf16 %v852, %v852
        %v891 = vpack.c.bf16 %v853, %v853
        %v892 = vpack.c.bf16 %v854, %v854
        %v893 = vpack.c.bf16 %v855, %v855
        %v894 = vpack.c.bf16 %v856, %v856
        %v895 = vpack.c.bf16 %v857, %v857
        %v896 = vpack.c.bf16 %v858, %v858
        %v897 = vpack.c.bf16 %v859, %v859
        %v898 = vpack.c.bf16 %v860, %v860
        %v899 = vpack.c.bf16 %v861, %v861
        %v900 = vpack.c.bf16 %v862, %v862
        %v901 = vpack.c.bf16 %v863, %v863
        %v902 = vpack.c.bf16 %v864, %v864
        %v903 = vpack.c.bf16 %v865, %v865
        %v904 = vpack.c.bf16 %v866, %v866
        %v905 = vpack.c.bf16 %v867, %v867
        %v906 = vpack.c.bf16 %v868, %v868
        %v907 = vpack.c.bf16 %v869, %v869
        %v908 = vpack.c.bf16 %v870, %v870
        %v909 = vpack.c.bf16 %v871, %v871
        %v910 = vpack.c.bf16 %v872, %v872
        %v911 = vpack.c.bf16 %v873, %v873
        %v912 = vpack.c.bf16 %v874, %v874
        %913 = vst [vmem:[#allocation2 + $0xc] sm:$0xf] %v881
        %914 = vst [vmem:[#allocation2 + $0x10] sm:$0xf] %v882
        %915 = vst [vmem:[#allocation2 + $0x14] sm:$0xf] %v883
        %916 = vst [vmem:[#allocation2 + $0x18] sm:$0xf] %v884
        %917 = vst [vmem:[#allocation2 + $0x1c] sm:$0xf] %v885
        %918 = vst [vmem:[#allocation2 + $0x20] sm:$0xf] %v886
        %919 = vst [vmem:[#allocation2 + $0x24] sm:$0xf] %v887
        %920 = vst [vmem:[#allocation2 + $0x28] sm:$0xf] %v888
        %921 = vst [vmem:[#allocation2 + $0x2c] sm:$0xf] %v889
        %922 = vst [vmem:[#allocation2 + $0x30] sm:$0xf] %v890
        %923 = vst [vmem:[#allocation2 + $0x34] sm:$0xf] %v891
        %924 = vst [vmem:[#allocation2 + $0x38] sm:$0xf] %v892
        %925 = vst [vmem:[#allocation2 + $0x3c] sm:$0xf] %v893
        %926 = vst [vmem:[#allocation2 + $0x40] sm:$0xf] %v894
        %927 = vst [vmem:[#allocation2 + $0x44] sm:$0xf] %v895
        %928 = vst [vmem:[#allocation2 + $0x48] sm:$0xf] %v896
        %929 = vst [vmem:[#allocation2 + $0x4c] sm:$0xf] %v897
        %930 = vst [vmem:[#allocation2 + $0x50] sm:$0xf] %v898
        %931 = vst [vmem:[#allocation2 + $0x54] sm:$0xf] %v899
        %932 = vst [vmem:[#allocation2 + $0x58] sm:$0xf] %v900
        %933 = vst [vmem:[#allocation2 + $0x5c] sm:$0xf] %v901
        %934 = vst [vmem:[#allocation2 + $0x60] sm:$0xf] %v902
        %935 = vst [vmem:[#allocation2 + $0x64] sm:$0xf] %v903
        %936 = vst [vmem:[#allocation2 + $0x68] sm:$0xf] %v904
        %937 = vst [vmem:[#allocation2 + $0x6c] sm:$0xf] %v905
        %938 = vst [vmem:[#allocation2 + $0x70] sm:$0xf] %v906
        %939 = vst [vmem:[#allocation2 + $0x74] sm:$0xf] %v907
        %940 = vst [vmem:[#allocation2 + $0x78] sm:$0xf] %v908
        %941 = vst [vmem:[#allocation2 + $0x7c] sm:$0xf] %v909
        %942 = vst [vmem:[#allocation2 + $0x80] sm:$0xf] %v910
        %943 = vst [vmem:[#allocation2 + $0x84] sm:$0xf] %v911
        %944 = vst [vmem:[#allocation2 + $0x88] sm:$0xf] %v912
        %v945 = vld [vmem:[%s11] sm:$0xf]
        %v946 = vld [vmem:[%s11 + $0x4] sm:$0xf]
        %v947 = vld [vmem:[%s11 + $0x8] sm:$0xf]
        %v948 = vld [vmem:[%s11 + $0xc] sm:$0xf]
        %v949 = vld [vmem:[%s11 + $0x10] sm:$0xf]
        %v950 = vld [vmem:[%s11 + $0x14] sm:$0xf]
        %v951 = vld [vmem:[%s11 + $0x18] sm:$0xf]
        %v952 = vld [vmem:[%s11 + $0x1c] sm:$0xf]
        %v953 = vld [vmem:[%s11 + $0x20] sm:$0xf]
        %v954 = vld [vmem:[%s11 + $0x24] sm:$0xf]
        %v955 = vld [vmem:[%s11 + $0x28] sm:$0xf]
        %v956 = vld [vmem:[%s11 + $0x2c] sm:$0xf]
        %v957 = vld [vmem:[%s11 + $0x30] sm:$0xf]
        %v958 = vld [vmem:[%s11 + $0x34] sm:$0xf]
        %v959 = vld [vmem:[%s11 + $0x38] sm:$0xf]
        %v960 = vld [vmem:[%s11 + $0x3c] sm:$0xf]
        %v961 = vld [vmem:[%s11 + $0x40] sm:$0xf]
        %v962 = vld [vmem:[%s11 + $0x44] sm:$0xf]
        %v963 = vld [vmem:[%s11 + $0x48] sm:$0xf]
        %v964 = vld [vmem:[%s11 + $0x4c] sm:$0xf]
        %v965 = vld [vmem:[%s11 + $0x50] sm:$0xf]
        %v966 = vld [vmem:[%s11 + $0x54] sm:$0xf]
        %v967 = vld [vmem:[%s11 + $0x58] sm:$0xf]
        %v968 = vld [vmem:[%s11 + $0x5c] sm:$0xf]
        %v969 = vld [vmem:[%s11 + $0x60] sm:$0xf]
        %v970 = vld [vmem:[%s11 + $0x64] sm:$0xf]
        %v971 = vld [vmem:[%s11 + $0x68] sm:$0xf]
        %v972 = vld [vmem:[%s11 + $0x6c] sm:$0xf]
        %v973 = vld [vmem:[%s11 + $0x70] sm:$0xf]
        %v974 = vld [vmem:[%s11 + $0x74] sm:$0xf]
        %v975 = vld [vmem:[%s11 + $0x78] sm:$0xf]
        %v976 = vld [vmem:[%s11 + $0x7c] sm:$0xf]
        %v977 = vld [vmem:[%s12] sm:$0xf]
        %v978 = vld [vmem:[%s12 + $0x4] sm:$0xf]
        %v979 = vld [vmem:[%s12 + $0x8] sm:$0xf]
        %v980 = vld [vmem:[%s12 + $0xc] sm:$0xf]
        %v981 = vld [vmem:[%s12 + $0x10] sm:$0xf]
        %v982 = vld [vmem:[%s12 + $0x14] sm:$0xf]
        %v983 = vld [vmem:[%s12 + $0x18] sm:$0xf]
        %v984 = vld [vmem:[%s12 + $0x1c] sm:$0xf]
        %v985 = vld [vmem:[%s12 + $0x20] sm:$0xf]
        %v986 = vld [vmem:[%s12 + $0x24] sm:$0xf]
        %v987 = vld [vmem:[%s12 + $0x28] sm:$0xf]
        %v988 = vld [vmem:[%s12 + $0x2c] sm:$0xf]
        %v989 = vld [vmem:[%s12 + $0x30] sm:$0xf]
        %v990 = vld [vmem:[%s12 + $0x34] sm:$0xf]
        %v991 = vld [vmem:[%s12 + $0x38] sm:$0xf]
        %v992 = vld [vmem:[%s12 + $0x3c] sm:$0xf]
        %v993 = vld [vmem:[%s12 + $0x40] sm:$0xf]
        %v994 = vld [vmem:[%s12 + $0x44] sm:$0xf]
        %v995 = vld [vmem:[%s12 + $0x48] sm:$0xf]
        %v996 = vld [vmem:[%s12 + $0x4c] sm:$0xf]
        %v997 = vld [vmem:[%s12 + $0x50] sm:$0xf]
        %v998 = vld [vmem:[%s12 + $0x54] sm:$0xf]
        %v999 = vld [vmem:[%s12 + $0x58] sm:$0xf]
        %v1000 = vld [vmem:[%s12 + $0x5c] sm:$0xf]
        %v1001 = vld [vmem:[%s12 + $0x60] sm:$0xf]
        %v1002 = vld [vmem:[%s12 + $0x64] sm:$0xf]
        %v1003 = vld [vmem:[%s12 + $0x68] sm:$0xf]
        %v1004 = vld [vmem:[%s12 + $0x6c] sm:$0xf]
        %v1005 = vld [vmem:[%s12 + $0x70] sm:$0xf]
        %v1006 = vld [vmem:[%s12 + $0x74] sm:$0xf]
        %v1007 = vld [vmem:[%s12 + $0x78] sm:$0xf]
        %v1008 = vld [vmem:[%s12 + $0x7c] sm:$0xf]
        %v1009 = vld [vmem:[#allocation2] sm:$0x8]
        %v1010 = vld [vmem:[#allocation2 + $0x4] sm:$0xf]
        %v1011 = vld [vmem:[#allocation2 + $0x8] sm:$0xf]
        %v1012 = vld [vmem:[#allocation2 + $0xc] sm:$0xf]
        %v1013 = vld [vmem:[#allocation2 + $0x10] sm:$0xf]
        %v1014 = vld [vmem:[#allocation2 + $0x14] sm:$0xf]
        %v1015 = vld [vmem:[#allocation2 + $0x18] sm:$0xf]
        %v1016 = vld [vmem:[#allocation2 + $0x1c] sm:$0xf]
        %v1017 = vld [vmem:[#allocation2 + $0x20] sm:$0xf]
        %v1018 = vld [vmem:[#allocation2 + $0x24] sm:$0xf]
        %v1019 = vld [vmem:[#allocation2 + $0x28] sm:$0xf]
        %v1020 = vld [vmem:[#allocation2 + $0x2c] sm:$0xf]
        %v1021 = vld [vmem:[#allocation2 + $0x30] sm:$0xf]
        %v1022 = vld [vmem:[#allocation2 + $0x34] sm:$0xf]
        %v1023 = vld [vmem:[#allocation2 + $0x38] sm:$0xf]
        %v1024 = vld [vmem:[#allocation2 + $0x3c] sm:$0xf]
        %v1025 = vld [vmem:[#allocation2 + $0x40] sm:$0xf]
        %v1026 = vld [vmem:[#allocation2 + $0x44] sm:$0xf]
        %v1027 = vld [vmem:[#allocation2 + $0x48] sm:$0xf]
        %v1028 = vld [vmem:[#allocation2 + $0x4c] sm:$0xf]
        %v1029 = vld [vmem:[#allocation2 + $0x50] sm:$0xf]
        %v1030 = vld [vmem:[#allocation2 + $0x54] sm:$0xf]
        %v1031 = vld [vmem:[#allocation2 + $0x58] sm:$0xf]
        %v1032 = vld [vmem:[#allocation2 + $0x5c] sm:$0xf]
        %v1033 = vld [vmem:[#allocation2 + $0x60] sm:$0xf]
        %v1034 = vld [vmem:[#allocation2 + $0x64] sm:$0xf]
        %v1035 = vld [vmem:[#allocation2 + $0x68] sm:$0xf]
        %v1036 = vld [vmem:[#allocation2 + $0x6c] sm:$0xf]
        %v1037 = vld [vmem:[#allocation2 + $0x70] sm:$0xf]
        %v1038 = vld [vmem:[#allocation2 + $0x74] sm:$0xf]
        %v1039 = vld [vmem:[#allocation2 + $0x78] sm:$0xf]
        %v1040 = vld [vmem:[#allocation2 + $0x7c] sm:$0xf]
        %v1041 = vld [vmem:[#allocation2 + $0x80] sm:$0xf]
        %1043 = vset.pattern.permute.xlu0 0
        %1044 = vperm.xlu0 %1043, %v945
        %v1045 = vpop.permute.xlu0 %1044
        %v1048 = vunpack.c.l.s4 839922192
        %v1049 = vunpack.c.0.s8 %v1048
        %v1050 = vperm.slane %v1045, %v1049
        %1052 = vset.pattern.permute.xlu0 0
        %1053 = vperm.xlu0 %1052, %v946
        %v1054 = vpop.permute.xlu0 %1053
        %v1057 = vunpack.c.l.s4 839922192
        %v1058 = vunpack.c.0.s8 %v1057
        %v1059 = vperm.slane %v1054, %v1058
        %1061 = vset.pattern.permute.xlu0 0
        %1062 = vperm.xlu0 %1061, %v947
        %v1063 = vpop.permute.xlu0 %1062
        %v1066 = vunpack.c.l.s4 839922192
        %v1067 = vunpack.c.0.s8 %v1066
        %v1068 = vperm.slane %v1063, %v1067
        %1070 = vset.pattern.permute.xlu0 0
        %1071 = vperm.xlu0 %1070, %v948
        %v1072 = vpop.permute.xlu0 %1071
        %v1075 = vunpack.c.l.s4 839922192
        %v1076 = vunpack.c.0.s8 %v1075
        %v1077 = vperm.slane %v1072, %v1076
        %1079 = vset.pattern.permute.xlu0 0
        %1080 = vperm.xlu0 %1079, %v949
        %v1081 = vpop.permute.xlu0 %1080
        %v1084 = vunpack.c.l.s4 839922192
        %v1085 = vunpack.c.0.s8 %v1084
        %v1086 = vperm.slane %v1081, %v1085
        %1088 = vset.pattern.permute.xlu0 0
        %1089 = vperm.xlu0 %1088, %v950
        %v1090 = vpop.permute.xlu0 %1089
        %v1093 = vunpack.c.l.s4 839922192
        %v1094 = vunpack.c.0.s8 %v1093
        %v1095 = vperm.slane %v1090, %v1094
        %1097 = vset.pattern.permute.xlu0 0
        %1098 = vperm.xlu0 %1097, %v951
        %v1099 = vpop.permute.xlu0 %1098
        %v1102 = vunpack.c.l.s4 839922192
        %v1103 = vunpack.c.0.s8 %v1102
        %v1104 = vperm.slane %v1099, %v1103
        %1106 = vset.pattern.permute.xlu0 0
        %1107 = vperm.xlu0 %1106, %v952
        %v1108 = vpop.permute.xlu0 %1107
        %v1111 = vunpack.c.l.s4 839922192
        %v1112 = vunpack.c.0.s8 %v1111
        %v1113 = vperm.slane %v1108, %v1112
        %1115 = vset.pattern.permute.xlu0 0
        %1116 = vperm.xlu0 %1115, %v953
        %v1117 = vpop.permute.xlu0 %1116
        %v1120 = vunpack.c.l.s4 839922192
        %v1121 = vunpack.c.0.s8 %v1120
        %v1122 = vperm.slane %v1117, %v1121
        %1124 = vset.pattern.permute.xlu0 0
        %1125 = vperm.xlu0 %1124, %v954
        %v1126 = vpop.permute.xlu0 %1125
        %v1129 = vunpack.c.l.s4 839922192
        %v1130 = vunpack.c.0.s8 %v1129
        %v1131 = vperm.slane %v1126, %v1130
        %1133 = vset.pattern.permute.xlu0 0
        %1134 = vperm.xlu0 %1133, %v955
        %v1135 = vpop.permute.xlu0 %1134
        %v1138 = vunpack.c.l.s4 839922192
        %v1139 = vunpack.c.0.s8 %v1138
        %v1140 = vperm.slane %v1135, %v1139
        %1142 = vset.pattern.permute.xlu0 0
        %1143 = vperm.xlu0 %1142, %v956
        %v1144 = vpop.permute.xlu0 %1143
        %v1147 = vunpack.c.l.s4 839922192
        %v1148 = vunpack.c.0.s8 %v1147
        %v1149 = vperm.slane %v1144, %v1148
        %1151 = vset.pattern.permute.xlu0 0
        %1152 = vperm.xlu0 %1151, %v957
        %v1153 = vpop.permute.xlu0 %1152
        %v1156 = vunpack.c.l.s4 839922192
        %v1157 = vunpack.c.0.s8 %v1156
        %v1158 = vperm.slane %v1153, %v1157
        %1160 = vset.pattern.permute.xlu0 0
        %1161 = vperm.xlu0 %1160, %v958
        %v1162 = vpop.permute.xlu0 %1161
        %v1165 = vunpack.c.l.s4 839922192
        %v1166 = vunpack.c.0.s8 %v1165
        %v1167 = vperm.slane %v1162, %v1166
        %1169 = vset.pattern.permute.xlu0 0
        %1170 = vperm.xlu0 %1169, %v959
        %v1171 = vpop.permute.xlu0 %1170
        %v1174 = vunpack.c.l.s4 839922192
        %v1175 = vunpack.c.0.s8 %v1174
        %v1176 = vperm.slane %v1171, %v1175
        %1178 = vset.pattern.permute.xlu0 0
        %1179 = vperm.xlu0 %1178, %v960
        %v1180 = vpop.permute.xlu0 %1179
        %v1183 = vunpack.c.l.s4 839922192
        %v1184 = vunpack.c.0.s8 %v1183
        %v1185 = vperm.slane %v1180, %v1184
        %1187 = vset.pattern.permute.xlu0 0
        %1188 = vperm.xlu0 %1187, %v961
        %v1189 = vpop.permute.xlu0 %1188
        %v1192 = vunpack.c.l.s4 839922192
        %v1193 = vunpack.c.0.s8 %v1192
        %v1194 = vperm.slane %v1189, %v1193
        %1196 = vset.pattern.permute.xlu0 0
        %1197 = vperm.xlu0 %1196, %v962
        %v1198 = vpop.permute.xlu0 %1197
        %v1201 = vunpack.c.l.s4 839922192
        %v1202 = vunpack.c.0.s8 %v1201
        %v1203 = vperm.slane %v1198, %v1202
        %1205 = vset.pattern.permute.xlu0 0
        %1206 = vperm.xlu0 %1205, %v963
        %v1207 = vpop.permute.xlu0 %1206
        %v1210 = vunpack.c.l.s4 839922192
        %v1211 = vunpack.c.0.s8 %v1210
        %v1212 = vperm.slane %v1207, %v1211
        %1214 = vset.pattern.permute.xlu0 0
        %1215 = vperm.xlu0 %1214, %v964
        %v1216 = vpop.permute.xlu0 %1215
        %v1219 = vunpack.c.l.s4 839922192
        %v1220 = vunpack.c.0.s8 %v1219
        %v1221 = vperm.slane %v1216, %v1220
        %1223 = vset.pattern.permute.xlu0 0
        %1224 = vperm.xlu0 %1223, %v965
        %v1225 = vpop.permute.xlu0 %1224
        %v1228 = vunpack.c.l.s4 839922192
        %v1229 = vunpack.c.0.s8 %v1228
        %v1230 = vperm.slane %v1225, %v1229
        %1232 = vset.pattern.permute.xlu0 0
        %1233 = vperm.xlu0 %1232, %v966
        %v1234 = vpop.permute.xlu0 %1233
        %v1237 = vunpack.c.l.s4 839922192
        %v1238 = vunpack.c.0.s8 %v1237
        %v1239 = vperm.slane %v1234, %v1238
        %1241 = vset.pattern.permute.xlu0 0
        %1242 = vperm.xlu0 %1241, %v967
        %v1243 = vpop.permute.xlu0 %1242
        %v1246 = vunpack.c.l.s4 839922192
        %v1247 = vunpack.c.0.s8 %v1246
        %v1248 = vperm.slane %v1243, %v1247
        %1250 = vset.pattern.permute.xlu0 0
        %1251 = vperm.xlu0 %1250, %v968
        %v1252 = vpop.permute.xlu0 %1251
        %v1255 = vunpack.c.l.s4 839922192
        %v1256 = vunpack.c.0.s8 %v1255
        %v1257 = vperm.slane %v1252, %v1256
        %1259 = vset.pattern.permute.xlu0 0
        %1260 = vperm.xlu0 %1259, %v969
        %v1261 = vpop.permute.xlu0 %1260
        %v1264 = vunpack.c.l.s4 839922192
        %v1265 = vunpack.c.0.s8 %v1264
        %v1266 = vperm.slane %v1261, %v1265
        %1268 = vset.pattern.permute.xlu0 0
        %1269 = vperm.xlu0 %1268, %v970
        %v1270 = vpop.permute.xlu0 %1269
        %v1273 = vunpack.c.l.s4 839922192
        %v1274 = vunpack.c.0.s8 %v1273
        %v1275 = vperm.slane %v1270, %v1274
        %1277 = vset.pattern.permute.xlu0 0
        %1278 = vperm.xlu0 %1277, %v971
        %v1279 = vpop.permute.xlu0 %1278
        %v1282 = vunpack.c.l.s4 839922192
        %v1283 = vunpack.c.0.s8 %v1282
        %v1284 = vperm.slane %v1279, %v1283
        %1286 = vset.pattern.permute.xlu0 0
        %1287 = vperm.xlu0 %1286, %v972
        %v1288 = vpop.permute.xlu0 %1287
        %v1291 = vunpack.c.l.s4 839922192
        %v1292 = vunpack.c.0.s8 %v1291
        %v1293 = vperm.slane %v1288, %v1292
        %1295 = vset.pattern.permute.xlu0 0
        %1296 = vperm.xlu0 %1295, %v973
        %v1297 = vpop.permute.xlu0 %1296
        %v1300 = vunpack.c.l.s4 839922192
        %v1301 = vunpack.c.0.s8 %v1300
        %v1302 = vperm.slane %v1297, %v1301
        %1304 = vset.pattern.permute.xlu0 0
        %1305 = vperm.xlu0 %1304, %v974
        %v1306 = vpop.permute.xlu0 %1305
        %v1309 = vunpack.c.l.s4 839922192
        %v1310 = vunpack.c.0.s8 %v1309
        %v1311 = vperm.slane %v1306, %v1310
        %1313 = vset.pattern.permute.xlu0 0
        %1314 = vperm.xlu0 %1313, %v975
        %v1315 = vpop.permute.xlu0 %1314
        %v1318 = vunpack.c.l.s4 839922192
        %v1319 = vunpack.c.0.s8 %v1318
        %v1320 = vperm.slane %v1315, %v1319
        %1322 = vset.pattern.permute.xlu0 0
        %1323 = vperm.xlu0 %1322, %v976
        %v1324 = vpop.permute.xlu0 %1323
        %v1327 = vunpack.c.l.s4 839922192
        %v1328 = vunpack.c.0.s8 %v1327
        %v1329 = vperm.slane %v1324, %v1328
        %v1330 = vunpack.c.l.bf16 %v1009
        %v1331 = vunpack.c.l.bf16 %v1010
        %v1332 = vunpack.c.l.bf16 %v1011
        %v1333 = vunpack.c.l.bf16 %v1012
        %v1334 = vunpack.c.l.bf16 %v1013
        %v1335 = vunpack.c.l.bf16 %v1014
        %v1336 = vunpack.c.l.bf16 %v1015
        %v1337 = vunpack.c.l.bf16 %v1016
        %v1338 = vunpack.c.l.bf16 %v1017
        %v1339 = vunpack.c.l.bf16 %v1018
        %v1340 = vunpack.c.l.bf16 %v1019
        %v1341 = vunpack.c.l.bf16 %v1020
        %v1342 = vunpack.c.l.bf16 %v1021
        %v1343 = vunpack.c.l.bf16 %v1022
        %v1344 = vunpack.c.l.bf16 %v1023
        %v1345 = vunpack.c.l.bf16 %v1024
        %v1346 = vunpack.c.l.bf16 %v1025
        %v1347 = vunpack.c.l.bf16 %v1026
        %v1348 = vunpack.c.l.bf16 %v1027
        %v1349 = vunpack.c.l.bf16 %v1028
        %v1350 = vunpack.c.l.bf16 %v1029
        %v1351 = vunpack.c.l.bf16 %v1030
        %v1352 = vunpack.c.l.bf16 %v1031
        %v1353 = vunpack.c.l.bf16 %v1032
        %v1354 = vunpack.c.l.bf16 %v1033
        %v1355 = vunpack.c.l.bf16 %v1034
        %v1356 = vunpack.c.l.bf16 %v1035
        %v1357 = vunpack.c.l.bf16 %v1036
        %v1358 = vunpack.c.l.bf16 %v1037
        %v1359 = vunpack.c.l.bf16 %v1038
        %v1360 = vunpack.c.l.bf16 %v1039
        %v1361 = vunpack.c.l.bf16 %v1040
        %v1362 = vunpack.c.l.bf16 %v1041
        %v1363 = vunpack.c.l.bf16 %v1050
        %v1364 = vunpack.c.l.bf16 %v1059
        %v1365 = vunpack.c.l.bf16 %v1068
        %v1366 = vunpack.c.l.bf16 %v1077
        %v1367 = vunpack.c.l.bf16 %v1086
        %v1368 = vunpack.c.l.bf16 %v1095
        %v1369 = vunpack.c.l.bf16 %v1104
        %v1370 = vunpack.c.l.bf16 %v1113
        %v1371 = vunpack.c.l.bf16 %v1122
        %v1372 = vunpack.c.l.bf16 %v1131
        %v1373 = vunpack.c.l.bf16 %v1140
        %v1374 = vunpack.c.l.bf16 %v1149
        %v1375 = vunpack.c.l.bf16 %v1158
        %v1376 = vunpack.c.l.bf16 %v1167
        %v1377 = vunpack.c.l.bf16 %v1176
        %v1378 = vunpack.c.l.bf16 %v1185
        %v1379 = vunpack.c.l.bf16 %v1194
        %v1380 = vunpack.c.l.bf16 %v1203
        %v1381 = vunpack.c.l.bf16 %v1212
        %v1382 = vunpack.c.l.bf16 %v1221
        %v1383 = vunpack.c.l.bf16 %v1230
        %v1384 = vunpack.c.l.bf16 %v1239
        %v1385 = vunpack.c.l.bf16 %v1248
        %v1386 = vunpack.c.l.bf16 %v1257
        %v1387 = vunpack.c.l.bf16 %v1266
        %v1388 = vunpack.c.l.bf16 %v1275
        %v1389 = vunpack.c.l.bf16 %v1284
        %v1390 = vunpack.c.l.bf16 %v1293
        %v1391 = vunpack.c.l.bf16 %v1302
        %v1392 = vunpack.c.l.bf16 %v1311
        %v1393 = vunpack.c.l.bf16 %v1320
        %v1394 = vunpack.c.l.bf16 %v1329
        %vm1427 = vcmask 1046528
        %v1428 = vrot.slane %v1363, 1
        %v1429 = vrot.slane %v1364, 1
        %v1430 = vsel %vm1427, %v1428, %v1429
        %v1431 = vrot.slane %v1365, 1
        %v1432 = vsel %vm1427, %v1429, %v1431
        %v1433 = vrot.slane %v1366, 1
        %v1434 = vsel %vm1427, %v1431, %v1433
        %v1435 = vrot.slane %v1367, 1
        %v1436 = vsel %vm1427, %v1433, %v1435
        %v1437 = vrot.slane %v1368, 1
        %v1438 = vsel %vm1427, %v1435, %v1437
        %v1439 = vrot.slane %v1369, 1
        %v1440 = vsel %vm1427, %v1437, %v1439
        %v1441 = vrot.slane %v1370, 1
        %v1442 = vsel %vm1427, %v1439, %v1441
        %v1443 = vrot.slane %v1371, 1
        %v1444 = vsel %vm1427, %v1441, %v1443
        %v1445 = vrot.slane %v1372, 1
        %v1446 = vsel %vm1427, %v1443, %v1445
        %v1447 = vrot.slane %v1373, 1
        %v1448 = vsel %vm1427, %v1445, %v1447
        %v1449 = vrot.slane %v1374, 1
        %v1450 = vsel %vm1427, %v1447, %v1449
        %v1451 = vrot.slane %v1375, 1
        %v1452 = vsel %vm1427, %v1449, %v1451
        %v1453 = vrot.slane %v1376, 1
        %v1454 = vsel %vm1427, %v1451, %v1453
        %v1455 = vrot.slane %v1377, 1
        %v1456 = vsel %vm1427, %v1453, %v1455
        %v1457 = vrot.slane %v1378, 1
        %v1458 = vsel %vm1427, %v1455, %v1457
        %v1459 = vrot.slane %v1379, 1
        %v1460 = vsel %vm1427, %v1457, %v1459
        %v1461 = vrot.slane %v1380, 1
        %v1462 = vsel %vm1427, %v1459, %v1461
        %v1463 = vrot.slane %v1381, 1
        %v1464 = vsel %vm1427, %v1461, %v1463
        %v1465 = vrot.slane %v1382, 1
        %v1466 = vsel %vm1427, %v1463, %v1465
        %v1467 = vrot.slane %v1383, 1
        %v1468 = vsel %vm1427, %v1465, %v1467
        %v1469 = vrot.slane %v1384, 1
        %v1470 = vsel %vm1427, %v1467, %v1469
        %v1471 = vrot.slane %v1385, 1
        %v1472 = vsel %vm1427, %v1469, %v1471
        %v1473 = vrot.slane %v1386, 1
        %v1474 = vsel %vm1427, %v1471, %v1473
        %v1475 = vrot.slane %v1387, 1
        %v1476 = vsel %vm1427, %v1473, %v1475
        %v1477 = vrot.slane %v1388, 1
        %v1478 = vsel %vm1427, %v1475, %v1477
        %v1479 = vrot.slane %v1389, 1
        %v1480 = vsel %vm1427, %v1477, %v1479
        %v1481 = vrot.slane %v1390, 1
        %v1482 = vsel %vm1427, %v1479, %v1481
        %v1483 = vrot.slane %v1391, 1
        %v1484 = vsel %vm1427, %v1481, %v1483
        %v1485 = vrot.slane %v1392, 1
        %v1486 = vsel %vm1427, %v1483, %v1485
        %v1487 = vrot.slane %v1393, 1
        %v1488 = vsel %vm1427, %v1485, %v1487
        %v1489 = vrot.slane %v1394, 1
        %v1490 = vsel %vm1427, %v1487, %v1489
        %v1524 = vmul.f32 %v1330, %v1428
        %v1525 = vmul.f32 %v1331, %v1430
        %v1526 = vmul.f32 %v1332, %v1432
        %v1527 = vmul.f32 %v1333, %v1434
        %v1528 = vmul.f32 %v1334, %v1436
        %v1529 = vmul.f32 %v1335, %v1438
        %v1530 = vmul.f32 %v1336, %v1440
        %v1531 = vmul.f32 %v1337, %v1442
        %v1532 = vmul.f32 %v1338, %v1444
        %v1533 = vmul.f32 %v1339, %v1446
        %v1534 = vmul.f32 %v1340, %v1448
        %v1535 = vmul.f32 %v1341, %v1450
        %v1536 = vmul.f32 %v1342, %v1452
        %v1537 = vmul.f32 %v1343, %v1454
        %v1538 = vmul.f32 %v1344, %v1456
        %v1539 = vmul.f32 %v1345, %v1458
        %v1540 = vmul.f32 %v1346, %v1460
        %v1541 = vmul.f32 %v1347, %v1462
        %v1542 = vmul.f32 %v1348, %v1464
        %v1543 = vmul.f32 %v1349, %v1466
        %v1544 = vmul.f32 %v1350, %v1468
        %v1545 = vmul.f32 %v1351, %v1470
        %v1546 = vmul.f32 %v1352, %v1472
        %v1547 = vmul.f32 %v1353, %v1474
        %v1548 = vmul.f32 %v1354, %v1476
        %v1549 = vmul.f32 %v1355, %v1478
        %v1550 = vmul.f32 %v1356, %v1480
        %v1551 = vmul.f32 %v1357, %v1482
        %v1552 = vmul.f32 %v1358, %v1484
        %v1553 = vmul.f32 %v1359, %v1486
        %v1554 = vmul.f32 %v1360, %v1488
        %v1555 = vmul.f32 %v1361, %v1490
        %v1556 = vmul.f32 %v1362, %v1489
        %v1557 = vpack.c.bf16 %v1525, %v1524
        %v1558 = vpack.c.bf16 %v1527, %v1526
        %v1559 = vpack.c.bf16 %v1529, %v1528
        %v1560 = vpack.c.bf16 %v1531, %v1530
        %v1561 = vpack.c.bf16 %v1533, %v1532
        %v1562 = vpack.c.bf16 %v1535, %v1534
        %v1563 = vpack.c.bf16 %v1537, %v1536
        %v1564 = vpack.c.bf16 %v1539, %v1538
        %v1565 = vpack.c.bf16 %v1541, %v1540
        %v1566 = vpack.c.bf16 %v1543, %v1542
        %v1567 = vpack.c.bf16 %v1545, %v1544
        %v1568 = vpack.c.bf16 %v1547, %v1546
        %v1569 = vpack.c.bf16 %v1549, %v1548
        %v1570 = vpack.c.bf16 %v1551, %v1550
        %v1571 = vpack.c.bf16 %v1553, %v1552
        %v1572 = vpack.c.bf16 %v1555, %v1554
        %v1573 = vpack.c.bf16 %v1556, %v1556
        %v1574 = vld [vmem:[#allocation7] sm:$0xf]
        %v1575 = vld [vmem:[#allocation7 + $0x4] sm:$0xf]
        %v1576 = vld [vmem:[#allocation7 + $0x8] sm:$0xf]
        %v1577 = vld [vmem:[#allocation7 + $0xc] sm:$0xf]
        %v1578 = vld [vmem:[#allocation7 + $0x10] sm:$0xf]
        %v1579 = vld [vmem:[#allocation7 + $0x14] sm:$0xf]
        %v1580 = vld [vmem:[#allocation7 + $0x18] sm:$0xf]
        %v1581 = vld [vmem:[#allocation7 + $0x1c] sm:$0xf]
        %v1582 = vld [vmem:[#allocation7 + $0x20] sm:$0xf]
        %v1583 = vld [vmem:[#allocation7 + $0x24] sm:$0xf]
        %v1584 = vld [vmem:[#allocation7 + $0x28] sm:$0xf]
        %v1585 = vld [vmem:[#allocation7 + $0x2c] sm:$0xf]
        %v1586 = vld [vmem:[#allocation7 + $0x30] sm:$0xf]
        %v1587 = vld [vmem:[#allocation7 + $0x34] sm:$0xf]
        %v1588 = vld [vmem:[#allocation7 + $0x38] sm:$0xf]
        %v1589 = vld [vmem:[#allocation7 + $0x3c] sm:$0xf]
        %vm1590 = vsmask.f32 4352
        %v1592 = vshrl.u32 %v1557, 16
        %v1594 = vrot.slane %v1592, 3
        %v1595 = vshll.u32 %v1557, 16
        %v1597 = vrot.slane %v1595, 4
        %v1598 = vor.u32 %v1594, %v1597
        %v1600 = vshrl.u32 %v1558, 16
        %v1602 = vrot.slane %v1600, 3
        %v1603 = vshll.u32 %v1558, 16
        %v1605 = vrot.slane %v1603, 4
        %v1606 = vor.u32 %v1602, %v1605
        %v1607 = vsel %vm1590, %v1598, %v1606
        %v1609 = vshrl.u32 %v1559, 16
        %v1611 = vrot.slane %v1609, 3
        %v1612 = vshll.u32 %v1559, 16
        %v1614 = vrot.slane %v1612, 4
        %v1615 = vor.u32 %v1611, %v1614
        %v1616 = vsel %vm1590, %v1606, %v1615
        %v1618 = vshrl.u32 %v1560, 16
        %v1620 = vrot.slane %v1618, 3
        %v1621 = vshll.u32 %v1560, 16
        %v1623 = vrot.slane %v1621, 4
        %v1624 = vor.u32 %v1620, %v1623
        %v1625 = vsel %vm1590, %v1615, %v1624
        %v1627 = vshrl.u32 %v1561, 16
        %v1629 = vrot.slane %v1627, 3
        %v1630 = vshll.u32 %v1561, 16
        %v1632 = vrot.slane %v1630, 4
        %v1633 = vor.u32 %v1629, %v1632
        %v1634 = vsel %vm1590, %v1624, %v1633
        %v1636 = vshrl.u32 %v1562, 16
        %v1638 = vrot.slane %v1636, 3
        %v1639 = vshll.u32 %v1562, 16
        %v1641 = vrot.slane %v1639, 4
        %v1642 = vor.u32 %v1638, %v1641
        %v1643 = vsel %vm1590, %v1633, %v1642
        %v1645 = vshrl.u32 %v1563, 16
        %v1647 = vrot.slane %v1645, 3
        %v1648 = vshll.u32 %v1563, 16
        %v1650 = vrot.slane %v1648, 4
        %v1651 = vor.u32 %v1647, %v1650
        %v1652 = vsel %vm1590, %v1642, %v1651
        %v1654 = vshrl.u32 %v1564, 16
        %v1656 = vrot.slane %v1654, 3
        %v1657 = vshll.u32 %v1564, 16
        %v1659 = vrot.slane %v1657, 4
        %v1660 = vor.u32 %v1656, %v1659
        %v1661 = vsel %vm1590, %v1651, %v1660
        %v1663 = vshrl.u32 %v1565, 16
        %v1665 = vrot.slane %v1663, 3
        %v1666 = vshll.u32 %v1565, 16
        %v1668 = vrot.slane %v1666, 4
        %v1669 = vor.u32 %v1665, %v1668
        %v1670 = vsel %vm1590, %v1660, %v1669
        %v1672 = vshrl.u32 %v1566, 16
        %v1674 = vrot.slane %v1672, 3
        %v1675 = vshll.u32 %v1566, 16
        %v1677 = vrot.slane %v1675, 4
        %v1678 = vor.u32 %v1674, %v1677
        %v1679 = vsel %vm1590, %v1669, %v1678
        %v1681 = vshrl.u32 %v1567, 16
        %v1683 = vrot.slane %v1681, 3
        %v1684 = vshll.u32 %v1567, 16
        %v1686 = vrot.slane %v1684, 4
        %v1687 = vor.u32 %v1683, %v1686
        %v1688 = vsel %vm1590, %v1678, %v1687
        %v1690 = vshrl.u32 %v1568, 16
        %v1692 = vrot.slane %v1690, 3
        %v1693 = vshll.u32 %v1568, 16
        %v1695 = vrot.slane %v1693, 4
        %v1696 = vor.u32 %v1692, %v1695
        %v1697 = vsel %vm1590, %v1687, %v1696
        %v1699 = vshrl.u32 %v1569, 16
        %v1701 = vrot.slane %v1699, 3
        %v1702 = vshll.u32 %v1569, 16
        %v1704 = vrot.slane %v1702, 4
        %v1705 = vor.u32 %v1701, %v1704
        %v1706 = vsel %vm1590, %v1696, %v1705
        %v1708 = vshrl.u32 %v1570, 16
        %v1710 = vrot.slane %v1708, 3
        %v1711 = vshll.u32 %v1570, 16
        %v1713 = vrot.slane %v1711, 4
        %v1714 = vor.u32 %v1710, %v1713
        %v1715 = vsel %vm1590, %v1705, %v1714
        %v1717 = vshrl.u32 %v1571, 16
        %v1719 = vrot.slane %v1717, 3
        %v1720 = vshll.u32 %v1571, 16
        %v1722 = vrot.slane %v1720, 4
        %v1723 = vor.u32 %v1719, %v1722
        %v1724 = vsel %vm1590, %v1714, %v1723
        %v1726 = vshrl.u32 %v1572, 16
        %v1728 = vrot.slane %v1726, 3
        %v1729 = vshll.u32 %v1572, 16
        %v1731 = vrot.slane %v1729, 4
        %v1732 = vor.u32 %v1728, %v1731
        %v1733 = vsel %vm1590, %v1723, %v1732
        %v1735 = vshrl.u32 %v1573, 16
        %v1737 = vrot.slane %v1735, 3
        %v1738 = vshll.u32 %v1573, 16
        %v1740 = vrot.slane %v1738, 4
        %v1741 = vor.u32 %v1737, %v1740
        %v1742 = vsel %vm1590, %v1732, %v1741
        %v1775 = vunpack.c.l.b16 %v1574
        %v1776 = vunpack.c.l.b16 %v1575
        %v1777 = vunpack.c.l.b16 %v1576
        %v1778 = vunpack.c.l.b16 %v1577
        %v1779 = vunpack.c.l.b16 %v1578
        %v1780 = vunpack.c.l.b16 %v1579
        %v1781 = vunpack.c.l.b16 %v1580
        %v1782 = vunpack.c.l.b16 %v1581
        %v1783 = vunpack.c.l.b16 %v1582
        %v1784 = vunpack.c.l.b16 %v1583
        %v1785 = vunpack.c.l.b16 %v1584
        %v1786 = vunpack.c.l.b16 %v1585
        %v1787 = vunpack.c.l.b16 %v1586
        %v1788 = vunpack.c.l.b16 %v1587
        %v1789 = vunpack.c.l.b16 %v1588
        %v1790 = vunpack.c.l.b16 %v1589
        %v1791 = vpack.c.b16 %v1776, %v1775
        %v1792 = vpack.c.b16 %v1778, %v1777
        %v1793 = vpack.c.b16 %v1780, %v1779
        %v1794 = vpack.c.b16 %v1782, %v1781
        %v1795 = vpack.c.b16 %v1784, %v1783
        %v1796 = vpack.c.b16 %v1786, %v1785
        %v1797 = vpack.c.b16 %v1788, %v1787
        %v1798 = vpack.c.b16 %v1790, %v1789
        %1807 = vmatpush.bf16.msra.mxu0 %v1798
        %1808 = vmatpush.bf16.msra.mxu0 %v1797
        %1809 = vmatpush.bf16.msra.mxu0 %v1796
        %1810 = vmatpush.bf16.msra.mxu0 %v1795
        %1811 = vmatpush.bf16.msra.mxu0 %v1794
        %1812 = vmatpush.bf16.msra.mxu0 %v1793
        %1813 = vmatpush.bf16.msra.mxu0 %v1792
        %1814 = vmatpush.bf16.msra.mxu0 %v1791
        %1815 = vmatmul.bf16.gmra.mxu0 %v1607
        %v1816 = vpop.f32.mrf.mxu0
        %v1817 = vadd.f32 0.0, %v1816
        %v1818 = vpop.f32.mrf.mxu0
        %v1819 = vadd.f32 0.0, %v1818
        %1820 = vmatmul.bf16.gmra.mxu0 %v1616
        %v1821 = vpop.f32.mrf.mxu0
        %v1822 = vadd.f32 0.0, %v1821
        %v1823 = vpop.f32.mrf.mxu0
        %v1824 = vadd.f32 0.0, %v1823
        %1825 = vmatmul.bf16.gmra.mxu0 %v1625
        %v1826 = vpop.f32.mrf.mxu0
        %v1827 = vadd.f32 0.0, %v1826
        %v1828 = vpop.f32.mrf.mxu0
        %v1829 = vadd.f32 0.0, %v1828
        %1830 = vmatmul.bf16.gmra.mxu0 %v1634
        %v1831 = vpop.f32.mrf.mxu0
        %v1832 = vadd.f32 0.0, %v1831
        %v1833 = vpop.f32.mrf.mxu0
        %v1834 = vadd.f32 0.0, %v1833
        %1835 = vmatmul.bf16.gmra.mxu0 %v1643
        %v1836 = vpop.f32.mrf.mxu0
        %v1837 = vadd.f32 0.0, %v1836
        %v1838 = vpop.f32.mrf.mxu0
        %v1839 = vadd.f32 0.0, %v1838
        %1840 = vmatmul.bf16.gmra.mxu0 %v1652
        %v1841 = vpop.f32.mrf.mxu0
        %v1842 = vadd.f32 0.0, %v1841
        %v1843 = vpop.f32.mrf.mxu0
        %v1844 = vadd.f32 0.0, %v1843
        %1845 = vmatmul.bf16.gmra.mxu0 %v1661
        %v1846 = vpop.f32.mrf.mxu0
        %v1847 = vadd.f32 0.0, %v1846
        %v1848 = vpop.f32.mrf.mxu0
        %v1849 = vadd.f32 0.0, %v1848
        %1850 = vmatmul.bf16.gmra.mxu0 %v1670
        %v1851 = vpop.f32.mrf.mxu0
        %v1852 = vadd.f32 0.0, %v1851
        %v1853 = vpop.f32.mrf.mxu0
        %v1854 = vadd.f32 0.0, %v1853
        %1855 = vmatmul.bf16.gmra.mxu0 %v1679
        %v1856 = vpop.f32.mrf.mxu0
        %v1857 = vadd.f32 0.0, %v1856
        %v1858 = vpop.f32.mrf.mxu0
        %v1859 = vadd.f32 0.0, %v1858
        %1860 = vmatmul.bf16.gmra.mxu0 %v1688
        %v1861 = vpop.f32.mrf.mxu0
        %v1862 = vadd.f32 0.0, %v1861
        %v1863 = vpop.f32.mrf.mxu0
        %v1864 = vadd.f32 0.0, %v1863
        %1865 = vmatmul.bf16.gmra.mxu0 %v1697
        %v1866 = vpop.f32.mrf.mxu0
        %v1867 = vadd.f32 0.0, %v1866
        %v1868 = vpop.f32.mrf.mxu0
        %v1869 = vadd.f32 0.0, %v1868
        %1870 = vmatmul.bf16.gmra.mxu0 %v1706
        %v1871 = vpop.f32.mrf.mxu0
        %v1872 = vadd.f32 0.0, %v1871
        %v1873 = vpop.f32.mrf.mxu0
        %v1874 = vadd.f32 0.0, %v1873
        %1875 = vmatmul.bf16.gmra.mxu0 %v1715
        %v1876 = vpop.f32.mrf.mxu0
        %v1877 = vadd.f32 0.0, %v1876
        %v1878 = vpop.f32.mrf.mxu0
        %v1879 = vadd.f32 0.0, %v1878
        %1880 = vmatmul.bf16.gmra.mxu0 %v1724
        %v1881 = vpop.f32.mrf.mxu0
        %v1882 = vadd.f32 0.0, %v1881
        %v1883 = vpop.f32.mrf.mxu0
        %v1884 = vadd.f32 0.0, %v1883
        %1885 = vmatmul.bf16.gmra.mxu0 %v1733
        %v1886 = vpop.f32.mrf.mxu0
        %v1887 = vadd.f32 0.0, %v1886
        %v1888 = vpop.f32.mrf.mxu0
        %v1889 = vadd.f32 0.0, %v1888
        %1890 = vmatmul.bf16.gmra.mxu0 %v1742
        %v1891 = vpop.f32.mrf.mxu0
        %v1892 = vadd.f32 0.0, %v1891
        %v1893 = vpop.f32.mrf.mxu0
        %v1894 = vadd.f32 0.0, %v1893
        %1895 = vdwg.mxu0
        %1896 = vst [vmem:[#allocation3] sm:$0xff] %v1817
        %1897 = vst [vmem:[#allocation3 + $0x8] sm:$0xff] %v1819
        %1898 = vst [vmem:[#allocation3 + $0x10] sm:$0xff] %v1822
        %1899 = vst [vmem:[#allocation3 + $0x18] sm:$0xff] %v1824
        %1900 = vst [vmem:[#allocation3 + $0x20] sm:$0xff] %v1827
        %1901 = vst [vmem:[#allocation3 + $0x28] sm:$0xff] %v1829
        %1902 = vst [vmem:[#allocation3 + $0x30] sm:$0xff] %v1832
        %1903 = vst [vmem:[#allocation3 + $0x38] sm:$0xff] %v1834
        %1904 = vst [vmem:[#allocation3 + $0x40] sm:$0xff] %v1837
        %1905 = vst [vmem:[#allocation3 + $0x48] sm:$0xff] %v1839
        %1906 = vst [vmem:[#allocation3 + $0x50] sm:$0xff] %v1842
        %1907 = vst [vmem:[#allocation3 + $0x58] sm:$0xff] %v1844
        %1908 = vst [vmem:[#allocation3 + $0x60] sm:$0xff] %v1847
        %1909 = vst [vmem:[#allocation3 + $0x68] sm:$0xff] %v1849
        %1910 = vst [vmem:[#allocation3 + $0x70] sm:$0xff] %v1852
        %1911 = vst [vmem:[#allocation3 + $0x78] sm:$0xff] %v1854
        %1912 = vst [vmem:[#allocation3 + $0x80] sm:$0xff] %v1857
        %1913 = vst [vmem:[#allocation3 + $0x88] sm:$0xff] %v1859
        %1914 = vst [vmem:[#allocation3 + $0x90] sm:$0xff] %v1862
        %1915 = vst [vmem:[#allocation3 + $0x98] sm:$0xff] %v1864
        %1916 = vst [vmem:[#allocation3 + $0xa0] sm:$0xff] %v1867
        %1917 = vst [vmem:[#allocation3 + $0xa8] sm:$0xff] %v1869
        %1918 = vst [vmem:[#allocation3 + $0xb0] sm:$0xff] %v1872
        %1919 = vst [vmem:[#allocation3 + $0xb8] sm:$0xff] %v1874
        %1920 = vst [vmem:[#allocation3 + $0xc0] sm:$0xff] %v1877
        %1921 = vst [vmem:[#allocation3 + $0xc8] sm:$0xff] %v1879
        %1922 = vst [vmem:[#allocation3 + $0xd0] sm:$0xff] %v1882
        %1923 = vst [vmem:[#allocation3 + $0xd8] sm:$0xff] %v1884
        %1924 = vst [vmem:[#allocation3 + $0xe0] sm:$0xff] %v1887
        %1925 = vst [vmem:[#allocation3 + $0xe8] sm:$0xff] %v1889
        %1926 = vst [vmem:[#allocation3 + $0xf0] sm:$0xff] %v1892
        %1927 = vst [vmem:[#allocation3 + $0xf8] sm:$0xff] %v1894
        %v1928 = vld [vmem:[#allocation2 + $0x4] sm:$0xf]
        %v1929 = vld [vmem:[#allocation2 + $0x8] sm:$0xf]
        %v1930 = vld [vmem:[#allocation2 + $0xc] sm:$0xf]
        %v1931 = vld [vmem:[#allocation2 + $0x10] sm:$0xf]
        %v1932 = vld [vmem:[#allocation2 + $0x14] sm:$0xf]
        %v1933 = vld [vmem:[#allocation2 + $0x18] sm:$0xf]
        %v1934 = vld [vmem:[#allocation2 + $0x1c] sm:$0xf]
        %v1935 = vld [vmem:[#allocation2 + $0x20] sm:$0xf]
        %v1936 = vld [vmem:[#allocation2 + $0x24] sm:$0xf]
        %v1937 = vld [vmem:[#allocation2 + $0x28] sm:$0xf]
        %v1938 = vld [vmem:[#allocation2 + $0x2c] sm:$0xf]
        %v1939 = vld [vmem:[#allocation2 + $0x30] sm:$0xf]
        %v1940 = vld [vmem:[#allocation2 + $0x34] sm:$0xf]
        %v1941 = vld [vmem:[#allocation2 + $0x38] sm:$0xf]
        %v1942 = vld [vmem:[#allocation2 + $0x3c] sm:$0xf]
        %v1943 = vld [vmem:[#allocation2 + $0x40] sm:$0xf]
        %v1944 = vld [vmem:[#allocation2 + $0x44] sm:$0xf]
        %v1945 = vld [vmem:[#allocation2 + $0x48] sm:$0xf]
        %v1946 = vld [vmem:[#allocation2 + $0x4c] sm:$0xf]
        %v1947 = vld [vmem:[#allocation2 + $0x50] sm:$0xf]
        %v1948 = vld [vmem:[#allocation2 + $0x54] sm:$0xf]
        %v1949 = vld [vmem:[#allocation2 + $0x58] sm:$0xf]
        %v1950 = vld [vmem:[#allocation2 + $0x5c] sm:$0xf]
        %v1951 = vld [vmem:[#allocation2 + $0x60] sm:$0xf]
        %v1952 = vld [vmem:[#allocation2 + $0x64] sm:$0xf]
        %v1953 = vld [vmem:[#allocation2 + $0x68] sm:$0xf]
        %v1954 = vld [vmem:[#allocation2 + $0x6c] sm:$0xf]
        %v1955 = vld [vmem:[#allocation2 + $0x70] sm:$0xf]
        %v1956 = vld [vmem:[#allocation2 + $0x74] sm:$0xf]
        %v1957 = vld [vmem:[#allocation2 + $0x78] sm:$0xf]
        %v1958 = vld [vmem:[#allocation2 + $0x7c] sm:$0xf]
        %v1959 = vld [vmem:[#allocation2 + $0x80] sm:$0xf]
        %s1960 = scalar_lea.vmem [#allocation7], 64
        %v1961 = vld [vmem:[%s1960] sm:$0xf]
        %v1962 = vld [vmem:[%s1960 + $0x4] sm:$0xf]
        %v1963 = vld [vmem:[%s1960 + $0x8] sm:$0xf]
        %v1964 = vld [vmem:[%s1960 + $0xc] sm:$0xf]
        %v1965 = vld [vmem:[%s1960 + $0x10] sm:$0xf]
        %v1966 = vld [vmem:[%s1960 + $0x14] sm:$0xf]
        %v1967 = vld [vmem:[%s1960 + $0x18] sm:$0xf]
        %v1968 = vld [vmem:[%s1960 + $0x1c] sm:$0xf]
        %v1969 = vld [vmem:[%s1960 + $0x20] sm:$0xf]
        %v1970 = vld [vmem:[%s1960 + $0x24] sm:$0xf]
        %v1971 = vld [vmem:[%s1960 + $0x28] sm:$0xf]
        %v1972 = vld [vmem:[%s1960 + $0x2c] sm:$0xf]
        %v1973 = vld [vmem:[%s1960 + $0x30] sm:$0xf]
        %v1974 = vld [vmem:[%s1960 + $0x34] sm:$0xf]
        %v1975 = vld [vmem:[%s1960 + $0x38] sm:$0xf]
        %v1976 = vld [vmem:[%s1960 + $0x3c] sm:$0xf]
        %v2009 = vunpack.c.l.b16 %v1928
        %v2010 = vunpack.c.l.b16 %v1929
        %v2011 = vunpack.c.l.b16 %v1930
        %v2012 = vunpack.c.l.b16 %v1931
        %v2013 = vunpack.c.l.b16 %v1932
        %v2014 = vunpack.c.l.b16 %v1933
        %v2015 = vunpack.c.l.b16 %v1934
        %v2016 = vunpack.c.l.b16 %v1935
        %v2017 = vunpack.c.l.b16 %v1936
        %v2018 = vunpack.c.l.b16 %v1937
        %v2019 = vunpack.c.l.b16 %v1938
        %v2020 = vunpack.c.l.b16 %v1939
        %v2021 = vunpack.c.l.b16 %v1940
        %v2022 = vunpack.c.l.b16 %v1941
        %v2023 = vunpack.c.l.b16 %v1942
        %v2024 = vunpack.c.l.b16 %v1943
        %v2025 = vunpack.c.l.b16 %v1944
        %v2026 = vunpack.c.l.b16 %v1945
        %v2027 = vunpack.c.l.b16 %v1946
        %v2028 = vunpack.c.l.b16 %v1947
        %v2029 = vunpack.c.l.b16 %v1948
        %v2030 = vunpack.c.l.b16 %v1949
        %v2031 = vunpack.c.l.b16 %v1950
        %v2032 = vunpack.c.l.b16 %v1951
        %v2033 = vunpack.c.l.b16 %v1952
        %v2034 = vunpack.c.l.b16 %v1953
        %v2035 = vunpack.c.l.b16 %v1954
        %v2036 = vunpack.c.l.b16 %v1955
        %v2037 = vunpack.c.l.b16 %v1956
        %v2038 = vunpack.c.l.b16 %v1957
        %v2039 = vunpack.c.l.b16 %v1958
        %v2040 = vunpack.c.l.b16 %v1959
        %v2041 = vpack.c.b16 %v2010, %v2009
        %v2042 = vpack.c.b16 %v2012, %v2011
        %v2043 = vpack.c.b16 %v2014, %v2013
        %v2044 = vpack.c.b16 %v2016, %v2015
        %v2045 = vpack.c.b16 %v2018, %v2017
        %v2046 = vpack.c.b16 %v2020, %v2019
        %v2047 = vpack.c.b16 %v2022, %v2021
        %v2048 = vpack.c.b16 %v2024, %v2023
        %v2049 = vpack.c.b16 %v2026, %v2025
        %v2050 = vpack.c.b16 %v2028, %v2027
        %v2051 = vpack.c.b16 %v2030, %v2029
        %v2052 = vpack.c.b16 %v2032, %v2031
        %v2053 = vpack.c.b16 %v2034, %v2033
        %v2054 = vpack.c.b16 %v2036, %v2035
        %v2055 = vpack.c.b16 %v2038, %v2037
        %v2056 = vpack.c.b16 %v2040, %v2039
        %v2089 = vunpack.c.l.b16 %v1961
        %v2090 = vunpack.c.l.b16 %v1962
        %v2091 = vunpack.c.l.b16 %v1963
        %v2092 = vunpack.c.l.b16 %v1964
        %v2093 = vunpack.c.l.b16 %v1965
        %v2094 = vunpack.c.l.b16 %v1966
        %v2095 = vunpack.c.l.b16 %v1967
        %v2096 = vunpack.c.l.b16 %v1968
        %v2097 = vunpack.c.l.b16 %v1969
        %v2098 = vunpack.c.l.b16 %v1970
        %v2099 = vunpack.c.l.b16 %v1971
        %v2100 = vunpack.c.l.b16 %v1972
        %v2101 = vunpack.c.l.b16 %v1973
        %v2102 = vunpack.c.l.b16 %v1974
        %v2103 = vunpack.c.l.b16 %v1975
        %v2104 = vunpack.c.l.b16 %v1976
        %v2105 = vpack.c.b16 %v2090, %v2089
        %v2106 = vpack.c.b16 %v2092, %v2091
        %v2107 = vpack.c.b16 %v2094, %v2093
        %v2108 = vpack.c.b16 %v2096, %v2095
        %v2109 = vpack.c.b16 %v2098, %v2097
        %v2110 = vpack.c.b16 %v2100, %v2099
        %v2111 = vpack.c.b16 %v2102, %v2101
        %v2112 = vpack.c.b16 %v2104, %v2103
        %2121 = vmatpush.bf16.msra.mxu0 %v2112
        %2122 = vmatpush.bf16.msra.mxu0 %v2111
        %2123 = vmatpush.bf16.msra.mxu0 %v2110
        %2124 = vmatpush.bf16.msra.mxu0 %v2109
        %2125 = vmatpush.bf16.msra.mxu0 %v2108
        %2126 = vmatpush.bf16.msra.mxu0 %v2107
        %2127 = vmatpush.bf16.msra.mxu0 %v2106
        %2128 = vmatpush.bf16.msra.mxu0 %v2105
        %2129 = vmatmul.bf16.gmra.mxu0 %v2041
        %v2130 = vpop.f32.mrf.mxu0
        %v2131 = vadd.f32 0.0, %v2130
        %v2132 = vpop.f32.mrf.mxu0
        %v2133 = vadd.f32 0.0, %v2132
        %2134 = vmatmul.bf16.gmra.mxu0 %v2042
        %v2135 = vpop.f32.mrf.mxu0
        %v2136 = vadd.f32 0.0, %v2135
        %v2137 = vpop.f32.mrf.mxu0
        %v2138 = vadd.f32 0.0, %v2137
        %2139 = vmatmul.bf16.gmra.mxu0 %v2043
        %v2140 = vpop.f32.mrf.mxu0
        %v2141 = vadd.f32 0.0, %v2140
        %v2142 = vpop.f32.mrf.mxu0
        %v2143 = vadd.f32 0.0, %v2142
        %2144 = vmatmul.bf16.gmra.mxu0 %v2044
        %v2145 = vpop.f32.mrf.mxu0
        %v2146 = vadd.f32 0.0, %v2145
        %v2147 = vpop.f32.mrf.mxu0
        %v2148 = vadd.f32 0.0, %v2147
        %2149 = vmatmul.bf16.gmra.mxu0 %v2045
        %v2150 = vpop.f32.mrf.mxu0
        %v2151 = vadd.f32 0.0, %v2150
        %v2152 = vpop.f32.mrf.mxu0
        %v2153 = vadd.f32 0.0, %v2152
        %2154 = vmatmul.bf16.gmra.mxu0 %v2046
        %v2155 = vpop.f32.mrf.mxu0
        %v2156 = vadd.f32 0.0, %v2155
        %v2157 = vpop.f32.mrf.mxu0
        %v2158 = vadd.f32 0.0, %v2157
        %2159 = vmatmul.bf16.gmra.mxu0 %v2047
        %v2160 = vpop.f32.mrf.mxu0
        %v2161 = vadd.f32 0.0, %v2160
        %v2162 = vpop.f32.mrf.mxu0
        %v2163 = vadd.f32 0.0, %v2162
        %2164 = vmatmul.bf16.gmra.mxu0 %v2048
        %v2165 = vpop.f32.mrf.mxu0
        %v2166 = vadd.f32 0.0, %v2165
        %v2167 = vpop.f32.mrf.mxu0
        %v2168 = vadd.f32 0.0, %v2167
        %2169 = vmatmul.bf16.gmra.mxu0 %v2049
        %v2170 = vpop.f32.mrf.mxu0
        %v2171 = vadd.f32 0.0, %v2170
        %v2172 = vpop.f32.mrf.mxu0
        %v2173 = vadd.f32 0.0, %v2172
        %2174 = vmatmul.bf16.gmra.mxu0 %v2050
        %v2175 = vpop.f32.mrf.mxu0
        %v2176 = vadd.f32 0.0, %v2175
        %v2177 = vpop.f32.mrf.mxu0
        %v2178 = vadd.f32 0.0, %v2177
        %2179 = vmatmul.bf16.gmra.mxu0 %v2051
        %v2180 = vpop.f32.mrf.mxu0
        %v2181 = vadd.f32 0.0, %v2180
        %v2182 = vpop.f32.mrf.mxu0
        %v2183 = vadd.f32 0.0, %v2182
        %2184 = vmatmul.bf16.gmra.mxu0 %v2052
        %v2185 = vpop.f32.mrf.mxu0
        %v2186 = vadd.f32 0.0, %v2185
        %v2187 = vpop.f32.mrf.mxu0
        %v2188 = vadd.f32 0.0, %v2187
        %2189 = vmatmul.bf16.gmra.mxu0 %v2053
        %v2190 = vpop.f32.mrf.mxu0
        %v2191 = vadd.f32 0.0, %v2190
        %v2192 = vpop.f32.mrf.mxu0
        %v2193 = vadd.f32 0.0, %v2192
        %2194 = vmatmul.bf16.gmra.mxu0 %v2054
        %v2195 = vpop.f32.mrf.mxu0
        %v2196 = vadd.f32 0.0, %v2195
        %v2197 = vpop.f32.mrf.mxu0
        %v2198 = vadd.f32 0.0, %v2197
        %2199 = vmatmul.bf16.gmra.mxu0 %v2055
        %v2200 = vpop.f32.mrf.mxu0
        %v2201 = vadd.f32 0.0, %v2200
        %v2202 = vpop.f32.mrf.mxu0
        %v2203 = vadd.f32 0.0, %v2202
        %2204 = vmatmul.bf16.gmra.mxu0 %v2056
        %v2205 = vpop.f32.mrf.mxu0
        %v2206 = vadd.f32 0.0, %v2205
        %v2207 = vpop.f32.mrf.mxu0
        %v2208 = vadd.f32 0.0, %v2207
        %2209 = vdwg.mxu0
        %v2210 = vld [vmem:[#allocation3] sm:$0xff]
        %v2211 = vld [vmem:[#allocation3 + $0x8] sm:$0xff]
        %v2212 = vld [vmem:[#allocation3 + $0x10] sm:$0xff]
        %v2213 = vld [vmem:[#allocation3 + $0x18] sm:$0xff]
        %v2214 = vld [vmem:[#allocation3 + $0x20] sm:$0xff]
        %v2215 = vld [vmem:[#allocation3 + $0x28] sm:$0xff]
        %v2216 = vld [vmem:[#allocation3 + $0x30] sm:$0xff]
        %v2217 = vld [vmem:[#allocation3 + $0x38] sm:$0xff]
        %v2218 = vld [vmem:[#allocation3 + $0x40] sm:$0xff]
        %v2219 = vld [vmem:[#allocation3 + $0x48] sm:$0xff]
        %v2220 = vld [vmem:[#allocation3 + $0x50] sm:$0xff]
        %v2221 = vld [vmem:[#allocation3 + $0x58] sm:$0xff]
        %v2222 = vld [vmem:[#allocation3 + $0x60] sm:$0xff]
        %v2223 = vld [vmem:[#allocation3 + $0x68] sm:$0xff]
        %v2224 = vld [vmem:[#allocation3 + $0x70] sm:$0xff]
        %v2225 = vld [vmem:[#allocation3 + $0x78] sm:$0xff]
        %v2226 = vld [vmem:[#allocation3 + $0x80] sm:$0xff]
        %v2227 = vld [vmem:[#allocation3 + $0x88] sm:$0xff]
        %v2228 = vld [vmem:[#allocation3 + $0x90] sm:$0xff]
        %v2229 = vld [vmem:[#allocation3 + $0x98] sm:$0xff]
        %v2230 = vld [vmem:[#allocation3 + $0xa0] sm:$0xff]
        %v2231 = vld [vmem:[#allocation3 + $0xa8] sm:$0xff]
        %v2232 = vld [vmem:[#allocation3 + $0xb0] sm:$0xff]
        %v2233 = vld [vmem:[#allocation3 + $0xb8] sm:$0xff]
        %v2234 = vld [vmem:[#allocation3 + $0xc0] sm:$0xff]
        %v2235 = vld [vmem:[#allocation3 + $0xc8] sm:$0xff]
        %v2236 = vld [vmem:[#allocation3 + $0xd0] sm:$0xff]
        %v2237 = vld [vmem:[#allocation3 + $0xd8] sm:$0xff]
        %v2238 = vld [vmem:[#allocation3 + $0xe0] sm:$0xff]
        %v2239 = vld [vmem:[#allocation3 + $0xe8] sm:$0xff]
        %v2240 = vld [vmem:[#allocation3 + $0xf0] sm:$0xff]
        %v2241 = vld [vmem:[#allocation3 + $0xf8] sm:$0xff]
        %v2242 = vadd.f32 %v2210, %v2131
        %v2243 = vadd.f32 %v2211, %v2133
        %v2244 = vadd.f32 %v2212, %v2136
        %v2245 = vadd.f32 %v2213, %v2138
        %v2246 = vadd.f32 %v2214, %v2141
        %v2247 = vadd.f32 %v2215, %v2143
        %v2248 = vadd.f32 %v2216, %v2146
        %v2249 = vadd.f32 %v2217, %v2148
        %v2250 = vadd.f32 %v2218, %v2151
        %v2251 = vadd.f32 %v2219, %v2153
        %v2252 = vadd.f32 %v2220, %v2156
        %v2253 = vadd.f32 %v2221, %v2158
        %v2254 = vadd.f32 %v2222, %v2161
        %v2255 = vadd.f32 %v2223, %v2163
        %v2256 = vadd.f32 %v2224, %v2166
        %v2257 = vadd.f32 %v2225, %v2168
        %v2258 = vadd.f32 %v2226, %v2171
        %v2259 = vadd.f32 %v2227, %v2173
        %v2260 = vadd.f32 %v2228, %v2176
        %v2261 = vadd.f32 %v2229, %v2178
        %v2262 = vadd.f32 %v2230, %v2181
        %v2263 = vadd.f32 %v2231, %v2183
        %v2264 = vadd.f32 %v2232, %v2186
        %v2265 = vadd.f32 %v2233, %v2188
        %v2266 = vadd.f32 %v2234, %v2191
        %v2267 = vadd.f32 %v2235, %v2193
        %v2268 = vadd.f32 %v2236, %v2196
        %v2269 = vadd.f32 %v2237, %v2198
        %v2270 = vadd.f32 %v2238, %v2201
        %v2271 = vadd.f32 %v2239, %v2203
        %v2272 = vadd.f32 %v2240, %v2206
        %v2273 = vadd.f32 %v2241, %v2208
        %2274 = vst [vmem:[#allocation3] sm:$0xff] %v2242
        %2275 = vst [vmem:[#allocation3 + $0x8] sm:$0xff] %v2243
        %2276 = vst [vmem:[#allocation3 + $0x10] sm:$0xff] %v2244
        %2277 = vst [vmem:[#allocation3 + $0x18] sm:$0xff] %v2245
        %2278 = vst [vmem:[#allocation3 + $0x20] sm:$0xff] %v2246
        %2279 = vst [vmem:[#allocation3 + $0x28] sm:$0xff] %v2247
        %2280 = vst [vmem:[#allocation3 + $0x30] sm:$0xff] %v2248
        %2281 = vst [vmem:[#allocation3 + $0x38] sm:$0xff] %v2249
        %2282 = vst [vmem:[#allocation3 + $0x40] sm:$0xff] %v2250
        %2283 = vst [vmem:[#allocation3 + $0x48] sm:$0xff] %v2251
        %2284 = vst [vmem:[#allocation3 + $0x50] sm:$0xff] %v2252
        %2285 = vst [vmem:[#allocation3 + $0x58] sm:$0xff] %v2253
        %2286 = vst [vmem:[#allocation3 + $0x60] sm:$0xff] %v2254
        %2287 = vst [vmem:[#allocation3 + $0x68] sm:$0xff] %v2255
        %2288 = vst [vmem:[#allocation3 + $0x70] sm:$0xff] %v2256
        %2289 = vst [vmem:[#allocation3 + $0x78] sm:$0xff] %v2257
        %2290 = vst [vmem:[#allocation3 + $0x80] sm:$0xff] %v2258
        %2291 = vst [vmem:[#allocation3 + $0x88] sm:$0xff] %v2259
        %2292 = vst [vmem:[#allocation3 + $0x90] sm:$0xff] %v2260
        %2293 = vst [vmem:[#allocation3 + $0x98] sm:$0xff] %v2261
        %2294 = vst [vmem:[#allocation3 + $0xa0] sm:$0xff] %v2262
        %2295 = vst [vmem:[#allocation3 + $0xa8] sm:$0xff] %v2263
        %2296 = vst [vmem:[#allocation3 + $0xb0] sm:$0xff] %v2264
        %2297 = vst [vmem:[#allocation3 + $0xb8] sm:$0xff] %v2265
        %2298 = vst [vmem:[#allocation3 + $0xc0] sm:$0xff] %v2266
        %2299 = vst [vmem:[#allocation3 + $0xc8] sm:$0xff] %v2267
        %2300 = vst [vmem:[#allocation3 + $0xd0] sm:$0xff] %v2268
        %2301 = vst [vmem:[#allocation3 + $0xd8] sm:$0xff] %v2269
        %2302 = vst [vmem:[#allocation3 + $0xe0] sm:$0xff] %v2270
        %2303 = vst [vmem:[#allocation3 + $0xe8] sm:$0xff] %v2271
        %2304 = vst [vmem:[#allocation3 + $0xf0] sm:$0xff] %v2272
        %2305 = vst [vmem:[#allocation3 + $0xf8] sm:$0xff] %v2273
        %v2306 = vld [vmem:[#allocation2 + $0x4] sm:$0xf]
        %v2307 = vld [vmem:[#allocation2 + $0x8] sm:$0xf]
        %v2308 = vld [vmem:[#allocation2 + $0xc] sm:$0xf]
        %v2309 = vld [vmem:[#allocation2 + $0x10] sm:$0xf]
        %v2310 = vld [vmem:[#allocation2 + $0x14] sm:$0xf]
        %v2311 = vld [vmem:[#allocation2 + $0x18] sm:$0xf]
        %v2312 = vld [vmem:[#allocation2 + $0x1c] sm:$0xf]
        %v2313 = vld [vmem:[#allocation2 + $0x20] sm:$0xf]
        %v2314 = vld [vmem:[#allocation2 + $0x24] sm:$0xf]
        %v2315 = vld [vmem:[#allocation2 + $0x28] sm:$0xf]
        %v2316 = vld [vmem:[#allocation2 + $0x2c] sm:$0xf]
        %v2317 = vld [vmem:[#allocation2 + $0x30] sm:$0xf]
        %v2318 = vld [vmem:[#allocation2 + $0x34] sm:$0xf]
        %v2319 = vld [vmem:[#allocation2 + $0x38] sm:$0xf]
        %v2320 = vld [vmem:[#allocation2 + $0x3c] sm:$0xf]
        %v2321 = vld [vmem:[#allocation2 + $0x40] sm:$0xf]
        %v2322 = vld [vmem:[#allocation2 + $0x44] sm:$0xf]
        %v2323 = vld [vmem:[#allocation2 + $0x48] sm:$0xf]
        %v2324 = vld [vmem:[#allocation2 + $0x4c] sm:$0xf]
        %v2325 = vld [vmem:[#allocation2 + $0x50] sm:$0xf]
        %v2326 = vld [vmem:[#allocation2 + $0x54] sm:$0xf]
        %v2327 = vld [vmem:[#allocation2 + $0x58] sm:$0xf]
        %v2328 = vld [vmem:[#allocation2 + $0x5c] sm:$0xf]
        %v2329 = vld [vmem:[#allocation2 + $0x60] sm:$0xf]
        %v2330 = vld [vmem:[#allocation2 + $0x64] sm:$0xf]
        %v2331 = vld [vmem:[#allocation2 + $0x68] sm:$0xf]
        %v2332 = vld [vmem:[#allocation2 + $0x6c] sm:$0xf]
        %v2333 = vld [vmem:[#allocation2 + $0x70] sm:$0xf]
        %v2334 = vld [vmem:[#allocation2 + $0x74] sm:$0xf]
        %v2335 = vld [vmem:[#allocation2 + $0x78] sm:$0xf]
        %v2336 = vld [vmem:[#allocation2 + $0x7c] sm:$0xf]
        %v2337 = vld [vmem:[#allocation2 + $0x80] sm:$0xf]
        %v2338 = vld [vmem:[#allocation2 + $0x84] sm:$0x1]
        %2340 = vset.pattern.permute.xlu0 0
        %2341 = vperm.xlu0 %2340, %v977
        %v2342 = vpop.permute.xlu0 %2341
        %v2345 = vunpack.c.l.s4 839922192
        %v2346 = vunpack.c.0.s8 %v2345
        %v2347 = vperm.slane %v2342, %v2346
        %2349 = vset.pattern.permute.xlu0 0
        %2350 = vperm.xlu0 %2349, %v978
        %v2351 = vpop.permute.xlu0 %2350
        %v2354 = vunpack.c.l.s4 839922192
        %v2355 = vunpack.c.0.s8 %v2354
        %v2356 = vperm.slane %v2351, %v2355
        %2358 = vset.pattern.permute.xlu0 0
        %2359 = vperm.xlu0 %2358, %v979
        %v2360 = vpop.permute.xlu0 %2359
        %v2363 = vunpack.c.l.s4 839922192
        %v2364 = vunpack.c.0.s8 %v2363
        %v2365 = vperm.slane %v2360, %v2364
        %2367 = vset.pattern.permute.xlu0 0
        %2368 = vperm.xlu0 %2367, %v980
        %v2369 = vpop.permute.xlu0 %2368
        %v2372 = vunpack.c.l.s4 839922192
        %v2373 = vunpack.c.0.s8 %v2372
        %v2374 = vperm.slane %v2369, %v2373
        %2376 = vset.pattern.permute.xlu0 0
        %2377 = vperm.xlu0 %2376, %v981
        %v2378 = vpop.permute.xlu0 %2377
        %v2381 = vunpack.c.l.s4 839922192
        %v2382 = vunpack.c.0.s8 %v2381
        %v2383 = vperm.slane %v2378, %v2382
        %2385 = vset.pattern.permute.xlu0 0
        %2386 = vperm.xlu0 %2385, %v982
        %v2387 = vpop.permute.xlu0 %2386
        %v2390 = vunpack.c.l.s4 839922192
        %v2391 = vunpack.c.0.s8 %v2390
        %v2392 = vperm.slane %v2387, %v2391
        %2394 = vset.pattern.permute.xlu0 0
        %2395 = vperm.xlu0 %2394, %v983
        %v2396 = vpop.permute.xlu0 %2395
        %v2399 = vunpack.c.l.s4 839922192
        %v2400 = vunpack.c.0.s8 %v2399
        %v2401 = vperm.slane %v2396, %v2400
        %2403 = vset.pattern.permute.xlu0 0
        %2404 = vperm.xlu0 %2403, %v984
        %v2405 = vpop.permute.xlu0 %2404
        %v2408 = vunpack.c.l.s4 839922192
        %v2409 = vunpack.c.0.s8 %v2408
        %v2410 = vperm.slane %v2405, %v2409
        %2412 = vset.pattern.permute.xlu0 0
        %2413 = vperm.xlu0 %2412, %v985
        %v2414 = vpop.permute.xlu0 %2413
        %v2417 = vunpack.c.l.s4 839922192
        %v2418 = vunpack.c.0.s8 %v2417
        %v2419 = vperm.slane %v2414, %v2418
        %2421 = vset.pattern.permute.xlu0 0
        %2422 = vperm.xlu0 %2421, %v986
        %v2423 = vpop.permute.xlu0 %2422
        %v2426 = vunpack.c.l.s4 839922192
        %v2427 = vunpack.c.0.s8 %v2426
        %v2428 = vperm.slane %v2423, %v2427
        %2430 = vset.pattern.permute.xlu0 0
        %2431 = vperm.xlu0 %2430, %v987
        %v2432 = vpop.permute.xlu0 %2431
        %v2435 = vunpack.c.l.s4 839922192
        %v2436 = vunpack.c.0.s8 %v2435
        %v2437 = vperm.slane %v2432, %v2436
        %2439 = vset.pattern.permute.xlu0 0
        %2440 = vperm.xlu0 %2439, %v988
        %v2441 = vpop.permute.xlu0 %2440
        %v2444 = vunpack.c.l.s4 839922192
        %v2445 = vunpack.c.0.s8 %v2444
        %v2446 = vperm.slane %v2441, %v2445
        %2448 = vset.pattern.permute.xlu0 0
        %2449 = vperm.xlu0 %2448, %v989
        %v2450 = vpop.permute.xlu0 %2449
        %v2453 = vunpack.c.l.s4 839922192
        %v2454 = vunpack.c.0.s8 %v2453
        %v2455 = vperm.slane %v2450, %v2454
        %2457 = vset.pattern.permute.xlu0 0
        %2458 = vperm.xlu0 %2457, %v990
        %v2459 = vpop.permute.xlu0 %2458
        %v2462 = vunpack.c.l.s4 839922192
        %v2463 = vunpack.c.0.s8 %v2462
        %v2464 = vperm.slane %v2459, %v2463
        %2466 = vset.pattern.permute.xlu0 0
        %2467 = vperm.xlu0 %2466, %v991
        %v2468 = vpop.permute.xlu0 %2467
        %v2471 = vunpack.c.l.s4 839922192
        %v2472 = vunpack.c.0.s8 %v2471
        %v2473 = vperm.slane %v2468, %v2472
        %2475 = vset.pattern.permute.xlu0 0
        %2476 = vperm.xlu0 %2475, %v992
        %v2477 = vpop.permute.xlu0 %2476
        %v2480 = vunpack.c.l.s4 839922192
        %v2481 = vunpack.c.0.s8 %v2480
        %v2482 = vperm.slane %v2477, %v2481
        %2484 = vset.pattern.permute.xlu0 0
        %2485 = vperm.xlu0 %2484, %v993
        %v2486 = vpop.permute.xlu0 %2485
        %v2489 = vunpack.c.l.s4 839922192
        %v2490 = vunpack.c.0.s8 %v2489
        %v2491 = vperm.slane %v2486, %v2490
        %2493 = vset.pattern.permute.xlu0 0
        %2494 = vperm.xlu0 %2493, %v994
        %v2495 = vpop.permute.xlu0 %2494
        %v2498 = vunpack.c.l.s4 839922192
        %v2499 = vunpack.c.0.s8 %v2498
        %v2500 = vperm.slane %v2495, %v2499
        %2502 = vset.pattern.permute.xlu0 0
        %2503 = vperm.xlu0 %2502, %v995
        %v2504 = vpop.permute.xlu0 %2503
        %v2507 = vunpack.c.l.s4 839922192
        %v2508 = vunpack.c.0.s8 %v2507
        %v2509 = vperm.slane %v2504, %v2508
        %2511 = vset.pattern.permute.xlu0 0
        %2512 = vperm.xlu0 %2511, %v996
        %v2513 = vpop.permute.xlu0 %2512
        %v2516 = vunpack.c.l.s4 839922192
        %v2517 = vunpack.c.0.s8 %v2516
        %v2518 = vperm.slane %v2513, %v2517
        %2520 = vset.pattern.permute.xlu0 0
        %2521 = vperm.xlu0 %2520, %v997
        %v2522 = vpop.permute.xlu0 %2521
        %v2525 = vunpack.c.l.s4 839922192
        %v2526 = vunpack.c.0.s8 %v2525
        %v2527 = vperm.slane %v2522, %v2526
        %2529 = vset.pattern.permute.xlu0 0
        %2530 = vperm.xlu0 %2529, %v998
        %v2531 = vpop.permute.xlu0 %2530
        %v2534 = vunpack.c.l.s4 839922192
        %v2535 = vunpack.c.0.s8 %v2534
        %v2536 = vperm.slane %v2531, %v2535
        %2538 = vset.pattern.permute.xlu0 0
        %2539 = vperm.xlu0 %2538, %v999
        %v2540 = vpop.permute.xlu0 %2539
        %v2543 = vunpack.c.l.s4 839922192
        %v2544 = vunpack.c.0.s8 %v2543
        %v2545 = vperm.slane %v2540, %v2544
        %2547 = vset.pattern.permute.xlu0 0
        %2548 = vperm.xlu0 %2547, %v1000
        %v2549 = vpop.permute.xlu0 %2548
        %v2552 = vunpack.c.l.s4 839922192
        %v2553 = vunpack.c.0.s8 %v2552
        %v2554 = vperm.slane %v2549, %v2553
        %2556 = vset.pattern.permute.xlu0 0
        %2557 = vperm.xlu0 %2556, %v1001
        %v2558 = vpop.permute.xlu0 %2557
        %v2561 = vunpack.c.l.s4 839922192
        %v2562 = vunpack.c.0.s8 %v2561
        %v2563 = vperm.slane %v2558, %v2562
        %2565 = vset.pattern.permute.xlu0 0
        %2566 = vperm.xlu0 %2565, %v1002
        %v2567 = vpop.permute.xlu0 %2566
        %v2570 = vunpack.c.l.s4 839922192
        %v2571 = vunpack.c.0.s8 %v2570
        %v2572 = vperm.slane %v2567, %v2571
        %2574 = vset.pattern.permute.xlu0 0
        %2575 = vperm.xlu0 %2574, %v1003
        %v2576 = vpop.permute.xlu0 %2575
        %v2579 = vunpack.c.l.s4 839922192
        %v2580 = vunpack.c.0.s8 %v2579
        %v2581 = vperm.slane %v2576, %v2580
        %2583 = vset.pattern.permute.xlu0 0
        %2584 = vperm.xlu0 %2583, %v1004
        %v2585 = vpop.permute.xlu0 %2584
        %v2588 = vunpack.c.l.s4 839922192
        %v2589 = vunpack.c.0.s8 %v2588
        %v2590 = vperm.slane %v2585, %v2589
        %2592 = vset.pattern.permute.xlu0 0
        %2593 = vperm.xlu0 %2592, %v1005
        %v2594 = vpop.permute.xlu0 %2593
        %v2597 = vunpack.c.l.s4 839922192
        %v2598 = vunpack.c.0.s8 %v2597
        %v2599 = vperm.slane %v2594, %v2598
        %2601 = vset.pattern.permute.xlu0 0
        %2602 = vperm.xlu0 %2601, %v1006
        %v2603 = vpop.permute.xlu0 %2602
        %v2606 = vunpack.c.l.s4 839922192
        %v2607 = vunpack.c.0.s8 %v2606
        %v2608 = vperm.slane %v2603, %v2607
        %2610 = vset.pattern.permute.xlu0 0
        %2611 = vperm.xlu0 %2610, %v1007
        %v2612 = vpop.permute.xlu0 %2611
        %v2615 = vunpack.c.l.s4 839922192
        %v2616 = vunpack.c.0.s8 %v2615
        %v2617 = vperm.slane %v2612, %v2616
        %2619 = vset.pattern.permute.xlu0 0
        %2620 = vperm.xlu0 %2619, %v1008
        %v2621 = vpop.permute.xlu0 %2620
        %v2624 = vunpack.c.l.s4 839922192
        %v2625 = vunpack.c.0.s8 %v2624
        %v2626 = vperm.slane %v2621, %v2625
        %v2627 = vunpack.c.l.bf16 %v2306
        %v2628 = vunpack.c.l.bf16 %v2307
        %v2629 = vunpack.c.l.bf16 %v2308
        %v2630 = vunpack.c.l.bf16 %v2309
        %v2631 = vunpack.c.l.bf16 %v2310
        %v2632 = vunpack.c.l.bf16 %v2311
        %v2633 = vunpack.c.l.bf16 %v2312
        %v2634 = vunpack.c.l.bf16 %v2313
        %v2635 = vunpack.c.l.bf16 %v2314
        %v2636 = vunpack.c.l.bf16 %v2315
        %v2637 = vunpack.c.l.bf16 %v2316
        %v2638 = vunpack.c.l.bf16 %v2317
        %v2639 = vunpack.c.l.bf16 %v2318
        %v2640 = vunpack.c.l.bf16 %v2319
        %v2641 = vunpack.c.l.bf16 %v2320
        %v2642 = vunpack.c.l.bf16 %v2321
        %v2643 = vunpack.c.l.bf16 %v2322
        %v2644 = vunpack.c.l.bf16 %v2323
        %v2645 = vunpack.c.l.bf16 %v2324
        %v2646 = vunpack.c.l.bf16 %v2325
        %v2647 = vunpack.c.l.bf16 %v2326
        %v2648 = vunpack.c.l.bf16 %v2327
        %v2649 = vunpack.c.l.bf16 %v2328
        %v2650 = vunpack.c.l.bf16 %v2329
        %v2651 = vunpack.c.l.bf16 %v2330
        %v2652 = vunpack.c.l.bf16 %v2331
        %v2653 = vunpack.c.l.bf16 %v2332
        %v2654 = vunpack.c.l.bf16 %v2333
        %v2655 = vunpack.c.l.bf16 %v2334
        %v2656 = vunpack.c.l.bf16 %v2335
        %v2657 = vunpack.c.l.bf16 %v2336
        %v2658 = vunpack.c.l.bf16 %v2337
        %v2659 = vunpack.c.l.bf16 %v2338
        %v2660 = vunpack.c.l.bf16 %v2347
        %v2661 = vunpack.c.l.bf16 %v2356
        %v2662 = vunpack.c.l.bf16 %v2365
        %v2663 = vunpack.c.l.bf16 %v2374
        %v2664 = vunpack.c.l.bf16 %v2383
        %v2665 = vunpack.c.l.bf16 %v2392
        %v2666 = vunpack.c.l.bf16 %v2401
        %v2667 = vunpack.c.l.bf16 %v2410
        %v2668 = vunpack.c.l.bf16 %v2419
        %v2669 = vunpack.c.l.bf16 %v2428
        %v2670 = vunpack.c.l.bf16 %v2437
        %v2671 = vunpack.c.l.bf16 %v2446
        %v2672 = vunpack.c.l.bf16 %v2455
        %v2673 = vunpack.c.l.bf16 %v2464
        %v2674 = vunpack.c.l.bf16 %v2473
        %v2675 = vunpack.c.l.bf16 %v2482
        %v2676 = vunpack.c.l.bf16 %v2491
        %v2677 = vunpack.c.l.bf16 %v2500
        %v2678 = vunpack.c.l.bf16 %v2509
        %v2679 = vunpack.c.l.bf16 %v2518
        %v2680 = vunpack.c.l.bf16 %v2527
        %v2681 = vunpack.c.l.bf16 %v2536
        %v2682 = vunpack.c.l.bf16 %v2545
        %v2683 = vunpack.c.l.bf16 %v2554
        %v2684 = vunpack.c.l.bf16 %v2563
        %v2685 = vunpack.c.l.bf16 %v2572
        %v2686 = vunpack.c.l.bf16 %v2581
        %v2687 = vunpack.c.l.bf16 %v2590
        %v2688 = vunpack.c.l.bf16 %v2599
        %v2689 = vunpack.c.l.bf16 %v2608
        %v2690 = vunpack.c.l.bf16 %v2617
        %v2691 = vunpack.c.l.bf16 %v2626
        %vm2724 = vcmask 1040384
        %v2725 = vrot.slane %v2660, 7
        %v2726 = vrot.slane %v2661, 7
        %v2727 = vsel %vm2724, %v2725, %v2726
        %v2728 = vrot.slane %v2662, 7
        %v2729 = vsel %vm2724, %v2726, %v2728
        %v2730 = vrot.slane %v2663, 7
        %v2731 = vsel %vm2724, %v2728, %v2730
        %v2732 = vrot.slane %v2664, 7
        %v2733 = vsel %vm2724, %v2730, %v2732
        %v2734 = vrot.slane %v2665, 7
        %v2735 = vsel %vm2724, %v2732, %v2734
        %v2736 = vrot.slane %v2666, 7
        %v2737 = vsel %vm2724, %v2734, %v2736
        %v2738 = vrot.slane %v2667, 7
        %v2739 = vsel %vm2724, %v2736, %v2738
        %v2740 = vrot.slane %v2668, 7
        %v2741 = vsel %vm2724, %v2738, %v2740
        %v2742 = vrot.slane %v2669, 7
        %v2743 = vsel %vm2724, %v2740, %v2742
        %v2744 = vrot.slane %v2670, 7
        %v2745 = vsel %vm2724, %v2742, %v2744
        %v2746 = vrot.slane %v2671, 7
        %v2747 = vsel %vm2724, %v2744, %v2746
        %v2748 = vrot.slane %v2672, 7
        %v2749 = vsel %vm2724, %v2746, %v2748
        %v2750 = vrot.slane %v2673, 7
        %v2751 = vsel %vm2724, %v2748, %v2750
        %v2752 = vrot.slane %v2674, 7
        %v2753 = vsel %vm2724, %v2750, %v2752
        %v2754 = vrot.slane %v2675, 7
        %v2755 = vsel %vm2724, %v2752, %v2754
        %v2756 = vrot.slane %v2676, 7
        %v2757 = vsel %vm2724, %v2754, %v2756
        %v2758 = vrot.slane %v2677, 7
        %v2759 = vsel %vm2724, %v2756, %v2758
        %v2760 = vrot.slane %v2678, 7
        %v2761 = vsel %vm2724, %v2758, %v2760
        %v2762 = vrot.slane %v2679, 7
        %v2763 = vsel %vm2724, %v2760, %v2762
        %v2764 = vrot.slane %v2680, 7
        %v2765 = vsel %vm2724, %v2762, %v2764
        %v2766 = vrot.slane %v2681, 7
        %v2767 = vsel %vm2724, %v2764, %v2766
        %v2768 = vrot.slane %v2682, 7
        %v2769 = vsel %vm2724, %v2766, %v2768
        %v2770 = vrot.slane %v2683, 7
        %v2771 = vsel %vm2724, %v2768, %v2770
        %v2772 = vrot.slane %v2684, 7
        %v2773 = vsel %vm2724, %v2770, %v2772
        %v2774 = vrot.slane %v2685, 7
        %v2775 = vsel %vm2724, %v2772, %v2774
        %v2776 = vrot.slane %v2686, 7
        %v2777 = vsel %vm2724, %v2774, %v2776
        %v2778 = vrot.slane %v2687, 7
        %v2779 = vsel %vm2724, %v2776, %v2778
        %v2780 = vrot.slane %v2688, 7
        %v2781 = vsel %vm2724, %v2778, %v2780
        %v2782 = vrot.slane %v2689, 7
        %v2783 = vsel %vm2724, %v2780, %v2782
        %v2784 = vrot.slane %v2690, 7
        %v2785 = vsel %vm2724, %v2782, %v2784
        %v2786 = vrot.slane %v2691, 7
        %v2787 = vsel %vm2724, %v2784, %v2786
        %v2821 = vmul.f32 %v2627, %v2725
        %v2822 = vmul.f32 %v2628, %v2727
        %v2823 = vmul.f32 %v2629, %v2729
        %v2824 = vmul.f32 %v2630, %v2731
        %v2825 = vmul.f32 %v2631, %v2733
        %v2826 = vmul.f32 %v2632, %v2735
        %v2827 = vmul.f32 %v2633, %v2737
        %v2828 = vmul.f32 %v2634, %v2739
        %v2829 = vmul.f32 %v2635, %v2741
        %v2830 = vmul.f32 %v2636, %v2743
        %v2831 = vmul.f32 %v2637, %v2745
        %v2832 = vmul.f32 %v2638, %v2747
        %v2833 = vmul.f32 %v2639, %v2749
        %v2834 = vmul.f32 %v2640, %v2751
        %v2835 = vmul.f32 %v2641, %v2753
        %v2836 = vmul.f32 %v2642, %v2755
        %v2837 = vmul.f32 %v2643, %v2757
        %v2838 = vmul.f32 %v2644, %v2759
        %v2839 = vmul.f32 %v2645, %v2761
        %v2840 = vmul.f32 %v2646, %v2763
        %v2841 = vmul.f32 %v2647, %v2765
        %v2842 = vmul.f32 %v2648, %v2767
        %v2843 = vmul.f32 %v2649, %v2769
        %v2844 = vmul.f32 %v2650, %v2771
        %v2845 = vmul.f32 %v2651, %v2773
        %v2846 = vmul.f32 %v2652, %v2775
        %v2847 = vmul.f32 %v2653, %v2777
        %v2848 = vmul.f32 %v2654, %v2779
        %v2849 = vmul.f32 %v2655, %v2781
        %v2850 = vmul.f32 %v2656, %v2783
        %v2851 = vmul.f32 %v2657, %v2785
        %v2852 = vmul.f32 %v2658, %v2787
        %v2853 = vmul.f32 %v2659, %v2786
        %v2854 = vpack.c.bf16 %v2822, %v2821
        %v2855 = vpack.c.bf16 %v2824, %v2823
        %v2856 = vpack.c.bf16 %v2826, %v2825
        %v2857 = vpack.c.bf16 %v2828, %v2827
        %v2858 = vpack.c.bf16 %v2830, %v2829
        %v2859 = vpack.c.bf16 %v2832, %v2831
        %v2860 = vpack.c.bf16 %v2834, %v2833
        %v2861 = vpack.c.bf16 %v2836, %v2835
        %v2862 = vpack.c.bf16 %v2838, %v2837
        %v2863 = vpack.c.bf16 %v2840, %v2839
        %v2864 = vpack.c.bf16 %v2842, %v2841
        %v2865 = vpack.c.bf16 %v2844, %v2843
        %v2866 = vpack.c.bf16 %v2846, %v2845
        %v2867 = vpack.c.bf16 %v2848, %v2847
        %v2868 = vpack.c.bf16 %v2850, %v2849
        %v2869 = vpack.c.bf16 %v2852, %v2851
        %v2870 = vpack.c.bf16 %v2853, %v2853
        %s2871 = scalar_lea.vmem [#allocation7], 128
        %v2872 = vld [vmem:[%s2871] sm:$0xf]
        %v2873 = vld [vmem:[%s2871 + $0x4] sm:$0xf]
        %v2874 = vld [vmem:[%s2871 + $0x8] sm:$0xf]
        %v2875 = vld [vmem:[%s2871 + $0xc] sm:$0xf]
        %v2876 = vld [vmem:[%s2871 + $0x10] sm:$0xf]
        %v2877 = vld [vmem:[%s2871 + $0x14] sm:$0xf]
        %v2878 = vld [vmem:[%s2871 + $0x18] sm:$0xf]
        %v2879 = vld [vmem:[%s2871 + $0x1c] sm:$0xf]
        %v2880 = vld [vmem:[%s2871 + $0x20] sm:$0xf]
        %v2881 = vld [vmem:[%s2871 + $0x24] sm:$0xf]
        %v2882 = vld [vmem:[%s2871 + $0x28] sm:$0xf]
        %v2883 = vld [vmem:[%s2871 + $0x2c] sm:$0xf]
        %v2884 = vld [vmem:[%s2871 + $0x30] sm:$0xf]
        %v2885 = vld [vmem:[%s2871 + $0x34] sm:$0xf]
        %v2886 = vld [vmem:[%s2871 + $0x38] sm:$0xf]
        %v2887 = vld [vmem:[%s2871 + $0x3c] sm:$0xf]
        %vm2888 = vsmask.f32 7424
        %v2890 = vshrl.u32 %v2854, 16
        %v2892 = vshll.u32 %v2854, 16
        %v2894 = vrot.slane %v2892, 1
        %v2895 = vor.u32 %v2890, %v2894
        %v2897 = vshll.u32 %v2855, 16
        %v2899 = vrot.slane %v2897, 1
        %v2900 = vsel %vm2888, %v2895, %v2899
        %v2901 = vshrl.u32 %v2855, 16
        %v2903 = vor.u32 %v2901, %v2899
        %v2905 = vshll.u32 %v2856, 16
        %v2907 = vrot.slane %v2905, 1
        %v2908 = vsel %vm2888, %v2903, %v2907
        %v2909 = vshrl.u32 %v2856, 16
        %v2911 = vor.u32 %v2909, %v2907
        %v2913 = vshll.u32 %v2857, 16
        %v2915 = vrot.slane %v2913, 1
        %v2916 = vsel %vm2888, %v2911, %v2915
        %v2917 = vshrl.u32 %v2857, 16
        %v2919 = vor.u32 %v2917, %v2915
        %v2921 = vshll.u32 %v2858, 16
        %v2923 = vrot.slane %v2921, 1
        %v2924 = vsel %vm2888, %v2919, %v2923
        %v2925 = vshrl.u32 %v2858, 16
        %v2927 = vor.u32 %v2925, %v2923
        %v2929 = vshll.u32 %v2859, 16
        %v2931 = vrot.slane %v2929, 1
        %v2932 = vsel %vm2888, %v2927, %v2931
        %v2933 = vshrl.u32 %v2859, 16
        %v2935 = vor.u32 %v2933, %v2931
        %v2937 = vshll.u32 %v2860, 16
        %v2939 = vrot.slane %v2937, 1
        %v2940 = vsel %vm2888, %v2935, %v2939
        %v2941 = vshrl.u32 %v2860, 16
        %v2943 = vor.u32 %v2941, %v2939
        %v2945 = vshll.u32 %v2861, 16
        %v2947 = vrot.slane %v2945, 1
        %v2948 = vsel %vm2888, %v2943, %v2947
        %v2949 = vshrl.u32 %v2861, 16
        %v2951 = vor.u32 %v2949, %v2947
        %v2953 = vshll.u32 %v2862, 16
        %v2955 = vrot.slane %v2953, 1
        %v2956 = vsel %vm2888, %v2951, %v2955
        %v2957 = vshrl.u32 %v2862, 16
        %v2959 = vor.u32 %v2957, %v2955
        %v2961 = vshll.u32 %v2863, 16
        %v2963 = vrot.slane %v2961, 1
        %v2964 = vsel %vm2888, %v2959, %v2963
        %v2965 = vshrl.u32 %v2863, 16
        %v2967 = vor.u32 %v2965, %v2963
        %v2969 = vshll.u32 %v2864, 16
        %v2971 = vrot.slane %v2969, 1
        %v2972 = vsel %vm2888, %v2967, %v2971
        %v2973 = vshrl.u32 %v2864, 16
        %v2975 = vor.u32 %v2973, %v2971
        %v2977 = vshll.u32 %v2865, 16
        %v2979 = vrot.slane %v2977, 1
        %v2980 = vsel %vm2888, %v2975, %v2979
        %v2981 = vshrl.u32 %v2865, 16
        %v2983 = vor.u32 %v2981, %v2979
        %v2985 = vshll.u32 %v2866, 16
        %v2987 = vrot.slane %v2985, 1
        %v2988 = vsel %vm2888, %v2983, %v2987
        %v2989 = vshrl.u32 %v2866, 16
        %v2991 = vor.u32 %v2989, %v2987
        %v2993 = vshll.u32 %v2867, 16
        %v2995 = vrot.slane %v2993, 1
        %v2996 = vsel %vm2888, %v2991, %v2995
        %v2997 = vshrl.u32 %v2867, 16
        %v2999 = vor.u32 %v2997, %v2995
        %v3001 = vshll.u32 %v2868, 16
        %v3003 = vrot.slane %v3001, 1
        %v3004 = vsel %vm2888, %v2999, %v3003
        %v3005 = vshrl.u32 %v2868, 16
        %v3007 = vor.u32 %v3005, %v3003
        %v3009 = vshll.u32 %v2869, 16
        %v3011 = vrot.slane %v3009, 1
        %v3012 = vsel %vm2888, %v3007, %v3011
        %v3013 = vshrl.u32 %v2869, 16
        %v3015 = vor.u32 %v3013, %v3011
        %v3017 = vshll.u32 %v2870, 16
        %v3019 = vrot.slane %v3017, 1
        %v3020 = vsel %vm2888, %v3015, %v3019
        %v3053 = vunpack.c.l.b16 %v2872
        %v3054 = vunpack.c.l.b16 %v2873
        %v3055 = vunpack.c.l.b16 %v2874
        %v3056 = vunpack.c.l.b16 %v2875
        %v3057 = vunpack.c.l.b16 %v2876
        %v3058 = vunpack.c.l.b16 %v2877
        %v3059 = vunpack.c.l.b16 %v2878
        %v3060 = vunpack.c.l.b16 %v2879
        %v3061 = vunpack.c.l.b16 %v2880
        %v3062 = vunpack.c.l.b16 %v2881
        %v3063 = vunpack.c.l.b16 %v2882
        %v3064 = vunpack.c.l.b16 %v2883
        %v3065 = vunpack.c.l.b16 %v2884
        %v3066 = vunpack.c.l.b16 %v2885
        %v3067 = vunpack.c.l.b16 %v2886
        %v3068 = vunpack.c.l.b16 %v2887
        %v3069 = vpack.c.b16 %v3054, %v3053
        %v3070 = vpack.c.b16 %v3056, %v3055
        %v3071 = vpack.c.b16 %v3058, %v3057
        %v3072 = vpack.c.b16 %v3060, %v3059
        %v3073 = vpack.c.b16 %v3062, %v3061
        %v3074 = vpack.c.b16 %v3064, %v3063
        %v3075 = vpack.c.b16 %v3066, %v3065
        %v3076 = vpack.c.b16 %v3068, %v3067
        %3085 = vmatpush.bf16.msra.mxu0 %v3076
        %3086 = vmatpush.bf16.msra.mxu0 %v3075
        %3087 = vmatpush.bf16.msra.mxu0 %v3074
        %3088 = vmatpush.bf16.msra.mxu0 %v3073
        %3089 = vmatpush.bf16.msra.mxu0 %v3072
        %3090 = vmatpush.bf16.msra.mxu0 %v3071
        %3091 = vmatpush.bf16.msra.mxu0 %v3070
        %3092 = vmatpush.bf16.msra.mxu0 %v3069
        %3093 = vmatmul.bf16.gmra.mxu0 %v2900
        %v3094 = vpop.f32.mrf.mxu0
        %v3095 = vadd.f32 0.0, %v3094
        %v3096 = vpop.f32.mrf.mxu0
        %v3097 = vadd.f32 0.0, %v3096
        %3098 = vmatmul.bf16.gmra.mxu0 %v2908
        %v3099 = vpop.f32.mrf.mxu0
        %v3100 = vadd.f32 0.0, %v3099
        %v3101 = vpop.f32.mrf.mxu0
        %v3102 = vadd.f32 0.0, %v3101
        %3103 = vmatmul.bf16.gmra.mxu0 %v2916
        %v3104 = vpop.f32.mrf.mxu0
        %v3105 = vadd.f32 0.0, %v3104
        %v3106 = vpop.f32.mrf.mxu0
        %v3107 = vadd.f32 0.0, %v3106
        %3108 = vmatmul.bf16.gmra.mxu0 %v2924
        %v3109 = vpop.f32.mrf.mxu0
        %v3110 = vadd.f32 0.0, %v3109
        %v3111 = vpop.f32.mrf.mxu0
        %v3112 = vadd.f32 0.0, %v3111
        %3113 = vmatmul.bf16.gmra.mxu0 %v2932
        %v3114 = vpop.f32.mrf.mxu0
        %v3115 = vadd.f32 0.0, %v3114
        %v3116 = vpop.f32.mrf.mxu0
        %v3117 = vadd.f32 0.0, %v3116
        %3118 = vmatmul.bf16.gmra.mxu0 %v2940
        %v3119 = vpop.f32.mrf.mxu0
        %v3120 = vadd.f32 0.0, %v3119
        %v3121 = vpop.f32.mrf.mxu0
        %v3122 = vadd.f32 0.0, %v3121
        %3123 = vmatmul.bf16.gmra.mxu0 %v2948
        %v3124 = vpop.f32.mrf.mxu0
        %v3125 = vadd.f32 0.0, %v3124
        %v3126 = vpop.f32.mrf.mxu0
        %v3127 = vadd.f32 0.0, %v3126
        %3128 = vmatmul.bf16.gmra.mxu0 %v2956
        %v3129 = vpop.f32.mrf.mxu0
        %v3130 = vadd.f32 0.0, %v3129
        %v3131 = vpop.f32.mrf.mxu0
        %v3132 = vadd.f32 0.0, %v3131
        %3133 = vmatmul.bf16.gmra.mxu0 %v2964
        %v3134 = vpop.f32.mrf.mxu0
        %v3135 = vadd.f32 0.0, %v3134
        %v3136 = vpop.f32.mrf.mxu0
        %v3137 = vadd.f32 0.0, %v3136
        %3138 = vmatmul.bf16.gmra.mxu0 %v2972
        %v3139 = vpop.f32.mrf.mxu0
        %v3140 = vadd.f32 0.0, %v3139
        %v3141 = vpop.f32.mrf.mxu0
        %v3142 = vadd.f32 0.0, %v3141
        %3143 = vmatmul.bf16.gmra.mxu0 %v2980
        %v3144 = vpop.f32.mrf.mxu0
        %v3145 = vadd.f32 0.0, %v3144
        %v3146 = vpop.f32.mrf.mxu0
        %v3147 = vadd.f32 0.0, %v3146
        %3148 = vmatmul.bf16.gmra.mxu0 %v2988
        %v3149 = vpop.f32.mrf.mxu0
        %v3150 = vadd.f32 0.0, %v3149
        %v3151 = vpop.f32.mrf.mxu0
        %v3152 = vadd.f32 0.0, %v3151
        %3153 = vmatmul.bf16.gmra.mxu0 %v2996
        %v3154 = vpop.f32.mrf.mxu0
        %v3155 = vadd.f32 0.0, %v3154
        %v3156 = vpop.f32.mrf.mxu0
        %v3157 = vadd.f32 0.0, %v3156
        %3158 = vmatmul.bf16.gmra.mxu0 %v3004
        %v3159 = vpop.f32.mrf.mxu0
        %v3160 = vadd.f32 0.0, %v3159
        %v3161 = vpop.f32.mrf.mxu0
        %v3162 = vadd.f32 0.0, %v3161
        %3163 = vmatmul.bf16.gmra.mxu0 %v3012
        %v3164 = vpop.f32.mrf.mxu0
        %v3165 = vadd.f32 0.0, %v3164
        %v3166 = vpop.f32.mrf.mxu0
        %v3167 = vadd.f32 0.0, %v3166
        %3168 = vmatmul.bf16.gmra.mxu0 %v3020
        %v3169 = vpop.f32.mrf.mxu0
        %v3170 = vadd.f32 0.0, %v3169
        %v3171 = vpop.f32.mrf.mxu0
        %v3172 = vadd.f32 0.0, %v3171
        %3173 = vdwg.mxu0
        %v3174 = vld [vmem:[#allocation3] sm:$0xff]
        %v3175 = vld [vmem:[#allocation3 + $0x8] sm:$0xff]
        %v3176 = vld [vmem:[#allocation3 + $0x10] sm:$0xff]
        %v3177 = vld [vmem:[#allocation3 + $0x18] sm:$0xff]
        %v3178 = vld [vmem:[#allocation3 + $0x20] sm:$0xff]
        %v3179 = vld [vmem:[#allocation3 + $0x28] sm:$0xff]
        %v3180 = vld [vmem:[#allocation3 + $0x30] sm:$0xff]
        %v3181 = vld [vmem:[#allocation3 + $0x38] sm:$0xff]
        %v3182 = vld [vmem:[#allocation3 + $0x40] sm:$0xff]
        %v3183 = vld [vmem:[#allocation3 + $0x48] sm:$0xff]
        %v3184 = vld [vmem:[#allocation3 + $0x50] sm:$0xff]
        %v3185 = vld [vmem:[#allocation3 + $0x58] sm:$0xff]
        %v3186 = vld [vmem:[#allocation3 + $0x60] sm:$0xff]
        %v3187 = vld [vmem:[#allocation3 + $0x68] sm:$0xff]
        %v3188 = vld [vmem:[#allocation3 + $0x70] sm:$0xff]
        %v3189 = vld [vmem:[#allocation3 + $0x78] sm:$0xff]
        %v3190 = vld [vmem:[#allocation3 + $0x80] sm:$0xff]
        %v3191 = vld [vmem:[#allocation3 + $0x88] sm:$0xff]
        %v3192 = vld [vmem:[#allocation3 + $0x90] sm:$0xff]
        %v3193 = vld [vmem:[#allocation3 + $0x98] sm:$0xff]
        %v3194 = vld [vmem:[#allocation3 + $0xa0] sm:$0xff]
        %v3195 = vld [vmem:[#allocation3 + $0xa8] sm:$0xff]
        %v3196 = vld [vmem:[#allocation3 + $0xb0] sm:$0xff]
        %v3197 = vld [vmem:[#allocation3 + $0xb8] sm:$0xff]
        %v3198 = vld [vmem:[#allocation3 + $0xc0] sm:$0xff]
        %v3199 = vld [vmem:[#allocation3 + $0xc8] sm:$0xff]
        %v3200 = vld [vmem:[#allocation3 + $0xd0] sm:$0xff]
        %v3201 = vld [vmem:[#allocation3 + $0xd8] sm:$0xff]
        %v3202 = vld [vmem:[#allocation3 + $0xe0] sm:$0xff]
        %v3203 = vld [vmem:[#allocation3 + $0xe8] sm:$0xff]
        %v3204 = vld [vmem:[#allocation3 + $0xf0] sm:$0xff]
        %v3205 = vld [vmem:[#allocation3 + $0xf8] sm:$0xff]
        %v3206 = vadd.f32 %v3174, %v3095
        %v3207 = vadd.f32 %v3175, %v3097
        %v3208 = vadd.f32 %v3176, %v3100
        %v3209 = vadd.f32 %v3177, %v3102
        %v3210 = vadd.f32 %v3178, %v3105
        %v3211 = vadd.f32 %v3179, %v3107
        %v3212 = vadd.f32 %v3180, %v3110
        %v3213 = vadd.f32 %v3181, %v3112
        %v3214 = vadd.f32 %v3182, %v3115
        %v3215 = vadd.f32 %v3183, %v3117
        %v3216 = vadd.f32 %v3184, %v3120
        %v3217 = vadd.f32 %v3185, %v3122
        %v3218 = vadd.f32 %v3186, %v3125
        %v3219 = vadd.f32 %v3187, %v3127
        %v3220 = vadd.f32 %v3188, %v3130
        %v3221 = vadd.f32 %v3189, %v3132
        %v3222 = vadd.f32 %v3190, %v3135
        %v3223 = vadd.f32 %v3191, %v3137
        %v3224 = vadd.f32 %v3192, %v3140
        %v3225 = vadd.f32 %v3193, %v3142
        %v3226 = vadd.f32 %v3194, %v3145
        %v3227 = vadd.f32 %v3195, %v3147
        %v3228 = vadd.f32 %v3196, %v3150
        %v3229 = vadd.f32 %v3197, %v3152
        %v3230 = vadd.f32 %v3198, %v3155
        %v3231 = vadd.f32 %v3199, %v3157
        %v3232 = vadd.f32 %v3200, %v3160
        %v3233 = vadd.f32 %v3201, %v3162
        %v3234 = vadd.f32 %v3202, %v3165
        %v3235 = vadd.f32 %v3203, %v3167
        %v3236 = vadd.f32 %v3204, %v3170
        %v3237 = vadd.f32 %v3205, %v3172
        %3238 = vst [vmem:[#allocation3] sm:$0xff] %v3206
        %3239 = vst [vmem:[#allocation3 + $0x8] sm:$0xff] %v3207
        %3240 = vst [vmem:[#allocation3 + $0x10] sm:$0xff] %v3208
        %3241 = vst [vmem:[#allocation3 + $0x18] sm:$0xff] %v3209
        %3242 = vst [vmem:[#allocation3 + $0x20] sm:$0xff] %v3210
        %3243 = vst [vmem:[#allocation3 + $0x28] sm:$0xff] %v3211
        %3244 = vst [vmem:[#allocation3 + $0x30] sm:$0xff] %v3212
        %3245 = vst [vmem:[#allocation3 + $0x38] sm:$0xff] %v3213
        %3246 = vst [vmem:[#allocation3 + $0x40] sm:$0xff] %v3214
        %3247 = vst [vmem:[#allocation3 + $0x48] sm:$0xff] %v3215
        %3248 = vst [vmem:[#allocation3 + $0x50] sm:$0xff] %v3216
        %3249 = vst [vmem:[#allocation3 + $0x58] sm:$0xff] %v3217
        %3250 = vst [vmem:[#allocation3 + $0x60] sm:$0xff] %v3218
        %3251 = vst [vmem:[#allocation3 + $0x68] sm:$0xff] %v3219
        %3252 = vst [vmem:[#allocation3 + $0x70] sm:$0xff] %v3220
        %3253 = vst [vmem:[#allocation3 + $0x78] sm:$0xff] %v3221
        %3254 = vst [vmem:[#allocation3 + $0x80] sm:$0xff] %v3222
        %3255 = vst [vmem:[#allocation3 + $0x88] sm:$0xff] %v3223
        %3256 = vst [vmem:[#allocation3 + $0x90] sm:$0xff] %v3224
        %3257 = vst [vmem:[#allocation3 + $0x98] sm:$0xff] %v3225
        %3258 = vst [vmem:[#allocation3 + $0xa0] sm:$0xff] %v3226
        %3259 = vst [vmem:[#allocation3 + $0xa8] sm:$0xff] %v3227
        %3260 = vst [vmem:[#allocation3 + $0xb0] sm:$0xff] %v3228
        %3261 = vst [vmem:[#allocation3 + $0xb8] sm:$0xff] %v3229
        %3262 = vst [vmem:[#allocation3 + $0xc0] sm:$0xff] %v3230
        %3263 = vst [vmem:[#allocation3 + $0xc8] sm:$0xff] %v3231
        %3264 = vst [vmem:[#allocation3 + $0xd0] sm:$0xff] %v3232
        %3265 = vst [vmem:[#allocation3 + $0xd8] sm:$0xff] %v3233
        %3266 = vst [vmem:[#allocation3 + $0xe0] sm:$0xff] %v3234
        %3267 = vst [vmem:[#allocation3 + $0xe8] sm:$0xff] %v3235
        %3268 = vst [vmem:[#allocation3 + $0xf0] sm:$0xff] %v3236
        %3269 = vst [vmem:[#allocation3 + $0xf8] sm:$0xff] %v3237
        %v3270 = vld [vmem:[#allocation2 + $0x8] sm:$0x8]
        %v3271 = vld [vmem:[#allocation2 + $0xc] sm:$0xf]
        %v3272 = vld [vmem:[#allocation2 + $0x10] sm:$0xf]
        %v3273 = vld [vmem:[#allocation2 + $0x14] sm:$0xf]
        %v3274 = vld [vmem:[#allocation2 + $0x18] sm:$0xf]
        %v3275 = vld [vmem:[#allocation2 + $0x1c] sm:$0xf]
        %v3276 = vld [vmem:[#allocation2 + $0x20] sm:$0xf]
        %v3277 = vld [vmem:[#allocation2 + $0x24] sm:$0xf]
        %v3278 = vld [vmem:[#allocation2 + $0x28] sm:$0xf]
        %v3279 = vld [vmem:[#allocation2 + $0x2c] sm:$0xf]
        %v3280 = vld [vmem:[#allocation2 + $0x30] sm:$0xf]
        %v3281 = vld [vmem:[#allocation2 + $0x34] sm:$0xf]
        %v3282 = vld [vmem:[#allocation2 + $0x38] sm:$0xf]
        %v3283 = vld [vmem:[#allocation2 + $0x3c] sm:$0xf]
        %v3284 = vld [vmem:[#allocation2 + $0x40] sm:$0xf]
        %v3285 = vld [vmem:[#allocation2 + $0x44] sm:$0xf]
        %v3286 = vld [vmem:[#allocation2 + $0x48] sm:$0xf]
        %v3287 = vld [vmem:[#allocation2 + $0x4c] sm:$0xf]
        %v3288 = vld [vmem:[#allocation2 + $0x50] sm:$0xf]
        %v3289 = vld [vmem:[#allocation2 + $0x54] sm:$0xf]
        %v3290 = vld [vmem:[#allocation2 + $0x58] sm:$0xf]
        %v3291 = vld [vmem:[#allocation2 + $0x5c] sm:$0xf]
        %v3292 = vld [vmem:[#allocation2 + $0x60] sm:$0xf]
        %v3293 = vld [vmem:[#allocation2 + $0x64] sm:$0xf]
        %v3294 = vld [vmem:[#allocation2 + $0x68] sm:$0xf]
        %v3295 = vld [vmem:[#allocation2 + $0x6c] sm:$0xf]
        %v3296 = vld [vmem:[#allocation2 + $0x70] sm:$0xf]
        %v3297 = vld [vmem:[#allocation2 + $0x74] sm:$0xf]
        %v3298 = vld [vmem:[#allocation2 + $0x78] sm:$0xf]
        %v3299 = vld [vmem:[#allocation2 + $0x7c] sm:$0xf]
        %v3300 = vld [vmem:[#allocation2 + $0x80] sm:$0xf]
        %v3301 = vld [vmem:[#allocation2 + $0x84] sm:$0xf]
        %v3302 = vld [vmem:[#allocation2 + $0x88] sm:$0xf]
        %v3303 = vunpack.c.l.bf16 %v3270
        %v3304 = vunpack.c.l.bf16 %v3271
        %v3305 = vunpack.c.l.bf16 %v3272
        %v3306 = vunpack.c.l.bf16 %v3273
        %v3307 = vunpack.c.l.bf16 %v3274
        %v3308 = vunpack.c.l.bf16 %v3275
        %v3309 = vunpack.c.l.bf16 %v3276
        %v3310 = vunpack.c.l.bf16 %v3277
        %v3311 = vunpack.c.l.bf16 %v3278
        %v3312 = vunpack.c.l.bf16 %v3279
        %v3313 = vunpack.c.l.bf16 %v3280
        %v3314 = vunpack.c.l.bf16 %v3281
        %v3315 = vunpack.c.l.bf16 %v3282
        %v3316 = vunpack.c.l.bf16 %v3283
        %v3317 = vunpack.c.l.bf16 %v3284
        %v3318 = vunpack.c.l.bf16 %v3285
        %v3319 = vunpack.c.l.bf16 %v3286
        %v3320 = vunpack.c.l.bf16 %v3287
        %v3321 = vunpack.c.l.bf16 %v3288
        %v3322 = vunpack.c.l.bf16 %v3289
        %v3323 = vunpack.c.l.bf16 %v3290
        %v3324 = vunpack.c.l.bf16 %v3291
        %v3325 = vunpack.c.l.bf16 %v3292
        %v3326 = vunpack.c.l.bf16 %v3293
        %v3327 = vunpack.c.l.bf16 %v3294
        %v3328 = vunpack.c.l.bf16 %v3295
        %v3329 = vunpack.c.l.bf16 %v3296
        %v3330 = vunpack.c.l.bf16 %v3297
        %v3331 = vunpack.c.l.bf16 %v3298
        %v3332 = vunpack.c.l.bf16 %v3299
        %v3333 = vunpack.c.l.bf16 %v3300
        %v3334 = vunpack.c.l.bf16 %v3301
        %v3335 = vunpack.c.l.bf16 %v3302
        %v3336 = vmul.f32 %v3303, %v1428
        %v3337 = vmul.f32 %v3304, %v1430
        %v3338 = vmul.f32 %v3305, %v1432
        %v3339 = vmul.f32 %v3306, %v1434
        %v3340 = vmul.f32 %v3307, %v1436
        %v3341 = vmul.f32 %v3308, %v1438
        %v3342 = vmul.f32 %v3309, %v1440
        %v3343 = vmul.f32 %v3310, %v1442
        %v3344 = vmul.f32 %v3311, %v1444
        %v3345 = vmul.f32 %v3312, %v1446
        %v3346 = vmul.f32 %v3313, %v1448
        %v3347 = vmul.f32 %v3314, %v1450
        %v3348 = vmul.f32 %v3315, %v1452
        %v3349 = vmul.f32 %v3316, %v1454
        %v3350 = vmul.f32 %v3317, %v1456
        %v3351 = vmul.f32 %v3318, %v1458
        %v3352 = vmul.f32 %v3319, %v1460
        %v3353 = vmul.f32 %v3320, %v1462
        %v3354 = vmul.f32 %v3321, %v1464
        %v3355 = vmul.f32 %v3322, %v1466
        %v3356 = vmul.f32 %v3323, %v1468
        %v3357 = vmul.f32 %v3324, %v1470
        %v3358 = vmul.f32 %v3325, %v1472
        %v3359 = vmul.f32 %v3326, %v1474
        %v3360 = vmul.f32 %v3327, %v1476
        %v3361 = vmul.f32 %v3328, %v1478
        %v3362 = vmul.f32 %v3329, %v1480
        %v3363 = vmul.f32 %v3330, %v1482
        %v3364 = vmul.f32 %v3331, %v1484
        %v3365 = vmul.f32 %v3332, %v1486
        %v3366 = vmul.f32 %v3333, %v1488
        %v3367 = vmul.f32 %v3334, %v1490
        %v3368 = vmul.f32 %v3335, %v1489
        %v3369 = vpack.c.bf16 %v3337, %v3336
        %v3370 = vpack.c.bf16 %v3339, %v3338
        %v3371 = vpack.c.bf16 %v3341, %v3340
        %v3372 = vpack.c.bf16 %v3343, %v3342
        %v3373 = vpack.c.bf16 %v3345, %v3344
        %v3374 = vpack.c.bf16 %v3347, %v3346
        %v3375 = vpack.c.bf16 %v3349, %v3348
        %v3376 = vpack.c.bf16 %v3351, %v3350
        %v3377 = vpack.c.bf16 %v3353, %v3352
        %v3378 = vpack.c.bf16 %v3355, %v3354
        %v3379 = vpack.c.bf16 %v3357, %v3356
        %v3380 = vpack.c.bf16 %v3359, %v3358
        %v3381 = vpack.c.bf16 %v3361, %v3360
        %v3382 = vpack.c.bf16 %v3363, %v3362
        %v3383 = vpack.c.bf16 %v3365, %v3364
        %v3384 = vpack.c.bf16 %v3367, %v3366
        %v3385 = vpack.c.bf16 %v3368, %v3368
        %s3386 = scalar_lea.vmem [#allocation7], 192
        %v3387 = vld [vmem:[%s3386] sm:$0xf]
        %v3388 = vld [vmem:[%s3386 + $0x4] sm:$0xf]
        %v3389 = vld [vmem:[%s3386 + $0x8] sm:$0xf]
        %v3390 = vld [vmem:[%s3386 + $0xc] sm:$0xf]
        %v3391 = vld [vmem:[%s3386 + $0x10] sm:$0xf]
        %v3392 = vld [vmem:[%s3386 + $0x14] sm:$0xf]
        %v3393 = vld [vmem:[%s3386 + $0x18] sm:$0xf]
        %v3394 = vld [vmem:[%s3386 + $0x1c] sm:$0xf]
        %v3395 = vld [vmem:[%s3386 + $0x20] sm:$0xf]
        %v3396 = vld [vmem:[%s3386 + $0x24] sm:$0xf]
        %v3397 = vld [vmem:[%s3386 + $0x28] sm:$0xf]
        %v3398 = vld [vmem:[%s3386 + $0x2c] sm:$0xf]
        %v3399 = vld [vmem:[%s3386 + $0x30] sm:$0xf]
        %v3400 = vld [vmem:[%s3386 + $0x34] sm:$0xf]
        %v3401 = vld [vmem:[%s3386 + $0x38] sm:$0xf]
        %v3402 = vld [vmem:[%s3386 + $0x3c] sm:$0xf]
        %v3404 = vshrl.u32 %v3369, 16
        %v3406 = vrot.slane %v3404, 3
        %v3407 = vshll.u32 %v3369, 16
        %v3409 = vrot.slane %v3407, 4
        %v3410 = vor.u32 %v3406, %v3409
        %v3412 = vshrl.u32 %v3370, 16
        %v3414 = vrot.slane %v3412, 3
        %v3415 = vshll.u32 %v3370, 16
        %v3417 = vrot.slane %v3415, 4
        %v3418 = vor.u32 %v3414, %v3417
        %v3419 = vsel %vm1590, %v3410, %v3418
        %v3421 = vshrl.u32 %v3371, 16
        %v3423 = vrot.slane %v3421, 3
        %v3424 = vshll.u32 %v3371, 16
        %v3426 = vrot.slane %v3424, 4
        %v3427 = vor.u32 %v3423, %v3426
        %v3428 = vsel %vm1590, %v3418, %v3427
        %v3430 = vshrl.u32 %v3372, 16
        %v3432 = vrot.slane %v3430, 3
        %v3433 = vshll.u32 %v3372, 16
        %v3435 = vrot.slane %v3433, 4
        %v3436 = vor.u32 %v3432, %v3435
        %v3437 = vsel %vm1590, %v3427, %v3436
        %v3439 = vshrl.u32 %v3373, 16
        %v3441 = vrot.slane %v3439, 3
        %v3442 = vshll.u32 %v3373, 16
        %v3444 = vrot.slane %v3442, 4
        %v3445 = vor.u32 %v3441, %v3444
        %v3446 = vsel %vm1590, %v3436, %v3445
        %v3448 = vshrl.u32 %v3374, 16
        %v3450 = vrot.slane %v3448, 3
        %v3451 = vshll.u32 %v3374, 16
        %v3453 = vrot.slane %v3451, 4
        %v3454 = vor.u32 %v3450, %v3453
        %v3455 = vsel %vm1590, %v3445, %v3454
        %v3457 = vshrl.u32 %v3375, 16
        %v3459 = vrot.slane %v3457, 3
        %v3460 = vshll.u32 %v3375, 16
        %v3462 = vrot.slane %v3460, 4
        %v3463 = vor.u32 %v3459, %v3462
        %v3464 = vsel %vm1590, %v3454, %v3463
        %v3466 = vshrl.u32 %v3376, 16
        %v3468 = vrot.slane %v3466, 3
        %v3469 = vshll.u32 %v3376, 16
        %v3471 = vrot.slane %v3469, 4
        %v3472 = vor.u32 %v3468, %v3471
        %v3473 = vsel %vm1590, %v3463, %v3472
        %v3475 = vshrl.u32 %v3377, 16
        %v3477 = vrot.slane %v3475, 3
        %v3478 = vshll.u32 %v3377, 16
        %v3480 = vrot.slane %v3478, 4
        %v3481 = vor.u32 %v3477, %v3480
        %v3482 = vsel %vm1590, %v3472, %v3481
        %v3484 = vshrl.u32 %v3378, 16
        %v3486 = vrot.slane %v3484, 3
        %v3487 = vshll.u32 %v3378, 16
        %v3489 = vrot.slane %v3487, 4
        %v3490 = vor.u32 %v3486, %v3489
        %v3491 = vsel %vm1590, %v3481, %v3490
        %v3493 = vshrl.u32 %v3379, 16
        %v3495 = vrot.slane %v3493, 3
        %v3496 = vshll.u32 %v3379, 16
        %v3498 = vrot.slane %v3496, 4
        %v3499 = vor.u32 %v3495, %v3498
        %v3500 = vsel %vm1590, %v3490, %v3499
        %v3502 = vshrl.u32 %v3380, 16
        %v3504 = vrot.slane %v3502, 3
        %v3505 = vshll.u32 %v3380, 16
        %v3507 = vrot.slane %v3505, 4
        %v3508 = vor.u32 %v3504, %v3507
        %v3509 = vsel %vm1590, %v3499, %v3508
        %v3511 = vshrl.u32 %v3381, 16
        %v3513 = vrot.slane %v3511, 3
        %v3514 = vshll.u32 %v3381, 16
        %v3516 = vrot.slane %v3514, 4
        %v3517 = vor.u32 %v3513, %v3516
        %v3518 = vsel %vm1590, %v3508, %v3517
        %v3520 = vshrl.u32 %v3382, 16
        %v3522 = vrot.slane %v3520, 3
        %v3523 = vshll.u32 %v3382, 16
        %v3525 = vrot.slane %v3523, 4
        %v3526 = vor.u32 %v3522, %v3525
        %v3527 = vsel %vm1590, %v3517, %v3526
        %v3529 = vshrl.u32 %v3383, 16
        %v3531 = vrot.slane %v3529, 3
        %v3532 = vshll.u32 %v3383, 16
        %v3534 = vrot.slane %v3532, 4
        %v3535 = vor.u32 %v3531, %v3534
        %v3536 = vsel %vm1590, %v3526, %v3535
        %v3538 = vshrl.u32 %v3384, 16
        %v3540 = vrot.slane %v3538, 3
        %v3541 = vshll.u32 %v3384, 16
        %v3543 = vrot.slane %v3541, 4
        %v3544 = vor.u32 %v3540, %v3543
        %v3545 = vsel %vm1590, %v3535, %v3544
        %v3547 = vshrl.u32 %v3385, 16
        %v3549 = vrot.slane %v3547, 3
        %v3550 = vshll.u32 %v3385, 16
        %v3552 = vrot.slane %v3550, 4
        %v3553 = vor.u32 %v3549, %v3552
        %v3554 = vsel %vm1590, %v3544, %v3553
        %v3587 = vunpack.c.l.b16 %v3387
        %v3588 = vunpack.c.l.b16 %v3388
        %v3589 = vunpack.c.l.b16 %v3389
        %v3590 = vunpack.c.l.b16 %v3390
        %v3591 = vunpack.c.l.b16 %v3391
        %v3592 = vunpack.c.l.b16 %v3392
        %v3593 = vunpack.c.l.b16 %v3393
        %v3594 = vunpack.c.l.b16 %v3394
        %v3595 = vunpack.c.l.b16 %v3395
        %v3596 = vunpack.c.l.b16 %v3396
        %v3597 = vunpack.c.l.b16 %v3397
        %v3598 = vunpack.c.l.b16 %v3398
        %v3599 = vunpack.c.l.b16 %v3399
        %v3600 = vunpack.c.l.b16 %v3400
        %v3601 = vunpack.c.l.b16 %v3401
        %v3602 = vunpack.c.l.b16 %v3402
        %v3603 = vpack.c.b16 %v3588, %v3587
        %v3604 = vpack.c.b16 %v3590, %v3589
        %v3605 = vpack.c.b16 %v3592, %v3591
        %v3606 = vpack.c.b16 %v3594, %v3593
        %v3607 = vpack.c.b16 %v3596, %v3595
        %v3608 = vpack.c.b16 %v3598, %v3597
        %v3609 = vpack.c.b16 %v3600, %v3599
        %v3610 = vpack.c.b16 %v3602, %v3601
        %3619 = vmatpush.bf16.msra.mxu0 %v3610
        %3620 = vmatpush.bf16.msra.mxu0 %v3609
        %3621 = vmatpush.bf16.msra.mxu0 %v3608
        %3622 = vmatpush.bf16.msra.mxu0 %v3607
        %3623 = vmatpush.bf16.msra.mxu0 %v3606
        %3624 = vmatpush.bf16.msra.mxu0 %v3605
        %3625 = vmatpush.bf16.msra.mxu0 %v3604
        %3626 = vmatpush.bf16.msra.mxu0 %v3603
        %3627 = vmatmul.bf16.gmra.mxu0 %v3419
        %v3628 = vpop.f32.mrf.mxu0
        %v3629 = vadd.f32 0.0, %v3628
        %v3630 = vpop.f32.mrf.mxu0
        %v3631 = vadd.f32 0.0, %v3630
        %3632 = vmatmul.bf16.gmra.mxu0 %v3428
        %v3633 = vpop.f32.mrf.mxu0
        %v3634 = vadd.f32 0.0, %v3633
        %v3635 = vpop.f32.mrf.mxu0
        %v3636 = vadd.f32 0.0, %v3635
        %3637 = vmatmul.bf16.gmra.mxu0 %v3437
        %v3638 = vpop.f32.mrf.mxu0
        %v3639 = vadd.f32 0.0, %v3638
        %v3640 = vpop.f32.mrf.mxu0
        %v3641 = vadd.f32 0.0, %v3640
        %3642 = vmatmul.bf16.gmra.mxu0 %v3446
        %v3643 = vpop.f32.mrf.mxu0
        %v3644 = vadd.f32 0.0, %v3643
        %v3645 = vpop.f32.mrf.mxu0
        %v3646 = vadd.f32 0.0, %v3645
        %3647 = vmatmul.bf16.gmra.mxu0 %v3455
        %v3648 = vpop.f32.mrf.mxu0
        %v3649 = vadd.f32 0.0, %v3648
        %v3650 = vpop.f32.mrf.mxu0
        %v3651 = vadd.f32 0.0, %v3650
        %3652 = vmatmul.bf16.gmra.mxu0 %v3464
        %v3653 = vpop.f32.mrf.mxu0
        %v3654 = vadd.f32 0.0, %v3653
        %v3655 = vpop.f32.mrf.mxu0
        %v3656 = vadd.f32 0.0, %v3655
        %3657 = vmatmul.bf16.gmra.mxu0 %v3473
        %v3658 = vpop.f32.mrf.mxu0
        %v3659 = vadd.f32 0.0, %v3658
        %v3660 = vpop.f32.mrf.mxu0
        %v3661 = vadd.f32 0.0, %v3660
        %3662 = vmatmul.bf16.gmra.mxu0 %v3482
        %v3663 = vpop.f32.mrf.mxu0
        %v3664 = vadd.f32 0.0, %v3663
        %v3665 = vpop.f32.mrf.mxu0
        %v3666 = vadd.f32 0.0, %v3665
        %3667 = vmatmul.bf16.gmra.mxu0 %v3491
        %v3668 = vpop.f32.mrf.mxu0
        %v3669 = vadd.f32 0.0, %v3668
        %v3670 = vpop.f32.mrf.mxu0
        %v3671 = vadd.f32 0.0, %v3670
        %3672 = vmatmul.bf16.gmra.mxu0 %v3500
        %v3673 = vpop.f32.mrf.mxu0
        %v3674 = vadd.f32 0.0, %v3673
        %v3675 = vpop.f32.mrf.mxu0
        %v3676 = vadd.f32 0.0, %v3675
        %3677 = vmatmul.bf16.gmra.mxu0 %v3509
        %v3678 = vpop.f32.mrf.mxu0
        %v3679 = vadd.f32 0.0, %v3678
        %v3680 = vpop.f32.mrf.mxu0
        %v3681 = vadd.f32 0.0, %v3680
        %3682 = vmatmul.bf16.gmra.mxu0 %v3518
        %v3683 = vpop.f32.mrf.mxu0
        %v3684 = vadd.f32 0.0, %v3683
        %v3685 = vpop.f32.mrf.mxu0
        %v3686 = vadd.f32 0.0, %v3685
        %3687 = vmatmul.bf16.gmra.mxu0 %v3527
        %v3688 = vpop.f32.mrf.mxu0
        %v3689 = vadd.f32 0.0, %v3688
        %v3690 = vpop.f32.mrf.mxu0
        %v3691 = vadd.f32 0.0, %v3690
        %3692 = vmatmul.bf16.gmra.mxu0 %v3536
        %v3693 = vpop.f32.mrf.mxu0
        %v3694 = vadd.f32 0.0, %v3693
        %v3695 = vpop.f32.mrf.mxu0
        %v3696 = vadd.f32 0.0, %v3695
        %3697 = vmatmul.bf16.gmra.mxu0 %v3545
        %v3698 = vpop.f32.mrf.mxu0
        %v3699 = vadd.f32 0.0, %v3698
        %v3700 = vpop.f32.mrf.mxu0
        %v3701 = vadd.f32 0.0, %v3700
        %3702 = vmatmul.bf16.gmra.mxu0 %v3554
        %v3703 = vpop.f32.mrf.mxu0
        %v3704 = vadd.f32 0.0, %v3703
        %v3705 = vpop.f32.mrf.mxu0
        %v3706 = vadd.f32 0.0, %v3705
        %3707 = vdwg.mxu0
        %v3708 = vld [vmem:[#allocation3] sm:$0xff]
        %v3709 = vld [vmem:[#allocation3 + $0x8] sm:$0xff]
        %v3710 = vld [vmem:[#allocation3 + $0x10] sm:$0xff]
        %v3711 = vld [vmem:[#allocation3 + $0x18] sm:$0xff]
        %v3712 = vld [vmem:[#allocation3 + $0x20] sm:$0xff]
        %v3713 = vld [vmem:[#allocation3 + $0x28] sm:$0xff]
        %v3714 = vld [vmem:[#allocation3 + $0x30] sm:$0xff]
        %v3715 = vld [vmem:[#allocation3 + $0x38] sm:$0xff]
        %v3716 = vld [vmem:[#allocation3 + $0x40] sm:$0xff]
        %v3717 = vld [vmem:[#allocation3 + $0x48] sm:$0xff]
        %v3718 = vld [vmem:[#allocation3 + $0x50] sm:$0xff]
        %v3719 = vld [vmem:[#allocation3 + $0x58] sm:$0xff]
        %v3720 = vld [vmem:[#allocation3 + $0x60] sm:$0xff]
        %v3721 = vld [vmem:[#allocation3 + $0x68] sm:$0xff]
        %v3722 = vld [vmem:[#allocation3 + $0x70] sm:$0xff]
        %v3723 = vld [vmem:[#allocation3 + $0x78] sm:$0xff]
        %v3724 = vld [vmem:[#allocation3 + $0x80] sm:$0xff]
        %v3725 = vld [vmem:[#allocation3 + $0x88] sm:$0xff]
        %v3726 = vld [vmem:[#allocation3 + $0x90] sm:$0xff]
        %v3727 = vld [vmem:[#allocation3 + $0x98] sm:$0xff]
        %v3728 = vld [vmem:[#allocation3 + $0xa0] sm:$0xff]
        %v3729 = vld [vmem:[#allocation3 + $0xa8] sm:$0xff]
        %v3730 = vld [vmem:[#allocation3 + $0xb0] sm:$0xff]
        %v3731 = vld [vmem:[#allocation3 + $0xb8] sm:$0xff]
        %v3732 = vld [vmem:[#allocation3 + $0xc0] sm:$0xff]
        %v3733 = vld [vmem:[#allocation3 + $0xc8] sm:$0xff]
        %v3734 = vld [vmem:[#allocation3 + $0xd0] sm:$0xff]
        %v3735 = vld [vmem:[#allocation3 + $0xd8] sm:$0xff]
        %v3736 = vld [vmem:[#allocation3 + $0xe0] sm:$0xff]
        %v3737 = vld [vmem:[#allocation3 + $0xe8] sm:$0xff]
        %v3738 = vld [vmem:[#allocation3 + $0xf0] sm:$0xff]
        %v3739 = vld [vmem:[#allocation3 + $0xf8] sm:$0xff]
        %v3740 = vadd.f32 %v3708, %v3629
        %v3741 = vadd.f32 %v3709, %v3631
        %v3742 = vadd.f32 %v3710, %v3634
        %v3743 = vadd.f32 %v3711, %v3636
        %v3744 = vadd.f32 %v3712, %v3639
        %v3745 = vadd.f32 %v3713, %v3641
        %v3746 = vadd.f32 %v3714, %v3644
        %v3747 = vadd.f32 %v3715, %v3646
        %v3748 = vadd.f32 %v3716, %v3649
        %v3749 = vadd.f32 %v3717, %v3651
        %v3750 = vadd.f32 %v3718, %v3654
        %v3751 = vadd.f32 %v3719, %v3656
        %v3752 = vadd.f32 %v3720, %v3659
        %v3753 = vadd.f32 %v3721, %v3661
        %v3754 = vadd.f32 %v3722, %v3664
        %v3755 = vadd.f32 %v3723, %v3666
        %v3756 = vadd.f32 %v3724, %v3669
        %v3757 = vadd.f32 %v3725, %v3671
        %v3758 = vadd.f32 %v3726, %v3674
        %v3759 = vadd.f32 %v3727, %v3676
        %v3760 = vadd.f32 %v3728, %v3679
        %v3761 = vadd.f32 %v3729, %v3681
        %v3762 = vadd.f32 %v3730, %v3684
        %v3763 = vadd.f32 %v3731, %v3686
        %v3764 = vadd.f32 %v3732, %v3689
        %v3765 = vadd.f32 %v3733, %v3691
        %v3766 = vadd.f32 %v3734, %v3694
        %v3767 = vadd.f32 %v3735, %v3696
        %v3768 = vadd.f32 %v3736, %v3699
        %v3769 = vadd.f32 %v3737, %v3701
        %v3770 = vadd.f32 %v3738, %v3704
        %v3771 = vadd.f32 %v3739, %v3706
        %3772 = vst [vmem:[#allocation3] sm:$0xff] %v3740
        %3773 = vst [vmem:[#allocation3 + $0x8] sm:$0xff] %v3741
        %3774 = vst [vmem:[#allocation3 + $0x10] sm:$0xff] %v3742
        %3775 = vst [vmem:[#allocation3 + $0x18] sm:$0xff] %v3743
        %3776 = vst [vmem:[#allocation3 + $0x20] sm:$0xff] %v3744
        %3777 = vst [vmem:[#allocation3 + $0x28] sm:$0xff] %v3745
        %3778 = vst [vmem:[#allocation3 + $0x30] sm:$0xff] %v3746
        %3779 = vst [vmem:[#allocation3 + $0x38] sm:$0xff] %v3747
        %3780 = vst [vmem:[#allocation3 + $0x40] sm:$0xff] %v3748
        %3781 = vst [vmem:[#allocation3 + $0x48] sm:$0xff] %v3749
        %3782 = vst [vmem:[#allocation3 + $0x50] sm:$0xff] %v3750
        %3783 = vst [vmem:[#allocation3 + $0x58] sm:$0xff] %v3751
        %3784 = vst [vmem:[#allocation3 + $0x60] sm:$0xff] %v3752
        %3785 = vst [vmem:[#allocation3 + $0x68] sm:$0xff] %v3753
        %3786 = vst [vmem:[#allocation3 + $0x70] sm:$0xff] %v3754
        %3787 = vst [vmem:[#allocation3 + $0x78] sm:$0xff] %v3755
        %3788 = vst [vmem:[#allocation3 + $0x80] sm:$0xff] %v3756
        %3789 = vst [vmem:[#allocation3 + $0x88] sm:$0xff] %v3757
        %3790 = vst [vmem:[#allocation3 + $0x90] sm:$0xff] %v3758
        %3791 = vst [vmem:[#allocation3 + $0x98] sm:$0xff] %v3759
        %3792 = vst [vmem:[#allocation3 + $0xa0] sm:$0xff] %v3760
        %3793 = vst [vmem:[#allocation3 + $0xa8] sm:$0xff] %v3761
        %3794 = vst [vmem:[#allocation3 + $0xb0] sm:$0xff] %v3762
        %3795 = vst [vmem:[#allocation3 + $0xb8] sm:$0xff] %v3763
        %3796 = vst [vmem:[#allocation3 + $0xc0] sm:$0xff] %v3764
        %3797 = vst [vmem:[#allocation3 + $0xc8] sm:$0xff] %v3765
        %3798 = vst [vmem:[#allocation3 + $0xd0] sm:$0xff] %v3766
        %3799 = vst [vmem:[#allocation3 + $0xd8] sm:$0xff] %v3767
        %3800 = vst [vmem:[#allocation3 + $0xe0] sm:$0xff] %v3768
        %3801 = vst [vmem:[#allocation3 + $0xe8] sm:$0xff] %v3769
        %3802 = vst [vmem:[#allocation3 + $0xf0] sm:$0xff] %v3770
        %3803 = vst [vmem:[#allocation3 + $0xf8] sm:$0xff] %v3771
        %v3804 = vld [vmem:[#allocation2 + $0xc] sm:$0xf]
        %v3805 = vld [vmem:[#allocation2 + $0x10] sm:$0xf]
        %v3806 = vld [vmem:[#allocation2 + $0x14] sm:$0xf]
        %v3807 = vld [vmem:[#allocation2 + $0x18] sm:$0xf]
        %v3808 = vld [vmem:[#allocation2 + $0x1c] sm:$0xf]
        %v3809 = vld [vmem:[#allocation2 + $0x20] sm:$0xf]
        %v3810 = vld [vmem:[#allocation2 + $0x24] sm:$0xf]
        %v3811 = vld [vmem:[#allocation2 + $0x28] sm:$0xf]
        %v3812 = vld [vmem:[#allocation2 + $0x2c] sm:$0xf]
        %v3813 = vld [vmem:[#allocation2 + $0x30] sm:$0xf]
        %v3814 = vld [vmem:[#allocation2 + $0x34] sm:$0xf]
        %v3815 = vld [vmem:[#allocation2 + $0x38] sm:$0xf]
        %v3816 = vld [vmem:[#allocation2 + $0x3c] sm:$0xf]
        %v3817 = vld [vmem:[#allocation2 + $0x40] sm:$0xf]
        %v3818 = vld [vmem:[#allocation2 + $0x44] sm:$0xf]
        %v3819 = vld [vmem:[#allocation2 + $0x48] sm:$0xf]
        %v3820 = vld [vmem:[#allocation2 + $0x4c] sm:$0xf]
        %v3821 = vld [vmem:[#allocation2 + $0x50] sm:$0xf]
        %v3822 = vld [vmem:[#allocation2 + $0x54] sm:$0xf]
        %v3823 = vld [vmem:[#allocation2 + $0x58] sm:$0xf]
        %v3824 = vld [vmem:[#allocation2 + $0x5c] sm:$0xf]
        %v3825 = vld [vmem:[#allocation2 + $0x60] sm:$0xf]
        %v3826 = vld [vmem:[#allocation2 + $0x64] sm:$0xf]
        %v3827 = vld [vmem:[#allocation2 + $0x68] sm:$0xf]
        %v3828 = vld [vmem:[#allocation2 + $0x6c] sm:$0xf]
        %v3829 = vld [vmem:[#allocation2 + $0x70] sm:$0xf]
        %v3830 = vld [vmem:[#allocation2 + $0x74] sm:$0xf]
        %v3831 = vld [vmem:[#allocation2 + $0x78] sm:$0xf]
        %v3832 = vld [vmem:[#allocation2 + $0x7c] sm:$0xf]
        %v3833 = vld [vmem:[#allocation2 + $0x80] sm:$0xf]
        %v3834 = vld [vmem:[#allocation2 + $0x84] sm:$0xf]
        %v3835 = vld [vmem:[#allocation2 + $0x88] sm:$0xf]
        %s3836 = scalar_lea.vmem [#allocation7], 256
        %v3837 = vld [vmem:[%s3836] sm:$0xf]
        %v3838 = vld [vmem:[%s3836 + $0x4] sm:$0xf]
        %v3839 = vld [vmem:[%s3836 + $0x8] sm:$0xf]
        %v3840 = vld [vmem:[%s3836 + $0xc] sm:$0xf]
        %v3841 = vld [vmem:[%s3836 + $0x10] sm:$0xf]
        %v3842 = vld [vmem:[%s3836 + $0x14] sm:$0xf]
        %v3843 = vld [vmem:[%s3836 + $0x18] sm:$0xf]
        %v3844 = vld [vmem:[%s3836 + $0x1c] sm:$0xf]
        %v3845 = vld [vmem:[%s3836 + $0x20] sm:$0xf]
        %v3846 = vld [vmem:[%s3836 + $0x24] sm:$0xf]
        %v3847 = vld [vmem:[%s3836 + $0x28] sm:$0xf]
        %v3848 = vld [vmem:[%s3836 + $0x2c] sm:$0xf]
        %v3849 = vld [vmem:[%s3836 + $0x30] sm:$0xf]
        %v3850 = vld [vmem:[%s3836 + $0x34] sm:$0xf]
        %v3851 = vld [vmem:[%s3836 + $0x38] sm:$0xf]
        %v3852 = vld [vmem:[%s3836 + $0x3c] sm:$0xf]
        %v3885 = vunpack.c.l.b16 %v3804
        %v3886 = vunpack.c.l.b16 %v3805
        %v3887 = vunpack.c.l.b16 %v3806
        %v3888 = vunpack.c.l.b16 %v3807
        %v3889 = vunpack.c.l.b16 %v3808
        %v3890 = vunpack.c.l.b16 %v3809
        %v3891 = vunpack.c.l.b16 %v3810
        %v3892 = vunpack.c.l.b16 %v3811
        %v3893 = vunpack.c.l.b16 %v3812
        %v3894 = vunpack.c.l.b16 %v3813
        %v3895 = vunpack.c.l.b16 %v3814
        %v3896 = vunpack.c.l.b16 %v3815
        %v3897 = vunpack.c.l.b16 %v3816
        %v3898 = vunpack.c.l.b16 %v3817
        %v3899 = vunpack.c.l.b16 %v3818
        %v3900 = vunpack.c.l.b16 %v3819
        %v3901 = vunpack.c.l.b16 %v3820
        %v3902 = vunpack.c.l.b16 %v3821
        %v3903 = vunpack.c.l.b16 %v3822
        %v3904 = vunpack.c.l.b16 %v3823
        %v3905 = vunpack.c.l.b16 %v3824
        %v3906 = vunpack.c.l.b16 %v3825
        %v3907 = vunpack.c.l.b16 %v3826
        %v3908 = vunpack.c.l.b16 %v3827
        %v3909 = vunpack.c.l.b16 %v3828
        %v3910 = vunpack.c.l.b16 %v3829
        %v3911 = vunpack.c.l.b16 %v3830
        %v3912 = vunpack.c.l.b16 %v3831
        %v3913 = vunpack.c.l.b16 %v3832
        %v3914 = vunpack.c.l.b16 %v3833
        %v3915 = vunpack.c.l.b16 %v3834
        %v3916 = vunpack.c.l.b16 %v3835
        %v3917 = vpack.c.b16 %v3886, %v3885
        %v3918 = vpack.c.b16 %v3888, %v3887
        %v3919 = vpack.c.b16 %v3890, %v3889
        %v3920 = vpack.c.b16 %v3892, %v3891
        %v3921 = vpack.c.b16 %v3894, %v3893
        %v3922 = vpack.c.b16 %v3896, %v3895
        %v3923 = vpack.c.b16 %v3898, %v3897
        %v3924 = vpack.c.b16 %v3900, %v3899
        %v3925 = vpack.c.b16 %v3902, %v3901
        %v3926 = vpack.c.b16 %v3904, %v3903
        %v3927 = vpack.c.b16 %v3906, %v3905
        %v3928 = vpack.c.b16 %v3908, %v3907
        %v3929 = vpack.c.b16 %v3910, %v3909
        %v3930 = vpack.c.b16 %v3912, %v3911
        %v3931 = vpack.c.b16 %v3914, %v3913
        %v3932 = vpack.c.b16 %v3916, %v3915
        %v3965 = vunpack.c.l.b16 %v3837
        %v3966 = vunpack.c.l.b16 %v3838
        %v3967 = vunpack.c.l.b16 %v3839
        %v3968 = vunpack.c.l.b16 %v3840
        %v3969 = vunpack.c.l.b16 %v3841
        %v3970 = vunpack.c.l.b16 %v3842
        %v3971 = vunpack.c.l.b16 %v3843
        %v3972 = vunpack.c.l.b16 %v3844
        %v3973 = vunpack.c.l.b16 %v3845
        %v3974 = vunpack.c.l.b16 %v3846
        %v3975 = vunpack.c.l.b16 %v3847
        %v3976 = vunpack.c.l.b16 %v3848
        %v3977 = vunpack.c.l.b16 %v3849
        %v3978 = vunpack.c.l.b16 %v3850
        %v3979 = vunpack.c.l.b16 %v3851
        %v3980 = vunpack.c.l.b16 %v3852
        %v3981 = vpack.c.b16 %v3966, %v3965
        %v3982 = vpack.c.b16 %v3968, %v3967
        %v3983 = vpack.c.b16 %v3970, %v3969
        %v3984 = vpack.c.b16 %v3972, %v3971
        %v3985 = vpack.c.b16 %v3974, %v3973
        %v3986 = vpack.c.b16 %v3976, %v3975
        %v3987 = vpack.c.b16 %v3978, %v3977
        %v3988 = vpack.c.b16 %v3980, %v3979
        %3997 = vmatpush.bf16.msra.mxu0 %v3988
        %3998 = vmatpush.bf16.msra.mxu0 %v3987
        %3999 = vmatpush.bf16.msra.mxu0 %v3986
        %4000 = vmatpush.bf16.msra.mxu0 %v3985
        %4001 = vmatpush.bf16.msra.mxu0 %v3984
        %4002 = vmatpush.bf16.msra.mxu0 %v3983
        %4003 = vmatpush.bf16.msra.mxu0 %v3982
        %4004 = vmatpush.bf16.msra.mxu0 %v3981
        %4005 = vmatmul.bf16.gmra.mxu0 %v3917
        %v4006 = vpop.f32.mrf.mxu0
        %v4007 = vadd.f32 0.0, %v4006
        %v4008 = vpop.f32.mrf.mxu0
        %v4009 = vadd.f32 0.0, %v4008
        %4010 = vmatmul.bf16.gmra.mxu0 %v3918
        %v4011 = vpop.f32.mrf.mxu0
        %v4012 = vadd.f32 0.0, %v4011
        %v4013 = vpop.f32.mrf.mxu0
        %v4014 = vadd.f32 0.0, %v4013
        %4015 = vmatmul.bf16.gmra.mxu0 %v3919
        %v4016 = vpop.f32.mrf.mxu0
        %v4017 = vadd.f32 0.0, %v4016
        %v4018 = vpop.f32.mrf.mxu0
        %v4019 = vadd.f32 0.0, %v4018
        %4020 = vmatmul.bf16.gmra.mxu0 %v3920
        %v4021 = vpop.f32.mrf.mxu0
        %v4022 = vadd.f32 0.0, %v4021
        %v4023 = vpop.f32.mrf.mxu0
        %v4024 = vadd.f32 0.0, %v4023
        %4025 = vmatmul.bf16.gmra.mxu0 %v3921
        %v4026 = vpop.f32.mrf.mxu0
        %v4027 = vadd.f32 0.0, %v4026
        %v4028 = vpop.f32.mrf.mxu0
        %v4029 = vadd.f32 0.0, %v4028
        %4030 = vmatmul.bf16.gmra.mxu0 %v3922
        %v4031 = vpop.f32.mrf.mxu0
        %v4032 = vadd.f32 0.0, %v4031
        %v4033 = vpop.f32.mrf.mxu0
        %v4034 = vadd.f32 0.0, %v4033
        %4035 = vmatmul.bf16.gmra.mxu0 %v3923
        %v4036 = vpop.f32.mrf.mxu0
        %v4037 = vadd.f32 0.0, %v4036
        %v4038 = vpop.f32.mrf.mxu0
        %v4039 = vadd.f32 0.0, %v4038
        %4040 = vmatmul.bf16.gmra.mxu0 %v3924
        %v4041 = vpop.f32.mrf.mxu0
        %v4042 = vadd.f32 0.0, %v4041
        %v4043 = vpop.f32.mrf.mxu0
        %v4044 = vadd.f32 0.0, %v4043
        %4045 = vmatmul.bf16.gmra.mxu0 %v3925
        %v4046 = vpop.f32.mrf.mxu0
        %v4047 = vadd.f32 0.0, %v4046
        %v4048 = vpop.f32.mrf.mxu0
        %v4049 = vadd.f32 0.0, %v4048
        %4050 = vmatmul.bf16.gmra.mxu0 %v3926
        %v4051 = vpop.f32.mrf.mxu0
        %v4052 = vadd.f32 0.0, %v4051
        %v4053 = vpop.f32.mrf.mxu0
        %v4054 = vadd.f32 0.0, %v4053
        %4055 = vmatmul.bf16.gmra.mxu0 %v3927
        %v4056 = vpop.f32.mrf.mxu0
        %v4057 = vadd.f32 0.0, %v4056
        %v4058 = vpop.f32.mrf.mxu0
        %v4059 = vadd.f32 0.0, %v4058
        %4060 = vmatmul.bf16.gmra.mxu0 %v3928
        %v4061 = vpop.f32.mrf.mxu0
        %v4062 = vadd.f32 0.0, %v4061
        %v4063 = vpop.f32.mrf.mxu0
        %v4064 = vadd.f32 0.0, %v4063
        %4065 = vmatmul.bf16.gmra.mxu0 %v3929
        %v4066 = vpop.f32.mrf.mxu0
        %v4067 = vadd.f32 0.0, %v4066
        %v4068 = vpop.f32.mrf.mxu0
        %v4069 = vadd.f32 0.0, %v4068
        %4070 = vmatmul.bf16.gmra.mxu0 %v3930
        %v4071 = vpop.f32.mrf.mxu0
        %v4072 = vadd.f32 0.0, %v4071
        %v4073 = vpop.f32.mrf.mxu0
        %v4074 = vadd.f32 0.0, %v4073
        %4075 = vmatmul.bf16.gmra.mxu0 %v3931
        %v4076 = vpop.f32.mrf.mxu0
        %v4077 = vadd.f32 0.0, %v4076
        %v4078 = vpop.f32.mrf.mxu0
        %v4079 = vadd.f32 0.0, %v4078
        %4080 = vmatmul.bf16.gmra.mxu0 %v3932
        %v4081 = vpop.f32.mrf.mxu0
        %v4082 = vadd.f32 0.0, %v4081
        %v4083 = vpop.f32.mrf.mxu0
        %v4084 = vadd.f32 0.0, %v4083
        %4085 = vdwg.mxu0
        %v4086 = vld [vmem:[#allocation3] sm:$0xff]
        %v4087 = vld [vmem:[#allocation3 + $0x8] sm:$0xff]
        %v4088 = vld [vmem:[#allocation3 + $0x10] sm:$0xff]
        %v4089 = vld [vmem:[#allocation3 + $0x18] sm:$0xff]
        %v4090 = vld [vmem:[#allocation3 + $0x20] sm:$0xff]
        %v4091 = vld [vmem:[#allocation3 + $0x28] sm:$0xff]
        %v4092 = vld [vmem:[#allocation3 + $0x30] sm:$0xff]
        %v4093 = vld [vmem:[#allocation3 + $0x38] sm:$0xff]
        %v4094 = vld [vmem:[#allocation3 + $0x40] sm:$0xff]
        %v4095 = vld [vmem:[#allocation3 + $0x48] sm:$0xff]
        %v4096 = vld [vmem:[#allocation3 + $0x50] sm:$0xff]
        %v4097 = vld [vmem:[#allocation3 + $0x58] sm:$0xff]
        %v4098 = vld [vmem:[#allocation3 + $0x60] sm:$0xff]
        %v4099 = vld [vmem:[#allocation3 + $0x68] sm:$0xff]
        %v4100 = vld [vmem:[#allocation3 + $0x70] sm:$0xff]
        %v4101 = vld [vmem:[#allocation3 + $0x78] sm:$0xff]
        %v4102 = vld [vmem:[#allocation3 + $0x80] sm:$0xff]
        %v4103 = vld [vmem:[#allocation3 + $0x88] sm:$0xff]
        %v4104 = vld [vmem:[#allocation3 + $0x90] sm:$0xff]
        %v4105 = vld [vmem:[#allocation3 + $0x98] sm:$0xff]
        %v4106 = vld [vmem:[#allocation3 + $0xa0] sm:$0xff]
        %v4107 = vld [vmem:[#allocation3 + $0xa8] sm:$0xff]
        %v4108 = vld [vmem:[#allocation3 + $0xb0] sm:$0xff]
        %v4109 = vld [vmem:[#allocation3 + $0xb8] sm:$0xff]
        %v4110 = vld [vmem:[#allocation3 + $0xc0] sm:$0xff]
        %v4111 = vld [vmem:[#allocation3 + $0xc8] sm:$0xff]
        %v4112 = vld [vmem:[#allocation3 + $0xd0] sm:$0xff]
        %v4113 = vld [vmem:[#allocation3 + $0xd8] sm:$0xff]
        %v4114 = vld [vmem:[#allocation3 + $0xe0] sm:$0xff]
        %v4115 = vld [vmem:[#allocation3 + $0xe8] sm:$0xff]
        %v4116 = vld [vmem:[#allocation3 + $0xf0] sm:$0xff]
        %v4117 = vld [vmem:[#allocation3 + $0xf8] sm:$0xff]
        %v4118 = vadd.f32 %v4086, %v4007
        %v4119 = vadd.f32 %v4087, %v4009
        %v4120 = vadd.f32 %v4088, %v4012
        %v4121 = vadd.f32 %v4089, %v4014
        %v4122 = vadd.f32 %v4090, %v4017
        %v4123 = vadd.f32 %v4091, %v4019
        %v4124 = vadd.f32 %v4092, %v4022
        %v4125 = vadd.f32 %v4093, %v4024
        %v4126 = vadd.f32 %v4094, %v4027
        %v4127 = vadd.f32 %v4095, %v4029
        %v4128 = vadd.f32 %v4096, %v4032
        %v4129 = vadd.f32 %v4097, %v4034
        %v4130 = vadd.f32 %v4098, %v4037
        %v4131 = vadd.f32 %v4099, %v4039
        %v4132 = vadd.f32 %v4100, %v4042
        %v4133 = vadd.f32 %v4101, %v4044
        %v4134 = vadd.f32 %v4102, %v4047
        %v4135 = vadd.f32 %v4103, %v4049
        %v4136 = vadd.f32 %v4104, %v4052
        %v4137 = vadd.f32 %v4105, %v4054
        %v4138 = vadd.f32 %v4106, %v4057
        %v4139 = vadd.f32 %v4107, %v4059
        %v4140 = vadd.f32 %v4108, %v4062
        %v4141 = vadd.f32 %v4109, %v4064
        %v4142 = vadd.f32 %v4110, %v4067
        %v4143 = vadd.f32 %v4111, %v4069
        %v4144 = vadd.f32 %v4112, %v4072
        %v4145 = vadd.f32 %v4113, %v4074
        %v4146 = vadd.f32 %v4114, %v4077
        %v4147 = vadd.f32 %v4115, %v4079
        %v4148 = vadd.f32 %v4116, %v4082
        %v4149 = vadd.f32 %v4117, %v4084
        %4150 = vst [vmem:[#allocation3] sm:$0xff] %v4118
        %4151 = vst [vmem:[#allocation3 + $0x8] sm:$0xff] %v4119
        %4152 = vst [vmem:[#allocation3 + $0x10] sm:$0xff] %v4120
        %4153 = vst [vmem:[#allocation3 + $0x18] sm:$0xff] %v4121
        %4154 = vst [vmem:[#allocation3 + $0x20] sm:$0xff] %v4122
        %4155 = vst [vmem:[#allocation3 + $0x28] sm:$0xff] %v4123
        %4156 = vst [vmem:[#allocation3 + $0x30] sm:$0xff] %v4124
        %4157 = vst [vmem:[#allocation3 + $0x38] sm:$0xff] %v4125
        %4158 = vst [vmem:[#allocation3 + $0x40] sm:$0xff] %v4126
        %4159 = vst [vmem:[#allocation3 + $0x48] sm:$0xff] %v4127
        %4160 = vst [vmem:[#allocation3 + $0x50] sm:$0xff] %v4128
        %4161 = vst [vmem:[#allocation3 + $0x58] sm:$0xff] %v4129
        %4162 = vst [vmem:[#allocation3 + $0x60] sm:$0xff] %v4130
        %4163 = vst [vmem:[#allocation3 + $0x68] sm:$0xff] %v4131
        %4164 = vst [vmem:[#allocation3 + $0x70] sm:$0xff] %v4132
        %4165 = vst [vmem:[#allocation3 + $0x78] sm:$0xff] %v4133
        %4166 = vst [vmem:[#allocation3 + $0x80] sm:$0xff] %v4134
        %4167 = vst [vmem:[#allocation3 + $0x88] sm:$0xff] %v4135
        %4168 = vst [vmem:[#allocation3 + $0x90] sm:$0xff] %v4136
        %4169 = vst [vmem:[#allocation3 + $0x98] sm:$0xff] %v4137
        %4170 = vst [vmem:[#allocation3 + $0xa0] sm:$0xff] %v4138
        %4171 = vst [vmem:[#allocation3 + $0xa8] sm:$0xff] %v4139
        %4172 = vst [vmem:[#allocation3 + $0xb0] sm:$0xff] %v4140
        %4173 = vst [vmem:[#allocation3 + $0xb8] sm:$0xff] %v4141
        %4174 = vst [vmem:[#allocation3 + $0xc0] sm:$0xff] %v4142
        %4175 = vst [vmem:[#allocation3 + $0xc8] sm:$0xff] %v4143
        %4176 = vst [vmem:[#allocation3 + $0xd0] sm:$0xff] %v4144
        %4177 = vst [vmem:[#allocation3 + $0xd8] sm:$0xff] %v4145
        %4178 = vst [vmem:[#allocation3 + $0xe0] sm:$0xff] %v4146
        %4179 = vst [vmem:[#allocation3 + $0xe8] sm:$0xff] %v4147
        %4180 = vst [vmem:[#allocation3 + $0xf0] sm:$0xff] %v4148
        %4181 = vst [vmem:[#allocation3 + $0xf8] sm:$0xff] %v4149
        %v4182 = vld [vmem:[#allocation2 + $0xc] sm:$0xf]
        %v4183 = vld [vmem:[#allocation2 + $0x10] sm:$0xf]
        %v4184 = vld [vmem:[#allocation2 + $0x14] sm:$0xf]
        %v4185 = vld [vmem:[#allocation2 + $0x18] sm:$0xf]
        %v4186 = vld [vmem:[#allocation2 + $0x1c] sm:$0xf]
        %v4187 = vld [vmem:[#allocation2 + $0x20] sm:$0xf]
        %v4188 = vld [vmem:[#allocation2 + $0x24] sm:$0xf]
        %v4189 = vld [vmem:[#allocation2 + $0x28] sm:$0xf]
        %v4190 = vld [vmem:[#allocation2 + $0x2c] sm:$0xf]
        %v4191 = vld [vmem:[#allocation2 + $0x30] sm:$0xf]
        %v4192 = vld [vmem:[#allocation2 + $0x34] sm:$0xf]
        %v4193 = vld [vmem:[#allocation2 + $0x38] sm:$0xf]
        %v4194 = vld [vmem:[#allocation2 + $0x3c] sm:$0xf]
        %v4195 = vld [vmem:[#allocation2 + $0x40] sm:$0xf]
        %v4196 = vld [vmem:[#allocation2 + $0x44] sm:$0xf]
        %v4197 = vld [vmem:[#allocation2 + $0x48] sm:$0xf]
        %v4198 = vld [vmem:[#allocation2 + $0x4c] sm:$0xf]
        %v4199 = vld [vmem:[#allocation2 + $0x50] sm:$0xf]
        %v4200 = vld [vmem:[#allocation2 + $0x54] sm:$0xf]
        %v4201 = vld [vmem:[#allocation2 + $0x58] sm:$0xf]
        %v4202 = vld [vmem:[#allocation2 + $0x5c] sm:$0xf]
        %v4203 = vld [vmem:[#allocation2 + $0x60] sm:$0xf]
        %v4204 = vld [vmem:[#allocation2 + $0x64] sm:$0xf]
        %v4205 = vld [vmem:[#allocation2 + $0x68] sm:$0xf]
        %v4206 = vld [vmem:[#allocation2 + $0x6c] sm:$0xf]
        %v4207 = vld [vmem:[#allocation2 + $0x70] sm:$0xf]
        %v4208 = vld [vmem:[#allocation2 + $0x74] sm:$0xf]
        %v4209 = vld [vmem:[#allocation2 + $0x78] sm:$0xf]
        %v4210 = vld [vmem:[#allocation2 + $0x7c] sm:$0xf]
        %v4211 = vld [vmem:[#allocation2 + $0x80] sm:$0xf]
        %v4212 = vld [vmem:[#allocation2 + $0x84] sm:$0xf]
        %v4213 = vld [vmem:[#allocation2 + $0x88] sm:$0xf]
        %v4214 = vld [vmem:[#allocation2 + $0x8c] sm:$0x1]
        %v4215 = vunpack.c.l.bf16 %v4182
        %v4216 = vunpack.c.l.bf16 %v4183
        %v4217 = vunpack.c.l.bf16 %v4184
        %v4218 = vunpack.c.l.bf16 %v4185
        %v4219 = vunpack.c.l.bf16 %v4186
        %v4220 = vunpack.c.l.bf16 %v4187
        %v4221 = vunpack.c.l.bf16 %v4188
        %v4222 = vunpack.c.l.bf16 %v4189
        %v4223 = vunpack.c.l.bf16 %v4190
        %v4224 = vunpack.c.l.bf16 %v4191
        %v4225 = vunpack.c.l.bf16 %v4192
        %v4226 = vunpack.c.l.bf16 %v4193
        %v4227 = vunpack.c.l.bf16 %v4194
        %v4228 = vunpack.c.l.bf16 %v4195
        %v4229 = vunpack.c.l.bf16 %v4196
        %v4230 = vunpack.c.l.bf16 %v4197
        %v4231 = vunpack.c.l.bf16 %v4198
        %v4232 = vunpack.c.l.bf16 %v4199
        %v4233 = vunpack.c.l.bf16 %v4200
        %v4234 = vunpack.c.l.bf16 %v4201
        %v4235 = vunpack.c.l.bf16 %v4202
        %v4236 = vunpack.c.l.bf16 %v4203
        %v4237 = vunpack.c.l.bf16 %v4204
        %v4238 = vunpack.c.l.bf16 %v4205
        %v4239 = vunpack.c.l.bf16 %v4206
        %v4240 = vunpack.c.l.bf16 %v4207
        %v4241 = vunpack.c.l.bf16 %v4208
        %v4242 = vunpack.c.l.bf16 %v4209
        %v4243 = vunpack.c.l.bf16 %v4210
        %v4244 = vunpack.c.l.bf16 %v4211
        %v4245 = vunpack.c.l.bf16 %v4212
        %v4246 = vunpack.c.l.bf16 %v4213
        %v4247 = vunpack.c.l.bf16 %v4214
        %v4248 = vmul.f32 %v4215, %v2725
        %v4249 = vmul.f32 %v4216, %v2727
        %v4250 = vmul.f32 %v4217, %v2729
        %v4251 = vmul.f32 %v4218, %v2731
        %v4252 = vmul.f32 %v4219, %v2733
        %v4253 = vmul.f32 %v4220, %v2735
        %v4254 = vmul.f32 %v4221, %v2737
        %v4255 = vmul.f32 %v4222, %v2739
        %v4256 = vmul.f32 %v4223, %v2741
        %v4257 = vmul.f32 %v4224, %v2743
        %v4258 = vmul.f32 %v4225, %v2745
        %v4259 = vmul.f32 %v4226, %v2747
        %v4260 = vmul.f32 %v4227, %v2749
        %v4261 = vmul.f32 %v4228, %v2751
        %v4262 = vmul.f32 %v4229, %v2753
        %v4263 = vmul.f32 %v4230, %v2755
        %v4264 = vmul.f32 %v4231, %v2757
        %v4265 = vmul.f32 %v4232, %v2759
        %v4266 = vmul.f32 %v4233, %v2761
        %v4267 = vmul.f32 %v4234, %v2763
        %v4268 = vmul.f32 %v4235, %v2765
        %v4269 = vmul.f32 %v4236, %v2767
        %v4270 = vmul.f32 %v4237, %v2769
        %v4271 = vmul.f32 %v4238, %v2771
        %v4272 = vmul.f32 %v4239, %v2773
        %v4273 = vmul.f32 %v4240, %v2775
        %v4274 = vmul.f32 %v4241, %v2777
        %v4275 = vmul.f32 %v4242, %v2779
        %v4276 = vmul.f32 %v4243, %v2781
        %v4277 = vmul.f32 %v4244, %v2783
        %v4278 = vmul.f32 %v4245, %v2785
        %v4279 = vmul.f32 %v4246, %v2787
        %v4280 = vmul.f32 %v4247, %v2786
        %v4281 = vpack.c.bf16 %v4249, %v4248
        %v4282 = vpack.c.bf16 %v4251, %v4250
        %v4283 = vpack.c.bf16 %v4253, %v4252
        %v4284 = vpack.c.bf16 %v4255, %v4254
        %v4285 = vpack.c.bf16 %v4257, %v4256
        %v4286 = vpack.c.bf16 %v4259, %v4258
        %v4287 = vpack.c.bf16 %v4261, %v4260
        %v4288 = vpack.c.bf16 %v4263, %v4262
        %v4289 = vpack.c.bf16 %v4265, %v4264
        %v4290 = vpack.c.bf16 %v4267, %v4266
        %v4291 = vpack.c.bf16 %v4269, %v4268
        %v4292 = vpack.c.bf16 %v4271, %v4270
        %v4293 = vpack.c.bf16 %v4273, %v4272
        %v4294 = vpack.c.bf16 %v4275, %v4274
        %v4295 = vpack.c.bf16 %v4277, %v4276
        %v4296 = vpack.c.bf16 %v4279, %v4278
        %v4297 = vpack.c.bf16 %v4280, %v4280
        %s4298 = scalar_lea.vmem [#allocation7], 320
        %v4299 = vld [vmem:[%s4298] sm:$0xf]
        %v4300 = vld [vmem:[%s4298 + $0x4] sm:$0xf]
        %v4301 = vld [vmem:[%s4298 + $0x8] sm:$0xf]
        %v4302 = vld [vmem:[%s4298 + $0xc] sm:$0xf]
        %v4303 = vld [vmem:[%s4298 + $0x10] sm:$0xf]
        %v4304 = vld [vmem:[%s4298 + $0x14] sm:$0xf]
        %v4305 = vld [vmem:[%s4298 + $0x18] sm:$0xf]
        %v4306 = vld [vmem:[%s4298 + $0x1c] sm:$0xf]
        %v4307 = vld [vmem:[%s4298 + $0x20] sm:$0xf]
        %v4308 = vld [vmem:[%s4298 + $0x24] sm:$0xf]
        %v4309 = vld [vmem:[%s4298 + $0x28] sm:$0xf]
        %v4310 = vld [vmem:[%s4298 + $0x2c] sm:$0xf]
        %v4311 = vld [vmem:[%s4298 + $0x30] sm:$0xf]
        %v4312 = vld [vmem:[%s4298 + $0x34] sm:$0xf]
        %v4313 = vld [vmem:[%s4298 + $0x38] sm:$0xf]
        %v4314 = vld [vmem:[%s4298 + $0x3c] sm:$0xf]
        %v4316 = vshrl.u32 %v4281, 16
        %v4318 = vshll.u32 %v4281, 16
        %v4320 = vrot.slane %v4318, 1
        %v4321 = vor.u32 %v4316, %v4320
        %v4323 = vshll.u32 %v4282, 16
        %v4325 = vrot.slane %v4323, 1
        %v4326 = vsel %vm2888, %v4321, %v4325
        %v4327 = vshrl.u32 %v4282, 16
        %v4329 = vor.u32 %v4327, %v4325
        %v4331 = vshll.u32 %v4283, 16
        %v4333 = vrot.slane %v4331, 1
        %v4334 = vsel %vm2888, %v4329, %v4333
        %v4335 = vshrl.u32 %v4283, 16
        %v4337 = vor.u32 %v4335, %v4333
        %v4339 = vshll.u32 %v4284, 16
        %v4341 = vrot.slane %v4339, 1
        %v4342 = vsel %vm2888, %v4337, %v4341
        %v4343 = vshrl.u32 %v4284, 16
        %v4345 = vor.u32 %v4343, %v4341
        %v4347 = vshll.u32 %v4285, 16
        %v4349 = vrot.slane %v4347, 1
        %v4350 = vsel %vm2888, %v4345, %v4349
        %v4351 = vshrl.u32 %v4285, 16
        %v4353 = vor.u32 %v4351, %v4349
        %v4355 = vshll.u32 %v4286, 16
        %v4357 = vrot.slane %v4355, 1
        %v4358 = vsel %vm2888, %v4353, %v4357
        %v4359 = vshrl.u32 %v4286, 16
        %v4361 = vor.u32 %v4359, %v4357
        %v4363 = vshll.u32 %v4287, 16
        %v4365 = vrot.slane %v4363, 1
        %v4366 = vsel %vm2888, %v4361, %v4365
        %v4367 = vshrl.u32 %v4287, 16
        %v4369 = vor.u32 %v4367, %v4365
        %v4371 = vshll.u32 %v4288, 16
        %v4373 = vrot.slane %v4371, 1
        %v4374 = vsel %vm2888, %v4369, %v4373
        %v4375 = vshrl.u32 %v4288, 16
        %v4377 = vor.u32 %v4375, %v4373
        %v4379 = vshll.u32 %v4289, 16
        %v4381 = vrot.slane %v4379, 1
        %v4382 = vsel %vm2888, %v4377, %v4381
        %v4383 = vshrl.u32 %v4289, 16
        %v4385 = vor.u32 %v4383, %v4381
        %v4387 = vshll.u32 %v4290, 16
        %v4389 = vrot.slane %v4387, 1
        %v4390 = vsel %vm2888, %v4385, %v4389
        %v4391 = vshrl.u32 %v4290, 16
        %v4393 = vor.u32 %v4391, %v4389
        %v4395 = vshll.u32 %v4291, 16
        %v4397 = vrot.slane %v4395, 1
        %v4398 = vsel %vm2888, %v4393, %v4397
        %v4399 = vshrl.u32 %v4291, 16
        %v4401 = vor.u32 %v4399, %v4397
        %v4403 = vshll.u32 %v4292, 16
        %v4405 = vrot.slane %v4403, 1
        %v4406 = vsel %vm2888, %v4401, %v4405
        %v4407 = vshrl.u32 %v4292, 16
        %v4409 = vor.u32 %v4407, %v4405
        %v4411 = vshll.u32 %v4293, 16
        %v4413 = vrot.slane %v4411, 1
        %v4414 = vsel %vm2888, %v4409, %v4413
        %v4415 = vshrl.u32 %v4293, 16
        %v4417 = vor.u32 %v4415, %v4413
        %v4419 = vshll.u32 %v4294, 16
        %v4421 = vrot.slane %v4419, 1
        %v4422 = vsel %vm2888, %v4417, %v4421
        %v4423 = vshrl.u32 %v4294, 16
        %v4425 = vor.u32 %v4423, %v4421
        %v4427 = vshll.u32 %v4295, 16
        %v4429 = vrot.slane %v4427, 1
        %v4430 = vsel %vm2888, %v4425, %v4429
        %v4431 = vshrl.u32 %v4295, 16
        %v4433 = vor.u32 %v4431, %v4429
        %v4435 = vshll.u32 %v4296, 16
        %v4437 = vrot.slane %v4435, 1
        %v4438 = vsel %vm2888, %v4433, %v4437
        %v4439 = vshrl.u32 %v4296, 16
        %v4441 = vor.u32 %v4439, %v4437
        %v4443 = vshll.u32 %v4297, 16
        %v4445 = vrot.slane %v4443, 1
        %v4446 = vsel %vm2888, %v4441, %v4445
        %v4479 = vunpack.c.l.b16 %v4299
        %v4480 = vunpack.c.l.b16 %v4300
        %v4481 = vunpack.c.l.b16 %v4301
        %v4482 = vunpack.c.l.b16 %v4302
        %v4483 = vunpack.c.l.b16 %v4303
        %v4484 = vunpack.c.l.b16 %v4304
        %v4485 = vunpack.c.l.b16 %v4305
        %v4486 = vunpack.c.l.b16 %v4306
        %v4487 = vunpack.c.l.b16 %v4307
        %v4488 = vunpack.c.l.b16 %v4308
        %v4489 = vunpack.c.l.b16 %v4309
        %v4490 = vunpack.c.l.b16 %v4310
        %v4491 = vunpack.c.l.b16 %v4311
        %v4492 = vunpack.c.l.b16 %v4312
        %v4493 = vunpack.c.l.b16 %v4313
        %v4494 = vunpack.c.l.b16 %v4314
        %v4495 = vpack.c.b16 %v4480, %v4479
        %v4496 = vpack.c.b16 %v4482, %v4481
        %v4497 = vpack.c.b16 %v4484, %v4483
        %v4498 = vpack.c.b16 %v4486, %v4485
        %v4499 = vpack.c.b16 %v4488, %v4487
        %v4500 = vpack.c.b16 %v4490, %v4489
        %v4501 = vpack.c.b16 %v4492, %v4491
        %v4502 = vpack.c.b16 %v4494, %v4493
        %4511 = vmatpush.bf16.msra.mxu0 %v4502
        %4512 = vmatpush.bf16.msra.mxu0 %v4501
        %4513 = vmatpush.bf16.msra.mxu0 %v4500
        %4514 = vmatpush.bf16.msra.mxu0 %v4499
        %4515 = vmatpush.bf16.msra.mxu0 %v4498
        %4516 = vmatpush.bf16.msra.mxu0 %v4497
        %4517 = vmatpush.bf16.msra.mxu0 %v4496
        %4518 = vmatpush.bf16.msra.mxu0 %v4495
        %4519 = vmatmul.bf16.gmra.mxu0 %v4326
        %v4520 = vpop.f32.mrf.mxu0
        %v4521 = vadd.f32 0.0, %v4520
        %v4522 = vpop.f32.mrf.mxu0
        %v4523 = vadd.f32 0.0, %v4522
        %4524 = vmatmul.bf16.gmra.mxu0 %v4334
        %v4525 = vpop.f32.mrf.mxu0
        %v4526 = vadd.f32 0.0, %v4525
        %v4527 = vpop.f32.mrf.mxu0
        %v4528 = vadd.f32 0.0, %v4527
        %4529 = vmatmul.bf16.gmra.mxu0 %v4342
        %v4530 = vpop.f32.mrf.mxu0
        %v4531 = vadd.f32 0.0, %v4530
        %v4532 = vpop.f32.mrf.mxu0
        %v4533 = vadd.f32 0.0, %v4532
        %4534 = vmatmul.bf16.gmra.mxu0 %v4350
        %v4535 = vpop.f32.mrf.mxu0
        %v4536 = vadd.f32 0.0, %v4535
        %v4537 = vpop.f32.mrf.mxu0
        %v4538 = vadd.f32 0.0, %v4537
        %4539 = vmatmul.bf16.gmra.mxu0 %v4358
        %v4540 = vpop.f32.mrf.mxu0
        %v4541 = vadd.f32 0.0, %v4540
        %v4542 = vpop.f32.mrf.mxu0
        %v4543 = vadd.f32 0.0, %v4542
        %4544 = vmatmul.bf16.gmra.mxu0 %v4366
        %v4545 = vpop.f32.mrf.mxu0
        %v4546 = vadd.f32 0.0, %v4545
        %v4547 = vpop.f32.mrf.mxu0
        %v4548 = vadd.f32 0.0, %v4547
        %4549 = vmatmul.bf16.gmra.mxu0 %v4374
        %v4550 = vpop.f32.mrf.mxu0
        %v4551 = vadd.f32 0.0, %v4550
        %v4552 = vpop.f32.mrf.mxu0
        %v4553 = vadd.f32 0.0, %v4552
        %4554 = vmatmul.bf16.gmra.mxu0 %v4382
        %v4555 = vpop.f32.mrf.mxu0
        %v4556 = vadd.f32 0.0, %v4555
        %v4557 = vpop.f32.mrf.mxu0
        %v4558 = vadd.f32 0.0, %v4557
        %4559 = vmatmul.bf16.gmra.mxu0 %v4390
        %v4560 = vpop.f32.mrf.mxu0
        %v4561 = vadd.f32 0.0, %v4560
        %v4562 = vpop.f32.mrf.mxu0
        %v4563 = vadd.f32 0.0, %v4562
        %4564 = vmatmul.bf16.gmra.mxu0 %v4398
        %v4565 = vpop.f32.mrf.mxu0
        %v4566 = vadd.f32 0.0, %v4565
        %v4567 = vpop.f32.mrf.mxu0
        %v4568 = vadd.f32 0.0, %v4567
        %4569 = vmatmul.bf16.gmra.mxu0 %v4406
        %v4570 = vpop.f32.mrf.mxu0
        %v4571 = vadd.f32 0.0, %v4570
        %v4572 = vpop.f32.mrf.mxu0
        %v4573 = vadd.f32 0.0, %v4572
        %4574 = vmatmul.bf16.gmra.mxu0 %v4414
        %v4575 = vpop.f32.mrf.mxu0
        %v4576 = vadd.f32 0.0, %v4575
        %v4577 = vpop.f32.mrf.mxu0
        %v4578 = vadd.f32 0.0, %v4577
        %4579 = vmatmul.bf16.gmra.mxu0 %v4422
        %v4580 = vpop.f32.mrf.mxu0
        %v4581 = vadd.f32 0.0, %v4580
        %v4582 = vpop.f32.mrf.mxu0
        %v4583 = vadd.f32 0.0, %v4582
        %4584 = vmatmul.bf16.gmra.mxu0 %v4430
        %v4585 = vpop.f32.mrf.mxu0
        %v4586 = vadd.f32 0.0, %v4585
        %v4587 = vpop.f32.mrf.mxu0
        %v4588 = vadd.f32 0.0, %v4587
        %4589 = vmatmul.bf16.gmra.mxu0 %v4438
        %v4590 = vpop.f32.mrf.mxu0
        %v4591 = vadd.f32 0.0, %v4590
        %v4592 = vpop.f32.mrf.mxu0
        %v4593 = vadd.f32 0.0, %v4592
        %4594 = vmatmul.bf16.gmra.mxu0 %v4446
        %v4595 = vpop.f32.mrf.mxu0
        %v4596 = vadd.f32 0.0, %v4595
        %v4597 = vpop.f32.mrf.mxu0
        %v4598 = vadd.f32 0.0, %v4597
        %4599 = vdwg.mxu0
        %v4600 = vld [vmem:[#allocation3] sm:$0xff]
        %v4601 = vld [vmem:[#allocation3 + $0x8] sm:$0xff]
        %v4602 = vld [vmem:[#allocation3 + $0x10] sm:$0xff]
        %v4603 = vld [vmem:[#allocation3 + $0x18] sm:$0xff]
        %v4604 = vld [vmem:[#allocation3 + $0x20] sm:$0xff]
        %v4605 = vld [vmem:[#allocation3 + $0x28] sm:$0xff]
        %v4606 = vld [vmem:[#allocation3 + $0x30] sm:$0xff]
        %v4607 = vld [vmem:[#allocation3 + $0x38] sm:$0xff]
        %v4608 = vld [vmem:[#allocation3 + $0x40] sm:$0xff]
        %v4609 = vld [vmem:[#allocation3 + $0x48] sm:$0xff]
        %v4610 = vld [vmem:[#allocation3 + $0x50] sm:$0xff]
        %v4611 = vld [vmem:[#allocation3 + $0x58] sm:$0xff]
        %v4612 = vld [vmem:[#allocation3 + $0x60] sm:$0xff]
        %v4613 = vld [vmem:[#allocation3 + $0x68] sm:$0xff]
        %v4614 = vld [vmem:[#allocation3 + $0x70] sm:$0xff]
        %v4615 = vld [vmem:[#allocation3 + $0x78] sm:$0xff]
        %v4616 = vld [vmem:[#allocation3 + $0x80] sm:$0xff]
        %v4617 = vld [vmem:[#allocation3 + $0x88] sm:$0xff]
        %v4618 = vld [vmem:[#allocation3 + $0x90] sm:$0xff]
        %v4619 = vld [vmem:[#allocation3 + $0x98] sm:$0xff]
        %v4620 = vld [vmem:[#allocation3 + $0xa0] sm:$0xff]
        %v4621 = vld [vmem:[#allocation3 + $0xa8] sm:$0xff]
        %v4622 = vld [vmem:[#allocation3 + $0xb0] sm:$0xff]
        %v4623 = vld [vmem:[#allocation3 + $0xb8] sm:$0xff]
        %v4624 = vld [vmem:[#allocation3 + $0xc0] sm:$0xff]
        %v4625 = vld [vmem:[#allocation3 + $0xc8] sm:$0xff]
        %v4626 = vld [vmem:[#allocation3 + $0xd0] sm:$0xff]
        %v4627 = vld [vmem:[#allocation3 + $0xd8] sm:$0xff]
        %v4628 = vld [vmem:[#allocation3 + $0xe0] sm:$0xff]
        %v4629 = vld [vmem:[#allocation3 + $0xe8] sm:$0xff]
        %v4630 = vld [vmem:[#allocation3 + $0xf0] sm:$0xff]
        %v4631 = vld [vmem:[#allocation3 + $0xf8] sm:$0xff]
        %v4632 = vadd.f32 %v4600, %v4521
        %v4633 = vadd.f32 %v4601, %v4523
        %v4634 = vadd.f32 %v4602, %v4526
        %v4635 = vadd.f32 %v4603, %v4528
        %v4636 = vadd.f32 %v4604, %v4531
        %v4637 = vadd.f32 %v4605, %v4533
        %v4638 = vadd.f32 %v4606, %v4536
        %v4639 = vadd.f32 %v4607, %v4538
        %v4640 = vadd.f32 %v4608, %v4541
        %v4641 = vadd.f32 %v4609, %v4543
        %v4642 = vadd.f32 %v4610, %v4546
        %v4643 = vadd.f32 %v4611, %v4548
        %v4644 = vadd.f32 %v4612, %v4551
        %v4645 = vadd.f32 %v4613, %v4553
        %v4646 = vadd.f32 %v4614, %v4556
        %v4647 = vadd.f32 %v4615, %v4558
        %v4648 = vadd.f32 %v4616, %v4561
        %v4649 = vadd.f32 %v4617, %v4563
        %v4650 = vadd.f32 %v4618, %v4566
        %v4651 = vadd.f32 %v4619, %v4568
        %v4652 = vadd.f32 %v4620, %v4571
        %v4653 = vadd.f32 %v4621, %v4573
        %v4654 = vadd.f32 %v4622, %v4576
        %v4655 = vadd.f32 %v4623, %v4578
        %v4656 = vadd.f32 %v4624, %v4581
        %v4657 = vadd.f32 %v4625, %v4583
        %v4658 = vadd.f32 %v4626, %v4586
        %v4659 = vadd.f32 %v4627, %v4588
        %v4660 = vadd.f32 %v4628, %v4591
        %v4661 = vadd.f32 %v4629, %v4593
        %v4662 = vadd.f32 %v4630, %v4596
        %v4663 = vadd.f32 %v4631, %v4598
        %4664 = vst [vmem:[#allocation3] sm:$0xff] %v4632
        %4665 = vst [vmem:[#allocation3 + $0x8] sm:$0xff] %v4633
        %4666 = vst [vmem:[#allocation3 + $0x10] sm:$0xff] %v4634
        %4667 = vst [vmem:[#allocation3 + $0x18] sm:$0xff] %v4635
        %4668 = vst [vmem:[#allocation3 + $0x20] sm:$0xff] %v4636
        %4669 = vst [vmem:[#allocation3 + $0x28] sm:$0xff] %v4637
        %4670 = vst [vmem:[#allocation3 + $0x30] sm:$0xff] %v4638
        %4671 = vst [vmem:[#allocation3 + $0x38] sm:$0xff] %v4639
        %4672 = vst [vmem:[#allocation3 + $0x40] sm:$0xff] %v4640
        %4673 = vst [vmem:[#allocation3 + $0x48] sm:$0xff] %v4641
        %4674 = vst [vmem:[#allocation3 + $0x50] sm:$0xff] %v4642
        %4675 = vst [vmem:[#allocation3 + $0x58] sm:$0xff] %v4643
        %4676 = vst [vmem:[#allocation3 + $0x60] sm:$0xff] %v4644
        %4677 = vst [vmem:[#allocation3 + $0x68] sm:$0xff] %v4645
        %4678 = vst [vmem:[#allocation3 + $0x70] sm:$0xff] %v4646
        %4679 = vst [vmem:[#allocation3 + $0x78] sm:$0xff] %v4647
        %4680 = vst [vmem:[#allocation3 + $0x80] sm:$0xff] %v4648
        %4681 = vst [vmem:[#allocation3 + $0x88] sm:$0xff] %v4649
        %4682 = vst [vmem:[#allocation3 + $0x90] sm:$0xff] %v4650
        %4683 = vst [vmem:[#allocation3 + $0x98] sm:$0xff] %v4651
        %4684 = vst [vmem:[#allocation3 + $0xa0] sm:$0xff] %v4652
        %4685 = vst [vmem:[#allocation3 + $0xa8] sm:$0xff] %v4653
        %4686 = vst [vmem:[#allocation3 + $0xb0] sm:$0xff] %v4654
        %4687 = vst [vmem:[#allocation3 + $0xb8] sm:$0xff] %v4655
        %4688 = vst [vmem:[#allocation3 + $0xc0] sm:$0xff] %v4656
        %4689 = vst [vmem:[#allocation3 + $0xc8] sm:$0xff] %v4657
        %4690 = vst [vmem:[#allocation3 + $0xd0] sm:$0xff] %v4658
        %4691 = vst [vmem:[#allocation3 + $0xd8] sm:$0xff] %v4659
        %4692 = vst [vmem:[#allocation3 + $0xe0] sm:$0xff] %v4660
        %4693 = vst [vmem:[#allocation3 + $0xe8] sm:$0xff] %v4661
        %4694 = vst [vmem:[#allocation3 + $0xf0] sm:$0xff] %v4662
        %4695 = vst [vmem:[#allocation3 + $0xf8] sm:$0xff] %v4663
        %v4696 = vld [vmem:[#allocation2 + $0x10] sm:$0x8]
        %v4697 = vld [vmem:[#allocation2 + $0x14] sm:$0xf]
        %v4698 = vld [vmem:[#allocation2 + $0x18] sm:$0xf]
        %v4699 = vld [vmem:[#allocation2 + $0x1c] sm:$0xf]
        %v4700 = vld [vmem:[#allocation2 + $0x20] sm:$0xf]
        %v4701 = vld [vmem:[#allocation2 + $0x24] sm:$0xf]
        %v4702 = vld [vmem:[#allocation2 + $0x28] sm:$0xf]
        %v4703 = vld [vmem:[#allocation2 + $0x2c] sm:$0xf]
        %v4704 = vld [vmem:[#allocation2 + $0x30] sm:$0xf]
        %v4705 = vld [vmem:[#allocation2 + $0x34] sm:$0xf]
        %v4706 = vld [vmem:[#allocation2 + $0x38] sm:$0xf]
        %v4707 = vld [vmem:[#allocation2 + $0x3c] sm:$0xf]
        %v4708 = vld [vmem:[#allocation2 + $0x40] sm:$0xf]
        %v4709 = vld [vmem:[#allocation2 + $0x44] sm:$0xf]
        %v4710 = vld [vmem:[#allocation2 + $0x48] sm:$0xf]
        %v4711 = vld [vmem:[#allocation2 + $0x4c] sm:$0xf]
        %v4712 = vld [vmem:[#allocation2 + $0x50] sm:$0xf]
        %v4713 = vld [vmem:[#allocation2 + $0x54] sm:$0xf]
        %v4714 = vld [vmem:[#allocation2 + $0x58] sm:$0xf]
        %v4715 = vld [vmem:[#allocation2 + $0x5c] sm:$0xf]
        %v4716 = vld [vmem:[#allocation2 + $0x60] sm:$0xf]
        %v4717 = vld [vmem:[#allocation2 + $0x64] sm:$0xf]
        %v4718 = vld [vmem:[#allocation2 + $0x68] sm:$0xf]
        %v4719 = vld [vmem:[#allocation2 + $0x6c] sm:$0xf]
        %v4720 = vld [vmem:[#allocation2 + $0x70] sm:$0xf]
        %v4721 = vld [vmem:[#allocation2 + $0x74] sm:$0xf]
        %v4722 = vld [vmem:[#allocation2 + $0x78] sm:$0xf]
        %v4723 = vld [vmem:[#allocation2 + $0x7c] sm:$0xf]
        %v4724 = vld [vmem:[#allocation2 + $0x80] sm:$0xf]
        %v4725 = vld [vmem:[#allocation2 + $0x84] sm:$0xf]
        %v4726 = vld [vmem:[#allocation2 + $0x88] sm:$0xf]
        %v4727 = vld [vmem:[#allocation2 + $0x8c] sm:$0xf]
        %v4728 = vld [vmem:[#allocation2 + $0x90] sm:$0xf]
        %v4729 = vunpack.c.l.bf16 %v4696
        %v4730 = vunpack.c.l.bf16 %v4697
        %v4731 = vunpack.c.l.bf16 %v4698
        %v4732 = vunpack.c.l.bf16 %v4699
        %v4733 = vunpack.c.l.bf16 %v4700
        %v4734 = vunpack.c.l.bf16 %v4701
        %v4735 = vunpack.c.l.bf16 %v4702
        %v4736 = vunpack.c.l.bf16 %v4703
        %v4737 = vunpack.c.l.bf16 %v4704
        %v4738 = vunpack.c.l.bf16 %v4705
        %v4739 = vunpack.c.l.bf16 %v4706
        %v4740 = vunpack.c.l.bf16 %v4707
        %v4741 = vunpack.c.l.bf16 %v4708
        %v4742 = vunpack.c.l.bf16 %v4709
        %v4743 = vunpack.c.l.bf16 %v4710
        %v4744 = vunpack.c.l.bf16 %v4711
        %v4745 = vunpack.c.l.bf16 %v4712
        %v4746 = vunpack.c.l.bf16 %v4713
        %v4747 = vunpack.c.l.bf16 %v4714
        %v4748 = vunpack.c.l.bf16 %v4715
        %v4749 = vunpack.c.l.bf16 %v4716
        %v4750 = vunpack.c.l.bf16 %v4717
        %v4751 = vunpack.c.l.bf16 %v4718
        %v4752 = vunpack.c.l.bf16 %v4719
        %v4753 = vunpack.c.l.bf16 %v4720
        %v4754 = vunpack.c.l.bf16 %v4721
        %v4755 = vunpack.c.l.bf16 %v4722
        %v4756 = vunpack.c.l.bf16 %v4723
        %v4757 = vunpack.c.l.bf16 %v4724
        %v4758 = vunpack.c.l.bf16 %v4725
        %v4759 = vunpack.c.l.bf16 %v4726
        %v4760 = vunpack.c.l.bf16 %v4727
        %v4761 = vunpack.c.l.bf16 %v4728
        %v4762 = vmul.f32 %v4729, %v1428
        %v4763 = vmul.f32 %v4730, %v1430
        %v4764 = vmul.f32 %v4731, %v1432
        %v4765 = vmul.f32 %v4732, %v1434
        %v4766 = vmul.f32 %v4733, %v1436
        %v4767 = vmul.f32 %v4734, %v1438
        %v4768 = vmul.f32 %v4735, %v1440
        %v4769 = vmul.f32 %v4736, %v1442
        %v4770 = vmul.f32 %v4737, %v1444
        %v4771 = vmul.f32 %v4738, %v1446
        %v4772 = vmul.f32 %v4739, %v1448
        %v4773 = vmul.f32 %v4740, %v1450
        %v4774 = vmul.f32 %v4741, %v1452
        %v4775 = vmul.f32 %v4742, %v1454
        %v4776 = vmul.f32 %v4743, %v1456
        %v4777 = vmul.f32 %v4744, %v1458
        %v4778 = vmul.f32 %v4745, %v1460
        %v4779 = vmul.f32 %v4746, %v1462
        %v4780 = vmul.f32 %v4747, %v1464
        %v4781 = vmul.f32 %v4748, %v1466
        %v4782 = vmul.f32 %v4749, %v1468
        %v4783 = vmul.f32 %v4750, %v1470
        %v4784 = vmul.f32 %v4751, %v1472
        %v4785 = vmul.f32 %v4752, %v1474
        %v4786 = vmul.f32 %v4753, %v1476
        %v4787 = vmul.f32 %v4754, %v1478
        %v4788 = vmul.f32 %v4755, %v1480
        %v4789 = vmul.f32 %v4756, %v1482
        %v4790 = vmul.f32 %v4757, %v1484
        %v4791 = vmul.f32 %v4758, %v1486
        %v4792 = vmul.f32 %v4759, %v1488
        %v4793 = vmul.f32 %v4760, %v1490
        %v4794 = vmul.f32 %v4761, %v1489
        %v4795 = vpack.c.bf16 %v4763, %v4762
        %v4796 = vpack.c.bf16 %v4765, %v4764
        %v4797 = vpack.c.bf16 %v4767, %v4766
        %v4798 = vpack.c.bf16 %v4769, %v4768
        %v4799 = vpack.c.bf16 %v4771, %v4770
        %v4800 = vpack.c.bf16 %v4773, %v4772
        %v4801 = vpack.c.bf16 %v4775, %v4774
        %v4802 = vpack.c.bf16 %v4777, %v4776
        %v4803 = vpack.c.bf16 %v4779, %v4778
        %v4804 = vpack.c.bf16 %v4781, %v4780
        %v4805 = vpack.c.bf16 %v4783, %v4782
        %v4806 = vpack.c.bf16 %v4785, %v4784
        %v4807 = vpack.c.bf16 %v4787, %v4786
        %v4808 = vpack.c.bf16 %v4789, %v4788
        %v4809 = vpack.c.bf16 %v4791, %v4790
        %v4810 = vpack.c.bf16 %v4793, %v4792
        %v4811 = vpack.c.bf16 %v4794, %v4794
        %s4812 = scalar_lea.vmem [#allocation7], 384
        %v4813 = vld [vmem:[%s4812] sm:$0xf]
        %v4814 = vld [vmem:[%s4812 + $0x4] sm:$0xf]
        %v4815 = vld [vmem:[%s4812 + $0x8] sm:$0xf]
        %v4816 = vld [vmem:[%s4812 + $0xc] sm:$0xf]
        %v4817 = vld [vmem:[%s4812 + $0x10] sm:$0xf]
        %v4818 = vld [vmem:[%s4812 + $0x14] sm:$0xf]
        %v4819 = vld [vmem:[%s4812 + $0x18] sm:$0xf]
        %v4820 = vld [vmem:[%s4812 + $0x1c] sm:$0xf]
        %v4821 = vld [vmem:[%s4812 + $0x20] sm:$0xf]
        %v4822 = vld [vmem:[%s4812 + $0x24] sm:$0xf]
        %v4823 = vld [vmem:[%s4812 + $0x28] sm:$0xf]
        %v4824 = vld [vmem:[%s4812 + $0x2c] sm:$0xf]
        %v4825 = vld [vmem:[%s4812 + $0x30] sm:$0xf]
        %v4826 = vld [vmem:[%s4812 + $0x34] sm:$0xf]
        %v4827 = vld [vmem:[%s4812 + $0x38] sm:$0xf]
        %v4828 = vld [vmem:[%s4812 + $0x3c] sm:$0xf]
        %v4830 = vshrl.u32 %v4795, 16
        %v4832 = vrot.slane %v4830, 3
        %v4833 = vshll.u32 %v4795, 16
        %v4835 = vrot.slane %v4833, 4
        %v4836 = vor.u32 %v4832, %v4835
        %v4838 = vshrl.u32 %v4796, 16
        %v4840 = vrot.slane %v4838, 3
        %v4841 = vshll.u32 %v4796, 16
        %v4843 = vrot.slane %v4841, 4
        %v4844 = vor.u32 %v4840, %v4843
        %v4845 = vsel %vm1590, %v4836, %v4844
        %v4847 = vshrl.u32 %v4797, 16
        %v4849 = vrot.slane %v4847, 3
        %v4850 = vshll.u32 %v4797, 16
        %v4852 = vrot.slane %v4850, 4
        %v4853 = vor.u32 %v4849, %v4852
        %v4854 = vsel %vm1590, %v4844, %v4853
        %v4856 = vshrl.u32 %v4798, 16
        %v4858 = vrot.slane %v4856, 3
        %v4859 = vshll.u32 %v4798, 16
        %v4861 = vrot.slane %v4859, 4
        %v4862 = vor.u32 %v4858, %v4861
        %v4863 = vsel %vm1590, %v4853, %v4862
        %v4865 = vshrl.u32 %v4799, 16
        %v4867 = vrot.slane %v4865, 3
        %v4868 = vshll.u32 %v4799, 16
        %v4870 = vrot.slane %v4868, 4
        %v4871 = vor.u32 %v4867, %v4870
        %v4872 = vsel %vm1590, %v4862, %v4871
        %v4874 = vshrl.u32 %v4800, 16
        %v4876 = vrot.slane %v4874, 3
        %v4877 = vshll.u32 %v4800, 16
        %v4879 = vrot.slane %v4877, 4
        %v4880 = vor.u32 %v4876, %v4879
        %v4881 = vsel %vm1590, %v4871, %v4880
        %v4883 = vshrl.u32 %v4801, 16
        %v4885 = vrot.slane %v4883, 3
        %v4886 = vshll.u32 %v4801, 16
        %v4888 = vrot.slane %v4886, 4
        %v4889 = vor.u32 %v4885, %v4888
        %v4890 = vsel %vm1590, %v4880, %v4889
        %v4892 = vshrl.u32 %v4802, 16
        %v4894 = vrot.slane %v4892, 3
        %v4895 = vshll.u32 %v4802, 16
        %v4897 = vrot.slane %v4895, 4
        %v4898 = vor.u32 %v4894, %v4897
        %v4899 = vsel %vm1590, %v4889, %v4898
        %v4901 = vshrl.u32 %v4803, 16
        %v4903 = vrot.slane %v4901, 3
        %v4904 = vshll.u32 %v4803, 16
        %v4906 = vrot.slane %v4904, 4
        %v4907 = vor.u32 %v4903, %v4906
        %v4908 = vsel %vm1590, %v4898, %v4907
        %v4910 = vshrl.u32 %v4804, 16
        %v4912 = vrot.slane %v4910, 3
        %v4913 = vshll.u32 %v4804, 16
        %v4915 = vrot.slane %v4913, 4
        %v4916 = vor.u32 %v4912, %v4915
        %v4917 = vsel %vm1590, %v4907, %v4916
        %v4919 = vshrl.u32 %v4805, 16
        %v4921 = vrot.slane %v4919, 3
        %v4922 = vshll.u32 %v4805, 16
        %v4924 = vrot.slane %v4922, 4
        %v4925 = vor.u32 %v4921, %v4924
        %v4926 = vsel %vm1590, %v4916, %v4925
        %v4928 = vshrl.u32 %v4806, 16
        %v4930 = vrot.slane %v4928, 3
        %v4931 = vshll.u32 %v4806, 16
        %v4933 = vrot.slane %v4931, 4
        %v4934 = vor.u32 %v4930, %v4933
        %v4935 = vsel %vm1590, %v4925, %v4934
        %v4937 = vshrl.u32 %v4807, 16
        %v4939 = vrot.slane %v4937, 3
        %v4940 = vshll.u32 %v4807, 16
        %v4942 = vrot.slane %v4940, 4
        %v4943 = vor.u32 %v4939, %v4942
        %v4944 = vsel %vm1590, %v4934, %v4943
        %v4946 = vshrl.u32 %v4808, 16
        %v4948 = vrot.slane %v4946, 3
        %v4949 = vshll.u32 %v4808, 16
        %v4951 = vrot.slane %v4949, 4
        %v4952 = vor.u32 %v4948, %v4951
        %v4953 = vsel %vm1590, %v4943, %v4952
        %v4955 = vshrl.u32 %v4809, 16
        %v4957 = vrot.slane %v4955, 3
        %v4958 = vshll.u32 %v4809, 16
        %v4960 = vrot.slane %v4958, 4
        %v4961 = vor.u32 %v4957, %v4960
        %v4962 = vsel %vm1590, %v4952, %v4961
        %v4964 = vshrl.u32 %v4810, 16
        %v4966 = vrot.slane %v4964, 3
        %v4967 = vshll.u32 %v4810, 16
        %v4969 = vrot.slane %v4967, 4
        %v4970 = vor.u32 %v4966, %v4969
        %v4971 = vsel %vm1590, %v4961, %v4970
        %v4973 = vshrl.u32 %v4811, 16
        %v4975 = vrot.slane %v4973, 3
        %v4976 = vshll.u32 %v4811, 16
        %v4978 = vrot.slane %v4976, 4
        %v4979 = vor.u32 %v4975, %v4978
        %v4980 = vsel %vm1590, %v4970, %v4979
        %v5013 = vunpack.c.l.b16 %v4813
        %v5014 = vunpack.c.l.b16 %v4814
        %v5015 = vunpack.c.l.b16 %v4815
        %v5016 = vunpack.c.l.b16 %v4816
        %v5017 = vunpack.c.l.b16 %v4817
        %v5018 = vunpack.c.l.b16 %v4818
        %v5019 = vunpack.c.l.b16 %v4819
        %v5020 = vunpack.c.l.b16 %v4820
        %v5021 = vunpack.c.l.b16 %v4821
        %v5022 = vunpack.c.l.b16 %v4822
        %v5023 = vunpack.c.l.b16 %v4823
        %v5024 = vunpack.c.l.b16 %v4824
        %v5025 = vunpack.c.l.b16 %v4825
        %v5026 = vunpack.c.l.b16 %v4826
        %v5027 = vunpack.c.l.b16 %v4827
        %v5028 = vunpack.c.l.b16 %v4828
        %v5029 = vpack.c.b16 %v5014, %v5013
        %v5030 = vpack.c.b16 %v5016, %v5015
        %v5031 = vpack.c.b16 %v5018, %v5017
        %v5032 = vpack.c.b16 %v5020, %v5019
        %v5033 = vpack.c.b16 %v5022, %v5021
        %v5034 = vpack.c.b16 %v5024, %v5023
        %v5035 = vpack.c.b16 %v5026, %v5025
        %v5036 = vpack.c.b16 %v5028, %v5027
        %5045 = vmatpush.bf16.msra.mxu0 %v5036
        %5046 = vmatpush.bf16.msra.mxu0 %v5035
        %5047 = vmatpush.bf16.msra.mxu0 %v5034
        %5048 = vmatpush.bf16.msra.mxu0 %v5033
        %5049 = vmatpush.bf16.msra.mxu0 %v5032
        %5050 = vmatpush.bf16.msra.mxu0 %v5031
        %5051 = vmatpush.bf16.msra.mxu0 %v5030
        %5052 = vmatpush.bf16.msra.mxu0 %v5029
        %5053 = vmatmul.bf16.gmra.mxu0 %v4845
        %v5054 = vpop.f32.mrf.mxu0
        %v5055 = vadd.f32 0.0, %v5054
        %v5056 = vpop.f32.mrf.mxu0
        %v5057 = vadd.f32 0.0, %v5056
        %5058 = vmatmul.bf16.gmra.mxu0 %v4854
        %v5059 = vpop.f32.mrf.mxu0
        %v5060 = vadd.f32 0.0, %v5059
        %v5061 = vpop.f32.mrf.mxu0
        %v5062 = vadd.f32 0.0, %v5061
        %5063 = vmatmul.bf16.gmra.mxu0 %v4863
        %v5064 = vpop.f32.mrf.mxu0
        %v5065 = vadd.f32 0.0, %v5064
        %v5066 = vpop.f32.mrf.mxu0
        %v5067 = vadd.f32 0.0, %v5066
        %5068 = vmatmul.bf16.gmra.mxu0 %v4872
        %v5069 = vpop.f32.mrf.mxu0
        %v5070 = vadd.f32 0.0, %v5069
        %v5071 = vpop.f32.mrf.mxu0
        %v5072 = vadd.f32 0.0, %v5071
        %5073 = vmatmul.bf16.gmra.mxu0 %v4881
        %v5074 = vpop.f32.mrf.mxu0
        %v5075 = vadd.f32 0.0, %v5074
        %v5076 = vpop.f32.mrf.mxu0
        %v5077 = vadd.f32 0.0, %v5076
        %5078 = vmatmul.bf16.gmra.mxu0 %v4890
        %v5079 = vpop.f32.mrf.mxu0
        %v5080 = vadd.f32 0.0, %v5079
        %v5081 = vpop.f32.mrf.mxu0
        %v5082 = vadd.f32 0.0, %v5081
        %5083 = vmatmul.bf16.gmra.mxu0 %v4899
        %v5084 = vpop.f32.mrf.mxu0
        %v5085 = vadd.f32 0.0, %v5084
        %v5086 = vpop.f32.mrf.mxu0
        %v5087 = vadd.f32 0.0, %v5086
        %5088 = vmatmul.bf16.gmra.mxu0 %v4908
        %v5089 = vpop.f32.mrf.mxu0
        %v5090 = vadd.f32 0.0, %v5089
        %v5091 = vpop.f32.mrf.mxu0
        %v5092 = vadd.f32 0.0, %v5091
        %5093 = vmatmul.bf16.gmra.mxu0 %v4917
        %v5094 = vpop.f32.mrf.mxu0
        %v5095 = vadd.f32 0.0, %v5094
        %v5096 = vpop.f32.mrf.mxu0
        %v5097 = vadd.f32 0.0, %v5096
        %5098 = vmatmul.bf16.gmra.mxu0 %v4926
        %v5099 = vpop.f32.mrf.mxu0
        %v5100 = vadd.f32 0.0, %v5099
        %v5101 = vpop.f32.mrf.mxu0
        %v5102 = vadd.f32 0.0, %v5101
        %5103 = vmatmul.bf16.gmra.mxu0 %v4935
        %v5104 = vpop.f32.mrf.mxu0
        %v5105 = vadd.f32 0.0, %v5104
        %v5106 = vpop.f32.mrf.mxu0
        %v5107 = vadd.f32 0.0, %v5106
        %5108 = vmatmul.bf16.gmra.mxu0 %v4944
        %v5109 = vpop.f32.mrf.mxu0
        %v5110 = vadd.f32 0.0, %v5109
        %v5111 = vpop.f32.mrf.mxu0
        %v5112 = vadd.f32 0.0, %v5111
        %5113 = vmatmul.bf16.gmra.mxu0 %v4953
        %v5114 = vpop.f32.mrf.mxu0
        %v5115 = vadd.f32 0.0, %v5114
        %v5116 = vpop.f32.mrf.mxu0
        %v5117 = vadd.f32 0.0, %v5116
        %5118 = vmatmul.bf16.gmra.mxu0 %v4962
        %v5119 = vpop.f32.mrf.mxu0
        %v5120 = vadd.f32 0.0, %v5119
        %v5121 = vpop.f32.mrf.mxu0
        %v5122 = vadd.f32 0.0, %v5121
        %5123 = vmatmul.bf16.gmra.mxu0 %v4971
        %v5124 = vpop.f32.mrf.mxu0
        %v5125 = vadd.f32 0.0, %v5124
        %v5126 = vpop.f32.mrf.mxu0
        %v5127 = vadd.f32 0.0, %v5126
        %5128 = vmatmul.bf16.gmra.mxu0 %v4980
        %v5129 = vpop.f32.mrf.mxu0
        %v5130 = vadd.f32 0.0, %v5129
        %v5131 = vpop.f32.mrf.mxu0
        %v5132 = vadd.f32 0.0, %v5131
        %5133 = vdwg.mxu0
        %v5134 = vld [vmem:[#allocation3] sm:$0xff]
        %v5135 = vld [vmem:[#allocation3 + $0x8] sm:$0xff]
        %v5136 = vld [vmem:[#allocation3 + $0x10] sm:$0xff]
        %v5137 = vld [vmem:[#allocation3 + $0x18] sm:$0xff]
        %v5138 = vld [vmem:[#allocation3 + $0x20] sm:$0xff]
        %v5139 = vld [vmem:[#allocation3 + $0x28] sm:$0xff]
        %v5140 = vld [vmem:[#allocation3 + $0x30] sm:$0xff]
        %v5141 = vld [vmem:[#allocation3 + $0x38] sm:$0xff]
        %v5142 = vld [vmem:[#allocation3 + $0x40] sm:$0xff]
        %v5143 = vld [vmem:[#allocation3 + $0x48] sm:$0xff]
        %v5144 = vld [vmem:[#allocation3 + $0x50] sm:$0xff]
        %v5145 = vld [vmem:[#allocation3 + $0x58] sm:$0xff]
        %v5146 = vld [vmem:[#allocation3 + $0x60] sm:$0xff]
        %v5147 = vld [vmem:[#allocation3 + $0x68] sm:$0xff]
        %v5148 = vld [vmem:[#allocation3 + $0x70] sm:$0xff]
        %v5149 = vld [vmem:[#allocation3 + $0x78] sm:$0xff]
        %v5150 = vld [vmem:[#allocation3 + $0x80] sm:$0xff]
        %v5151 = vld [vmem:[#allocation3 + $0x88] sm:$0xff]
        %v5152 = vld [vmem:[#allocation3 + $0x90] sm:$0xff]
        %v5153 = vld [vmem:[#allocation3 + $0x98] sm:$0xff]
        %v5154 = vld [vmem:[#allocation3 + $0xa0] sm:$0xff]
        %v5155 = vld [vmem:[#allocation3 + $0xa8] sm:$0xff]
        %v5156 = vld [vmem:[#allocation3 + $0xb0] sm:$0xff]
        %v5157 = vld [vmem:[#allocation3 + $0xb8] sm:$0xff]
        %v5158 = vld [vmem:[#allocation3 + $0xc0] sm:$0xff]
        %v5159 = vld [vmem:[#allocation3 + $0xc8] sm:$0xff]
        %v5160 = vld [vmem:[#allocation3 + $0xd0] sm:$0xff]
        %v5161 = vld [vmem:[#allocation3 + $0xd8] sm:$0xff]
        %v5162 = vld [vmem:[#allocation3 + $0xe0] sm:$0xff]
        %v5163 = vld [vmem:[#allocation3 + $0xe8] sm:$0xff]
        %v5164 = vld [vmem:[#allocation3 + $0xf0] sm:$0xff]
        %v5165 = vld [vmem:[#allocation3 + $0xf8] sm:$0xff]
        %v5166 = vadd.f32 %v5134, %v5055
        %v5167 = vadd.f32 %v5135, %v5057
        %v5168 = vadd.f32 %v5136, %v5060
        %v5169 = vadd.f32 %v5137, %v5062
        %v5170 = vadd.f32 %v5138, %v5065
        %v5171 = vadd.f32 %v5139, %v5067
        %v5172 = vadd.f32 %v5140, %v5070
        %v5173 = vadd.f32 %v5141, %v5072
        %v5174 = vadd.f32 %v5142, %v5075
        %v5175 = vadd.f32 %v5143, %v5077
        %v5176 = vadd.f32 %v5144, %v5080
        %v5177 = vadd.f32 %v5145, %v5082
        %v5178 = vadd.f32 %v5146, %v5085
        %v5179 = vadd.f32 %v5147, %v5087
        %v5180 = vadd.f32 %v5148, %v5090
        %v5181 = vadd.f32 %v5149, %v5092
        %v5182 = vadd.f32 %v5150, %v5095
        %v5183 = vadd.f32 %v5151, %v5097
        %v5184 = vadd.f32 %v5152, %v5100
        %v5185 = vadd.f32 %v5153, %v5102
        %v5186 = vadd.f32 %v5154, %v5105
        %v5187 = vadd.f32 %v5155, %v5107
        %v5188 = vadd.f32 %v5156, %v5110
        %v5189 = vadd.f32 %v5157, %v5112
        %v5190 = vadd.f32 %v5158, %v5115
        %v5191 = vadd.f32 %v5159, %v5117
        %v5192 = vadd.f32 %v5160, %v5120
        %v5193 = vadd.f32 %v5161, %v5122
        %v5194 = vadd.f32 %v5162, %v5125
        %v5195 = vadd.f32 %v5163, %v5127
        %v5196 = vadd.f32 %v5164, %v5130
        %v5197 = vadd.f32 %v5165, %v5132
        %5198 = vst [vmem:[#allocation3] sm:$0xff] %v5166
        %5199 = vst [vmem:[#allocation3 + $0x8] sm:$0xff] %v5167
        %5200 = vst [vmem:[#allocation3 + $0x10] sm:$0xff] %v5168
        %5201 = vst [vmem:[#allocation3 + $0x18] sm:$0xff] %v5169
        %5202 = vst [vmem:[#allocation3 + $0x20] sm:$0xff] %v5170
        %5203 = vst [vmem:[#allocation3 + $0x28] sm:$0xff] %v5171
        %5204 = vst [vmem:[#allocation3 + $0x30] sm:$0xff] %v5172
        %5205 = vst [vmem:[#allocation3 + $0x38] sm:$0xff] %v5173
        %5206 = vst [vmem:[#allocation3 + $0x40] sm:$0xff] %v5174
        %5207 = vst [vmem:[#allocation3 + $0x48] sm:$0xff] %v5175
        %5208 = vst [vmem:[#allocation3 + $0x50] sm:$0xff] %v5176
        %5209 = vst [vmem:[#allocation3 + $0x58] sm:$0xff] %v5177
        %5210 = vst [vmem:[#allocation3 + $0x60] sm:$0xff] %v5178
        %5211 = vst [vmem:[#allocation3 + $0x68] sm:$0xff] %v5179
        %5212 = vst [vmem:[#allocation3 + $0x70] sm:$0xff] %v5180
        %5213 = vst [vmem:[#allocation3 + $0x78] sm:$0xff] %v5181
        %5214 = vst [vmem:[#allocation3 + $0x80] sm:$0xff] %v5182
        %5215 = vst [vmem:[#allocation3 + $0x88] sm:$0xff] %v5183
        %5216 = vst [vmem:[#allocation3 + $0x90] sm:$0xff] %v5184
        %5217 = vst [vmem:[#allocation3 + $0x98] sm:$0xff] %v5185
        %5218 = vst [vmem:[#allocation3 + $0xa0] sm:$0xff] %v5186
        %5219 = vst [vmem:[#allocation3 + $0xa8] sm:$0xff] %v5187
        %5220 = vst [vmem:[#allocation3 + $0xb0] sm:$0xff] %v5188
        %5221 = vst [vmem:[#allocation3 + $0xb8] sm:$0xff] %v5189
        %5222 = vst [vmem:[#allocation3 + $0xc0] sm:$0xff] %v5190
        %5223 = vst [vmem:[#allocation3 + $0xc8] sm:$0xff] %v5191
        %5224 = vst [vmem:[#allocation3 + $0xd0] sm:$0xff] %v5192
        %5225 = vst [vmem:[#allocation3 + $0xd8] sm:$0xff] %v5193
        %5226 = vst [vmem:[#allocation3 + $0xe0] sm:$0xff] %v5194
        %5227 = vst [vmem:[#allocation3 + $0xe8] sm:$0xff] %v5195
        %5228 = vst [vmem:[#allocation3 + $0xf0] sm:$0xff] %v5196
        %5229 = vst [vmem:[#allocation3 + $0xf8] sm:$0xff] %v5197
        %v5230 = vld [vmem:[#allocation2 + $0x14] sm:$0xf]
        %v5231 = vld [vmem:[#allocation2 + $0x18] sm:$0xf]
        %v5232 = vld [vmem:[#allocation2 + $0x1c] sm:$0xf]
        %v5233 = vld [vmem:[#allocation2 + $0x20] sm:$0xf]
        %v5234 = vld [vmem:[#allocation2 + $0x24] sm:$0xf]
        %v5235 = vld [vmem:[#allocation2 + $0x28] sm:$0xf]
        %v5236 = vld [vmem:[#allocation2 + $0x2c] sm:$0xf]
        %v5237 = vld [vmem:[#allocation2 + $0x30] sm:$0xf]
        %v5238 = vld [vmem:[#allocation2 + $0x34] sm:$0xf]
        %v5239 = vld [vmem:[#allocation2 + $0x38] sm:$0xf]
        %v5240 = vld [vmem:[#allocation2 + $0x3c] sm:$0xf]
        %v5241 = vld [vmem:[#allocation2 + $0x40] sm:$0xf]
        %v5242 = vld [vmem:[#allocation2 + $0x44] sm:$0xf]
        %v5243 = vld [vmem:[#allocation2 + $0x48] sm:$0xf]
        %v5244 = vld [vmem:[#allocation2 + $0x4c] sm:$0xf]
        %v5245 = vld [vmem:[#allocation2 + $0x50] sm:$0xf]
        %v5246 = vld [vmem:[#allocation2 + $0x54] sm:$0xf]
        %v5247 = vld [vmem:[#allocation2 + $0x58] sm:$0xf]
        %v5248 = vld [vmem:[#allocation2 + $0x5c] sm:$0xf]
        %v5249 = vld [vmem:[#allocation2 + $0x60] sm:$0xf]
        %v5250 = vld [vmem:[#allocation2 + $0x64] sm:$0xf]
        %v5251 = vld [vmem:[#allocation2 + $0x68] sm:$0xf]
        %v5252 = vld [vmem:[#allocation2 + $0x6c] sm:$0xf]
        %v5253 = vld [vmem:[#allocation2 + $0x70] sm:$0xf]
        %v5254 = vld [vmem:[#allocation2 + $0x74] sm:$0xf]
        %v5255 = vld [vmem:[#allocation2 + $0x78] sm:$0xf]
        %v5256 = vld [vmem:[#allocation2 + $0x7c] sm:$0xf]
        %v5257 = vld [vmem:[#allocation2 + $0x80] sm:$0xf]
        %v5258 = vld [vmem:[#allocation2 + $0x84] sm:$0xf]
        %v5259 = vld [vmem:[#allocation2 + $0x88] sm:$0xf]
        %v5260 = vld [vmem:[#allocation2 + $0x8c] sm:$0xf]
        %v5261 = vld [vmem:[#allocation2 + $0x90] sm:$0xf]
        %s5262 = scalar_lea.vmem [#allocation7], 448
        %v5263 = vld [vmem:[%s5262] sm:$0xf]
        %v5264 = vld [vmem:[%s5262 + $0x4] sm:$0xf]
        %v5265 = vld [vmem:[%s5262 + $0x8] sm:$0xf]
        %v5266 = vld [vmem:[%s5262 + $0xc] sm:$0xf]
        %v5267 = vld [vmem:[%s5262 + $0x10] sm:$0xf]
        %v5268 = vld [vmem:[%s5262 + $0x14] sm:$0xf]
        %v5269 = vld [vmem:[%s5262 + $0x18] sm:$0xf]
        %v5270 = vld [vmem:[%s5262 + $0x1c] sm:$0xf]
        %v5271 = vld [vmem:[%s5262 + $0x20] sm:$0xf]
        %v5272 = vld [vmem:[%s5262 + $0x24] sm:$0xf]
        %v5273 = vld [vmem:[%s5262 + $0x28] sm:$0xf]
        %v5274 = vld [vmem:[%s5262 + $0x2c] sm:$0xf]
        %v5275 = vld [vmem:[%s5262 + $0x30] sm:$0xf]
        %v5276 = vld [vmem:[%s5262 + $0x34] sm:$0xf]
        %v5277 = vld [vmem:[%s5262 + $0x38] sm:$0xf]
        %v5278 = vld [vmem:[%s5262 + $0x3c] sm:$0xf]
        %v5311 = vunpack.c.l.b16 %v5230
        %v5312 = vunpack.c.l.b16 %v5231
        %v5313 = vunpack.c.l.b16 %v5232
        %v5314 = vunpack.c.l.b16 %v5233
        %v5315 = vunpack.c.l.b16 %v5234
        %v5316 = vunpack.c.l.b16 %v5235
        %v5317 = vunpack.c.l.b16 %v5236
        %v5318 = vunpack.c.l.b16 %v5237
        %v5319 = vunpack.c.l.b16 %v5238
        %v5320 = vunpack.c.l.b16 %v5239
        %v5321 = vunpack.c.l.b16 %v5240
        %v5322 = vunpack.c.l.b16 %v5241
        %v5323 = vunpack.c.l.b16 %v5242
        %v5324 = vunpack.c.l.b16 %v5243
        %v5325 = vunpack.c.l.b16 %v5244
        %v5326 = vunpack.c.l.b16 %v5245
        %v5327 = vunpack.c.l.b16 %v5246
        %v5328 = vunpack.c.l.b16 %v5247
        %v5329 = vunpack.c.l.b16 %v5248
        %v5330 = vunpack.c.l.b16 %v5249
        %v5331 = vunpack.c.l.b16 %v5250
        %v5332 = vunpack.c.l.b16 %v5251
        %v5333 = vunpack.c.l.b16 %v5252
        %v5334 = vunpack.c.l.b16 %v5253
        %v5335 = vunpack.c.l.b16 %v5254
        %v5336 = vunpack.c.l.b16 %v5255
        %v5337 = vunpack.c.l.b16 %v5256
        %v5338 = vunpack.c.l.b16 %v5257
        %v5339 = vunpack.c.l.b16 %v5258
        %v5340 = vunpack.c.l.b16 %v5259
        %v5341 = vunpack.c.l.b16 %v5260
        %v5342 = vunpack.c.l.b16 %v5261
        %v5343 = vpack.c.b16 %v5312, %v5311
        %v5344 = vpack.c.b16 %v5314, %v5313
        %v5345 = vpack.c.b16 %v5316, %v5315
        %v5346 = vpack.c.b16 %v5318, %v5317
        %v5347 = vpack.c.b16 %v5320, %v5319
        %v5348 = vpack.c.b16 %v5322, %v5321
        %v5349 = vpack.c.b16 %v5324, %v5323
        %v5350 = vpack.c.b16 %v5326, %v5325
        %v5351 = vpack.c.b16 %v5328, %v5327
        %v5352 = vpack.c.b16 %v5330, %v5329
        %v5353 = vpack.c.b16 %v5332, %v5331
        %v5354 = vpack.c.b16 %v5334, %v5333
        %v5355 = vpack.c.b16 %v5336, %v5335
        %v5356 = vpack.c.b16 %v5338, %v5337
        %v5357 = vpack.c.b16 %v5340, %v5339
        %v5358 = vpack.c.b16 %v5342, %v5341
        %v5391 = vunpack.c.l.b16 %v5263
        %v5392 = vunpack.c.l.b16 %v5264
        %v5393 = vunpack.c.l.b16 %v5265
        %v5394 = vunpack.c.l.b16 %v5266
        %v5395 = vunpack.c.l.b16 %v5267
        %v5396 = vunpack.c.l.b16 %v5268
        %v5397 = vunpack.c.l.b16 %v5269
        %v5398 = vunpack.c.l.b16 %v5270
        %v5399 = vunpack.c.l.b16 %v5271
        %v5400 = vunpack.c.l.b16 %v5272
        %v5401 = vunpack.c.l.b16 %v5273
        %v5402 = vunpack.c.l.b16 %v5274
        %v5403 = vunpack.c.l.b16 %v5275
        %v5404 = vunpack.c.l.b16 %v5276
        %v5405 = vunpack.c.l.b16 %v5277
        %v5406 = vunpack.c.l.b16 %v5278
        %v5407 = vpack.c.b16 %v5392, %v5391
        %v5408 = vpack.c.b16 %v5394, %v5393
        %v5409 = vpack.c.b16 %v5396, %v5395
        %v5410 = vpack.c.b16 %v5398, %v5397
        %v5411 = vpack.c.b16 %v5400, %v5399
        %v5412 = vpack.c.b16 %v5402, %v5401
        %v5413 = vpack.c.b16 %v5404, %v5403
        %v5414 = vpack.c.b16 %v5406, %v5405
        %5423 = vmatpush.bf16.msra.mxu0 %v5414
        %5424 = vmatpush.bf16.msra.mxu0 %v5413
        %5425 = vmatpush.bf16.msra.mxu0 %v5412
        %5426 = vmatpush.bf16.msra.mxu0 %v5411
        %5427 = vmatpush.bf16.msra.mxu0 %v5410
        %5428 = vmatpush.bf16.msra.mxu0 %v5409
        %5429 = vmatpush.bf16.msra.mxu0 %v5408
        %5430 = vmatpush.bf16.msra.mxu0 %v5407
        %5431 = vmatmul.bf16.gmra.mxu0 %v5343
        %v5432 = vpop.f32.mrf.mxu0
        %v5433 = vadd.f32 0.0, %v5432
        %v5434 = vpop.f32.mrf.mxu0
        %v5435 = vadd.f32 0.0, %v5434
        %5436 = vmatmul.bf16.gmra.mxu0 %v5344
        %v5437 = vpop.f32.mrf.mxu0
        %v5438 = vadd.f32 0.0, %v5437
        %v5439 = vpop.f32.mrf.mxu0
        %v5440 = vadd.f32 0.0, %v5439
        %5441 = vmatmul.bf16.gmra.mxu0 %v5345
        %v5442 = vpop.f32.mrf.mxu0
        %v5443 = vadd.f32 0.0, %v5442
        %v5444 = vpop.f32.mrf.mxu0
        %v5445 = vadd.f32 0.0, %v5444
        %5446 = vmatmul.bf16.gmra.mxu0 %v5346
        %v5447 = vpop.f32.mrf.mxu0
        %v5448 = vadd.f32 0.0, %v5447
        %v5449 = vpop.f32.mrf.mxu0
        %v5450 = vadd.f32 0.0, %v5449
        %5451 = vmatmul.bf16.gmra.mxu0 %v5347
        %v5452 = vpop.f32.mrf.mxu0
        %v5453 = vadd.f32 0.0, %v5452
        %v5454 = vpop.f32.mrf.mxu0
        %v5455 = vadd.f32 0.0, %v5454
        %5456 = vmatmul.bf16.gmra.mxu0 %v5348
        %v5457 = vpop.f32.mrf.mxu0
        %v5458 = vadd.f32 0.0, %v5457
        %v5459 = vpop.f32.mrf.mxu0
        %v5460 = vadd.f32 0.0, %v5459
        %5461 = vmatmul.bf16.gmra.mxu0 %v5349
        %v5462 = vpop.f32.mrf.mxu0
        %v5463 = vadd.f32 0.0, %v5462
        %v5464 = vpop.f32.mrf.mxu0
        %v5465 = vadd.f32 0.0, %v5464
        %5466 = vmatmul.bf16.gmra.mxu0 %v5350
        %v5467 = vpop.f32.mrf.mxu0
        %v5468 = vadd.f32 0.0, %v5467
        %v5469 = vpop.f32.mrf.mxu0
        %v5470 = vadd.f32 0.0, %v5469
        %5471 = vmatmul.bf16.gmra.mxu0 %v5351
        %v5472 = vpop.f32.mrf.mxu0
        %v5473 = vadd.f32 0.0, %v5472
        %v5474 = vpop.f32.mrf.mxu0
        %v5475 = vadd.f32 0.0, %v5474
        %5476 = vmatmul.bf16.gmra.mxu0 %v5352
        %v5477 = vpop.f32.mrf.mxu0
        %v5478 = vadd.f32 0.0, %v5477
        %v5479 = vpop.f32.mrf.mxu0
        %v5480 = vadd.f32 0.0, %v5479
        %5481 = vmatmul.bf16.gmra.mxu0 %v5353
        %v5482 = vpop.f32.mrf.mxu0
        %v5483 = vadd.f32 0.0, %v5482
        %v5484 = vpop.f32.mrf.mxu0
        %v5485 = vadd.f32 0.0, %v5484
        %5486 = vmatmul.bf16.gmra.mxu0 %v5354
        %v5487 = vpop.f32.mrf.mxu0
        %v5488 = vadd.f32 0.0, %v5487
        %v5489 = vpop.f32.mrf.mxu0
        %v5490 = vadd.f32 0.0, %v5489
        %5491 = vmatmul.bf16.gmra.mxu0 %v5355
        %v5492 = vpop.f32.mrf.mxu0
        %v5493 = vadd.f32 0.0, %v5492
        %v5494 = vpop.f32.mrf.mxu0
        %v5495 = vadd.f32 0.0, %v5494
        %5496 = vmatmul.bf16.gmra.mxu0 %v5356
        %v5497 = vpop.f32.mrf.mxu0
        %v5498 = vadd.f32 0.0, %v5497
        %v5499 = vpop.f32.mrf.mxu0
        %v5500 = vadd.f32 0.0, %v5499
        %5501 = vmatmul.bf16.gmra.mxu0 %v5357
        %v5502 = vpop.f32.mrf.mxu0
        %v5503 = vadd.f32 0.0, %v5502
        %v5504 = vpop.f32.mrf.mxu0
        %v5505 = vadd.f32 0.0, %v5504
        %5506 = vmatmul.bf16.gmra.mxu0 %v5358
        %v5507 = vpop.f32.mrf.mxu0
        %v5508 = vadd.f32 0.0, %v5507
        %v5509 = vpop.f32.mrf.mxu0
        %v5510 = vadd.f32 0.0, %v5509
        %5511 = vdwg.mxu0
        %v5512 = vld [vmem:[#allocation3] sm:$0xff]
        %v5513 = vld [vmem:[#allocation3 + $0x8] sm:$0xff]
        %v5514 = vld [vmem:[#allocation3 + $0x10] sm:$0xff]
        %v5515 = vld [vmem:[#allocation3 + $0x18] sm:$0xff]
        %v5516 = vld [vmem:[#allocation3 + $0x20] sm:$0xff]
        %v5517 = vld [vmem:[#allocation3 + $0x28] sm:$0xff]
        %v5518 = vld [vmem:[#allocation3 + $0x30] sm:$0xff]
        %v5519 = vld [vmem:[#allocation3 + $0x38] sm:$0xff]
        %v5520 = vld [vmem:[#allocation3 + $0x40] sm:$0xff]
        %v5521 = vld [vmem:[#allocation3 + $0x48] sm:$0xff]
        %v5522 = vld [vmem:[#allocation3 + $0x50] sm:$0xff]
        %v5523 = vld [vmem:[#allocation3 + $0x58] sm:$0xff]
        %v5524 = vld [vmem:[#allocation3 + $0x60] sm:$0xff]
        %v5525 = vld [vmem:[#allocation3 + $0x68] sm:$0xff]
        %v5526 = vld [vmem:[#allocation3 + $0x70] sm:$0xff]
        %v5527 = vld [vmem:[#allocation3 + $0x78] sm:$0xff]
        %v5528 = vld [vmem:[#allocation3 + $0x80] sm:$0xff]
        %v5529 = vld [vmem:[#allocation3 + $0x88] sm:$0xff]
        %v5530 = vld [vmem:[#allocation3 + $0x90] sm:$0xff]
        %v5531 = vld [vmem:[#allocation3 + $0x98] sm:$0xff]
        %v5532 = vld [vmem:[#allocation3 + $0xa0] sm:$0xff]
        %v5533 = vld [vmem:[#allocation3 + $0xa8] sm:$0xff]
        %v5534 = vld [vmem:[#allocation3 + $0xb0] sm:$0xff]
        %v5535 = vld [vmem:[#allocation3 + $0xb8] sm:$0xff]
        %v5536 = vld [vmem:[#allocation3 + $0xc0] sm:$0xff]
        %v5537 = vld [vmem:[#allocation3 + $0xc8] sm:$0xff]
        %v5538 = vld [vmem:[#allocation3 + $0xd0] sm:$0xff]
        %v5539 = vld [vmem:[#allocation3 + $0xd8] sm:$0xff]
        %v5540 = vld [vmem:[#allocation3 + $0xe0] sm:$0xff]
        %v5541 = vld [vmem:[#allocation3 + $0xe8] sm:$0xff]
        %v5542 = vld [vmem:[#allocation3 + $0xf0] sm:$0xff]
        %v5543 = vld [vmem:[#allocation3 + $0xf8] sm:$0xff]
        %v5544 = vadd.f32 %v5512, %v5433
        %v5545 = vadd.f32 %v5513, %v5435
        %v5546 = vadd.f32 %v5514, %v5438
        %v5547 = vadd.f32 %v5515, %v5440
        %v5548 = vadd.f32 %v5516, %v5443
        %v5549 = vadd.f32 %v5517, %v5445
        %v5550 = vadd.f32 %v5518, %v5448
        %v5551 = vadd.f32 %v5519, %v5450
        %v5552 = vadd.f32 %v5520, %v5453
        %v5553 = vadd.f32 %v5521, %v5455
        %v5554 = vadd.f32 %v5522, %v5458
        %v5555 = vadd.f32 %v5523, %v5460
        %v5556 = vadd.f32 %v5524, %v5463
        %v5557 = vadd.f32 %v5525, %v5465
        %v5558 = vadd.f32 %v5526, %v5468
        %v5559 = vadd.f32 %v5527, %v5470
        %v5560 = vadd.f32 %v5528, %v5473
        %v5561 = vadd.f32 %v5529, %v5475
        %v5562 = vadd.f32 %v5530, %v5478
        %v5563 = vadd.f32 %v5531, %v5480
        %v5564 = vadd.f32 %v5532, %v5483
        %v5565 = vadd.f32 %v5533, %v5485
        %v5566 = vadd.f32 %v5534, %v5488
        %v5567 = vadd.f32 %v5535, %v5490
        %v5568 = vadd.f32 %v5536, %v5493
        %v5569 = vadd.f32 %v5537, %v5495
        %v5570 = vadd.f32 %v5538, %v5498
        %v5571 = vadd.f32 %v5539, %v5500
        %v5572 = vadd.f32 %v5540, %v5503
        %v5573 = vadd.f32 %v5541, %v5505
        %v5574 = vadd.f32 %v5542, %v5508
        %v5575 = vadd.f32 %v5543, %v5510
        %5576 = vst [vmem:[#allocation3] sm:$0xff] %v5544
        %5577 = vst [vmem:[#allocation3 + $0x8] sm:$0xff] %v5545
        %5578 = vst [vmem:[#allocation3 + $0x10] sm:$0xff] %v5546
        %5579 = vst [vmem:[#allocation3 + $0x18] sm:$0xff] %v5547
        %5580 = vst [vmem:[#allocation3 + $0x20] sm:$0xff] %v5548
        %5581 = vst [vmem:[#allocation3 + $0x28] sm:$0xff] %v5549
        %5582 = vst [vmem:[#allocation3 + $0x30] sm:$0xff] %v5550
        %5583 = vst [vmem:[#allocation3 + $0x38] sm:$0xff] %v5551
        %5584 = vst [vmem:[#allocation3 + $0x40] sm:$0xff] %v5552
        %5585 = vst [vmem:[#allocation3 + $0x48] sm:$0xff] %v5553
        %5586 = vst [vmem:[#allocation3 + $0x50] sm:$0xff] %v5554
        %5587 = vst [vmem:[#allocation3 + $0x58] sm:$0xff] %v5555
        %5588 = vst [vmem:[#allocation3 + $0x60] sm:$0xff] %v5556
        %5589 = vst [vmem:[#allocation3 + $0x68] sm:$0xff] %v5557
        %5590 = vst [vmem:[#allocation3 + $0x70] sm:$0xff] %v5558
        %5591 = vst [vmem:[#allocation3 + $0x78] sm:$0xff] %v5559
        %5592 = vst [vmem:[#allocation3 + $0x80] sm:$0xff] %v5560
        %5593 = vst [vmem:[#allocation3 + $0x88] sm:$0xff] %v5561
        %5594 = vst [vmem:[#allocation3 + $0x90] sm:$0xff] %v5562
        %5595 = vst [vmem:[#allocation3 + $0x98] sm:$0xff] %v5563
        %5596 = vst [vmem:[#allocation3 + $0xa0] sm:$0xff] %v5564
        %5597 = vst [vmem:[#allocation3 + $0xa8] sm:$0xff] %v5565
        %5598 = vst [vmem:[#allocation3 + $0xb0] sm:$0xff] %v5566
        %5599 = vst [vmem:[#allocation3 + $0xb8] sm:$0xff] %v5567
        %5600 = vst [vmem:[#allocation3 + $0xc0] sm:$0xff] %v5568
        %5601 = vst [vmem:[#allocation3 + $0xc8] sm:$0xff] %v5569
        %5602 = vst [vmem:[#allocation3 + $0xd0] sm:$0xff] %v5570
        %5603 = vst [vmem:[#allocation3 + $0xd8] sm:$0xff] %v5571
        %5604 = vst [vmem:[#allocation3 + $0xe0] sm:$0xff] %v5572
        %5605 = vst [vmem:[#allocation3 + $0xe8] sm:$0xff] %v5573
        %5606 = vst [vmem:[#allocation3 + $0xf0] sm:$0xff] %v5574
        %5607 = vst [vmem:[#allocation3 + $0xf8] sm:$0xff] %v5575
        %v5608 = vld [vmem:[#allocation2 + $0x14] sm:$0xf]
        %v5609 = vld [vmem:[#allocation2 + $0x18] sm:$0xf]
        %v5610 = vld [vmem:[#allocation2 + $0x1c] sm:$0xf]
        %v5611 = vld [vmem:[#allocation2 + $0x20] sm:$0xf]
        %v5612 = vld [vmem:[#allocation2 + $0x24] sm:$0xf]
        %v5613 = vld [vmem:[#allocation2 + $0x28] sm:$0xf]
        %v5614 = vld [vmem:[#allocation2 + $0x2c] sm:$0xf]
        %v5615 = vld [vmem:[#allocation2 + $0x30] sm:$0xf]
        %v5616 = vld [vmem:[#allocation2 + $0x34] sm:$0xf]
        %v5617 = vld [vmem:[#allocation2 + $0x38] sm:$0xf]
        %v5618 = vld [vmem:[#allocation2 + $0x3c] sm:$0xf]
        %v5619 = vld [vmem:[#allocation2 + $0x40] sm:$0xf]
        %v5620 = vld [vmem:[#allocation2 + $0x44] sm:$0xf]
        %v5621 = vld [vmem:[#allocation2 + $0x48] sm:$0xf]
        %v5622 = vld [vmem:[#allocation2 + $0x4c] sm:$0xf]
        %v5623 = vld [vmem:[#allocation2 + $0x50] sm:$0xf]
        %v5624 = vld [vmem:[#allocation2 + $0x54] sm:$0xf]
        %v5625 = vld [vmem:[#allocation2 + $0x58] sm:$0xf]
        %v5626 = vld [vmem:[#allocation2 + $0x5c] sm:$0xf]
        %v5627 = vld [vmem:[#allocation2 + $0x60] sm:$0xf]
        %v5628 = vld [vmem:[#allocation2 + $0x64] sm:$0xf]
        %v5629 = vld [vmem:[#allocation2 + $0x68] sm:$0xf]
        %v5630 = vld [vmem:[#allocation2 + $0x6c] sm:$0xf]
        %v5631 = vld [vmem:[#allocation2 + $0x70] sm:$0xf]
        %v5632 = vld [vmem:[#allocation2 + $0x74] sm:$0xf]
        %v5633 = vld [vmem:[#allocation2 + $0x78] sm:$0xf]
        %v5634 = vld [vmem:[#allocation2 + $0x7c] sm:$0xf]
        %v5635 = vld [vmem:[#allocation2 + $0x80] sm:$0xf]
        %v5636 = vld [vmem:[#allocation2 + $0x84] sm:$0xf]
        %v5637 = vld [vmem:[#allocation2 + $0x88] sm:$0xf]
        %v5638 = vld [vmem:[#allocation2 + $0x8c] sm:$0xf]
        %v5639 = vld [vmem:[#allocation2 + $0x90] sm:$0xf]
        %v5640 = vld [vmem:[#allocation2 + $0x94] sm:$0x1]
        %v5641 = vunpack.c.l.bf16 %v5608
        %v5642 = vunpack.c.l.bf16 %v5609
        %v5643 = vunpack.c.l.bf16 %v5610
        %v5644 = vunpack.c.l.bf16 %v5611
        %v5645 = vunpack.c.l.bf16 %v5612
        %v5646 = vunpack.c.l.bf16 %v5613
        %v5647 = vunpack.c.l.bf16 %v5614
        %v5648 = vunpack.c.l.bf16 %v5615
        %v5649 = vunpack.c.l.bf16 %v5616
        %v5650 = vunpack.c.l.bf16 %v5617
        %v5651 = vunpack.c.l.bf16 %v5618
        %v5652 = vunpack.c.l.bf16 %v5619
        %v5653 = vunpack.c.l.bf16 %v5620
        %v5654 = vunpack.c.l.bf16 %v5621
        %v5655 = vunpack.c.l.bf16 %v5622
        %v5656 = vunpack.c.l.bf16 %v5623
        %v5657 = vunpack.c.l.bf16 %v5624
        %v5658 = vunpack.c.l.bf16 %v5625
        %v5659 = vunpack.c.l.bf16 %v5626
        %v5660 = vunpack.c.l.bf16 %v5627
        %v5661 = vunpack.c.l.bf16 %v5628
        %v5662 = vunpack.c.l.bf16 %v5629
        %v5663 = vunpack.c.l.bf16 %v5630
        %v5664 = vunpack.c.l.bf16 %v5631
        %v5665 = vunpack.c.l.bf16 %v5632
        %v5666 = vunpack.c.l.bf16 %v5633
        %v5667 = vunpack.c.l.bf16 %v5634
        %v5668 = vunpack.c.l.bf16 %v5635
        %v5669 = vunpack.c.l.bf16 %v5636
        %v5670 = vunpack.c.l.bf16 %v5637
        %v5671 = vunpack.c.l.bf16 %v5638
        %v5672 = vunpack.c.l.bf16 %v5639
        %v5673 = vunpack.c.l.bf16 %v5640
        %v5674 = vmul.f32 %v5641, %v2725
        %v5675 = vmul.f32 %v5642, %v2727
        %v5676 = vmul.f32 %v5643, %v2729
        %v5677 = vmul.f32 %v5644, %v2731
        %v5678 = vmul.f32 %v5645, %v2733
        %v5679 = vmul.f32 %v5646, %v2735
        %v5680 = vmul.f32 %v5647, %v2737
        %v5681 = vmul.f32 %v5648, %v2739
        %v5682 = vmul.f32 %v5649, %v2741
        %v5683 = vmul.f32 %v5650, %v2743
        %v5684 = vmul.f32 %v5651, %v2745
        %v5685 = vmul.f32 %v5652, %v2747
        %v5686 = vmul.f32 %v5653, %v2749
        %v5687 = vmul.f32 %v5654, %v2751
        %v5688 = vmul.f32 %v5655, %v2753
        %v5689 = vmul.f32 %v5656, %v2755
        %v5690 = vmul.f32 %v5657, %v2757
        %v5691 = vmul.f32 %v5658, %v2759
        %v5692 = vmul.f32 %v5659, %v2761
        %v5693 = vmul.f32 %v5660, %v2763
        %v5694 = vmul.f32 %v5661, %v2765
        %v5695 = vmul.f32 %v5662, %v2767
        %v5696 = vmul.f32 %v5663, %v2769
        %v5697 = vmul.f32 %v5664, %v2771
        %v5698 = vmul.f32 %v5665, %v2773
        %v5699 = vmul.f32 %v5666, %v2775
        %v5700 = vmul.f32 %v5667, %v2777
        %v5701 = vmul.f32 %v5668, %v2779
        %v5702 = vmul.f32 %v5669, %v2781
        %v5703 = vmul.f32 %v5670, %v2783
        %v5704 = vmul.f32 %v5671, %v2785
        %v5705 = vmul.f32 %v5672, %v2787
        %v5706 = vmul.f32 %v5673, %v2786
        %v5707 = vpack.c.bf16 %v5675, %v5674
        %v5708 = vpack.c.bf16 %v5677, %v5676
        %v5709 = vpack.c.bf16 %v5679, %v5678
        %v5710 = vpack.c.bf16 %v5681, %v5680
        %v5711 = vpack.c.bf16 %v5683, %v5682
        %v5712 = vpack.c.bf16 %v5685, %v5684
        %v5713 = vpack.c.bf16 %v5687, %v5686
        %v5714 = vpack.c.bf16 %v5689, %v5688
        %v5715 = vpack.c.bf16 %v5691, %v5690
        %v5716 = vpack.c.bf16 %v5693, %v5692
        %v5717 = vpack.c.bf16 %v5695, %v5694
        %v5718 = vpack.c.bf16 %v5697, %v5696
        %v5719 = vpack.c.bf16 %v5699, %v5698
        %v5720 = vpack.c.bf16 %v5701, %v5700
        %v5721 = vpack.c.bf16 %v5703, %v5702
        %v5722 = vpack.c.bf16 %v5705, %v5704
        %v5723 = vpack.c.bf16 %v5706, %v5706
        %s5724 = scalar_lea.vmem [#allocation7], 512
        %v5725 = vld [vmem:[%s5724] sm:$0xf]
        %v5726 = vld [vmem:[%s5724 + $0x4] sm:$0xf]
        %v5727 = vld [vmem:[%s5724 + $0x8] sm:$0xf]
        %v5728 = vld [vmem:[%s5724 + $0xc] sm:$0xf]
        %v5729 = vld [vmem:[%s5724 + $0x10] sm:$0xf]
        %v5730 = vld [vmem:[%s5724 + $0x14] sm:$0xf]
        %v5731 = vld [vmem:[%s5724 + $0x18] sm:$0xf]
        %v5732 = vld [vmem:[%s5724 + $0x1c] sm:$0xf]
        %v5733 = vld [vmem:[%s5724 + $0x20] sm:$0xf]
        %v5734 = vld [vmem:[%s5724 + $0x24] sm:$0xf]
        %v5735 = vld [vmem:[%s5724 + $0x28] sm:$0xf]
        %v5736 = vld [vmem:[%s5724 + $0x2c] sm:$0xf]
        %v5737 = vld [vmem:[%s5724 + $0x30] sm:$0xf]
        %v5738 = vld [vmem:[%s5724 + $0x34] sm:$0xf]
        %v5739 = vld [vmem:[%s5724 + $0x38] sm:$0xf]
        %v5740 = vld [vmem:[%s5724 + $0x3c] sm:$0xf]
        %v5742 = vshrl.u32 %v5707, 16
        %v5744 = vshll.u32 %v5707, 16
        %v5746 = vrot.slane %v5744, 1
        %v5747 = vor.u32 %v5742, %v5746
        %v5749 = vshll.u32 %v5708, 16
        %v5751 = vrot.slane %v5749, 1
        %v5752 = vsel %vm2888, %v5747, %v5751
        %v5753 = vshrl.u32 %v5708, 16
        %v5755 = vor.u32 %v5753, %v5751
        %v5757 = vshll.u32 %v5709, 16
        %v5759 = vrot.slane %v5757, 1
        %v5760 = vsel %vm2888, %v5755, %v5759
        %v5761 = vshrl.u32 %v5709, 16
        %v5763 = vor.u32 %v5761, %v5759
        %v5765 = vshll.u32 %v5710, 16
        %v5767 = vrot.slane %v5765, 1
        %v5768 = vsel %vm2888, %v5763, %v5767
        %v5769 = vshrl.u32 %v5710, 16
        %v5771 = vor.u32 %v5769, %v5767
        %v5773 = vshll.u32 %v5711, 16
        %v5775 = vrot.slane %v5773, 1
        %v5776 = vsel %vm2888, %v5771, %v5775
        %v5777 = vshrl.u32 %v5711, 16
        %v5779 = vor.u32 %v5777, %v5775
        %v5781 = vshll.u32 %v5712, 16
        %v5783 = vrot.slane %v5781, 1
        %v5784 = vsel %vm2888, %v5779, %v5783
        %v5785 = vshrl.u32 %v5712, 16
        %v5787 = vor.u32 %v5785, %v5783
        %v5789 = vshll.u32 %v5713, 16
        %v5791 = vrot.slane %v5789, 1
        %v5792 = vsel %vm2888, %v5787, %v5791
        %v5793 = vshrl.u32 %v5713, 16
        %v5795 = vor.u32 %v5793, %v5791
        %v5797 = vshll.u32 %v5714, 16
        %v5799 = vrot.slane %v5797, 1
        %v5800 = vsel %vm2888, %v5795, %v5799
        %v5801 = vshrl.u32 %v5714, 16
        %v5803 = vor.u32 %v5801, %v5799
        %v5805 = vshll.u32 %v5715, 16
        %v5807 = vrot.slane %v5805, 1
        %v5808 = vsel %vm2888, %v5803, %v5807
        %v5809 = vshrl.u32 %v5715, 16
        %v5811 = vor.u32 %v5809, %v5807
        %v5813 = vshll.u32 %v5716, 16
        %v5815 = vrot.slane %v5813, 1
        %v5816 = vsel %vm2888, %v5811, %v5815
        %v5817 = vshrl.u32 %v5716, 16
        %v5819 = vor.u32 %v5817, %v5815
        %v5821 = vshll.u32 %v5717, 16
        %v5823 = vrot.slane %v5821, 1
        %v5824 = vsel %vm2888, %v5819, %v5823
        %v5825 = vshrl.u32 %v5717, 16
        %v5827 = vor.u32 %v5825, %v5823
        %v5829 = vshll.u32 %v5718, 16
        %v5831 = vrot.slane %v5829, 1
        %v5832 = vsel %vm2888, %v5827, %v5831
        %v5833 = vshrl.u32 %v5718, 16
        %v5835 = vor.u32 %v5833, %v5831
        %v5837 = vshll.u32 %v5719, 16
        %v5839 = vrot.slane %v5837, 1
        %v5840 = vsel %vm2888, %v5835, %v5839
        %v5841 = vshrl.u32 %v5719, 16
        %v5843 = vor.u32 %v5841, %v5839
        %v5845 = vshll.u32 %v5720, 16
        %v5847 = vrot.slane %v5845, 1
        %v5848 = vsel %vm2888, %v5843, %v5847
        %v5849 = vshrl.u32 %v5720, 16
        %v5851 = vor.u32 %v5849, %v5847
        %v5853 = vshll.u32 %v5721, 16
        %v5855 = vrot.slane %v5853, 1
        %v5856 = vsel %vm2888, %v5851, %v5855
        %v5857 = vshrl.u32 %v5721, 16
        %v5859 = vor.u32 %v5857, %v5855
        %v5861 = vshll.u32 %v5722, 16
        %v5863 = vrot.slane %v5861, 1
        %v5864 = vsel %vm2888, %v5859, %v5863
        %v5865 = vshrl.u32 %v5722, 16
        %v5867 = vor.u32 %v5865, %v5863
        %v5869 = vshll.u32 %v5723, 16
        %v5871 = vrot.slane %v5869, 1
        %v5872 = vsel %vm2888, %v5867, %v5871
        %v5905 = vunpack.c.l.b16 %v5725
        %v5906 = vunpack.c.l.b16 %v5726
        %v5907 = vunpack.c.l.b16 %v5727
        %v5908 = vunpack.c.l.b16 %v5728
        %v5909 = vunpack.c.l.b16 %v5729
        %v5910 = vunpack.c.l.b16 %v5730
        %v5911 = vunpack.c.l.b16 %v5731
        %v5912 = vunpack.c.l.b16 %v5732
        %v5913 = vunpack.c.l.b16 %v5733
        %v5914 = vunpack.c.l.b16 %v5734
        %v5915 = vunpack.c.l.b16 %v5735
        %v5916 = vunpack.c.l.b16 %v5736
        %v5917 = vunpack.c.l.b16 %v5737
        %v5918 = vunpack.c.l.b16 %v5738
        %v5919 = vunpack.c.l.b16 %v5739
        %v5920 = vunpack.c.l.b16 %v5740
        %v5921 = vpack.c.b16 %v5906, %v5905
        %v5922 = vpack.c.b16 %v5908, %v5907
        %v5923 = vpack.c.b16 %v5910, %v5909
        %v5924 = vpack.c.b16 %v5912, %v5911
        %v5925 = vpack.c.b16 %v5914, %v5913
        %v5926 = vpack.c.b16 %v5916, %v5915
        %v5927 = vpack.c.b16 %v5918, %v5917
        %v5928 = vpack.c.b16 %v5920, %v5919
        %5937 = vmatpush.bf16.msra.mxu0 %v5928
        %5938 = vmatpush.bf16.msra.mxu0 %v5927
        %5939 = vmatpush.bf16.msra.mxu0 %v5926
        %5940 = vmatpush.bf16.msra.mxu0 %v5925
        %5941 = vmatpush.bf16.msra.mxu0 %v5924
        %5942 = vmatpush.bf16.msra.mxu0 %v5923
        %5943 = vmatpush.bf16.msra.mxu0 %v5922
        %5944 = vmatpush.bf16.msra.mxu0 %v5921
        %5945 = vmatmul.bf16.gmra.mxu0 %v5752
        %v5946 = vpop.f32.mrf.mxu0
        %v5947 = vadd.f32 0.0, %v5946
        %v5948 = vpop.f32.mrf.mxu0
        %v5949 = vadd.f32 0.0, %v5948
        %5950 = vmatmul.bf16.gmra.mxu0 %v5760
        %v5951 = vpop.f32.mrf.mxu0
        %v5952 = vadd.f32 0.0, %v5951
        %v5953 = vpop.f32.mrf.mxu0
        %v5954 = vadd.f32 0.0, %v5953
        %5955 = vmatmul.bf16.gmra.mxu0 %v5768
        %v5956 = vpop.f32.mrf.mxu0
        %v5957 = vadd.f32 0.0, %v5956
        %v5958 = vpop.f32.mrf.mxu0
        %v5959 = vadd.f32 0.0, %v5958
        %5960 = vmatmul.bf16.gmra.mxu0 %v5776
        %v5961 = vpop.f32.mrf.mxu0
        %v5962 = vadd.f32 0.0, %v5961
        %v5963 = vpop.f32.mrf.mxu0
        %v5964 = vadd.f32 0.0, %v5963
        %5965 = vmatmul.bf16.gmra.mxu0 %v5784
        %v5966 = vpop.f32.mrf.mxu0
        %v5967 = vadd.f32 0.0, %v5966
        %v5968 = vpop.f32.mrf.mxu0
        %v5969 = vadd.f32 0.0, %v5968
        %5970 = vmatmul.bf16.gmra.mxu0 %v5792
        %v5971 = vpop.f32.mrf.mxu0
        %v5972 = vadd.f32 0.0, %v5971
        %v5973 = vpop.f32.mrf.mxu0
        %v5974 = vadd.f32 0.0, %v5973
        %5975 = vmatmul.bf16.gmra.mxu0 %v5800
        %v5976 = vpop.f32.mrf.mxu0
        %v5977 = vadd.f32 0.0, %v5976
        %v5978 = vpop.f32.mrf.mxu0
        %v5979 = vadd.f32 0.0, %v5978
        %5980 = vmatmul.bf16.gmra.mxu0 %v5808
        %v5981 = vpop.f32.mrf.mxu0
        %v5982 = vadd.f32 0.0, %v5981
        %v5983 = vpop.f32.mrf.mxu0
        %v5984 = vadd.f32 0.0, %v5983
        %5985 = vmatmul.bf16.gmra.mxu0 %v5816
        %v5986 = vpop.f32.mrf.mxu0
        %v5987 = vadd.f32 0.0, %v5986
        %v5988 = vpop.f32.mrf.mxu0
        %v5989 = vadd.f32 0.0, %v5988
        %5990 = vmatmul.bf16.gmra.mxu0 %v5824
        %v5991 = vpop.f32.mrf.mxu0
        %v5992 = vadd.f32 0.0, %v5991
        %v5993 = vpop.f32.mrf.mxu0
        %v5994 = vadd.f32 0.0, %v5993
        %5995 = vmatmul.bf16.gmra.mxu0 %v5832
        %v5996 = vpop.f32.mrf.mxu0
        %v5997 = vadd.f32 0.0, %v5996
        %v5998 = vpop.f32.mrf.mxu0
        %v5999 = vadd.f32 0.0, %v5998
        %6000 = vmatmul.bf16.gmra.mxu0 %v5840
        %v6001 = vpop.f32.mrf.mxu0
        %v6002 = vadd.f32 0.0, %v6001
        %v6003 = vpop.f32.mrf.mxu0
        %v6004 = vadd.f32 0.0, %v6003
        %6005 = vmatmul.bf16.gmra.mxu0 %v5848
        %v6006 = vpop.f32.mrf.mxu0
        %v6007 = vadd.f32 0.0, %v6006
        %v6008 = vpop.f32.mrf.mxu0
        %v6009 = vadd.f32 0.0, %v6008
        %6010 = vmatmul.bf16.gmra.mxu0 %v5856
        %v6011 = vpop.f32.mrf.mxu0
        %v6012 = vadd.f32 0.0, %v6011
        %v6013 = vpop.f32.mrf.mxu0
        %v6014 = vadd.f32 0.0, %v6013
        %6015 = vmatmul.bf16.gmra.mxu0 %v5864
        %v6016 = vpop.f32.mrf.mxu0
        %v6017 = vadd.f32 0.0, %v6016
        %v6018 = vpop.f32.mrf.mxu0
        %v6019 = vadd.f32 0.0, %v6018
        %6020 = vmatmul.bf16.gmra.mxu0 %v5872
        %v6021 = vpop.f32.mrf.mxu0
        %v6022 = vadd.f32 0.0, %v6021
        %v6023 = vpop.f32.mrf.mxu0
        %v6024 = vadd.f32 0.0, %v6023
        %6025 = vdwg.mxu0
        %v6026 = vld [vmem:[#allocation3] sm:$0xff]
        %v6027 = vld [vmem:[#allocation3 + $0x8] sm:$0xff]
        %v6028 = vld [vmem:[#allocation3 + $0x10] sm:$0xff]
        %v6029 = vld [vmem:[#allocation3 + $0x18] sm:$0xff]
        %v6030 = vld [vmem:[#allocation3 + $0x20] sm:$0xff]
        %v6031 = vld [vmem:[#allocation3 + $0x28] sm:$0xff]
        %v6032 = vld [vmem:[#allocation3 + $0x30] sm:$0xff]
        %v6033 = vld [vmem:[#allocation3 + $0x38] sm:$0xff]
        %v6034 = vld [vmem:[#allocation3 + $0x40] sm:$0xff]
        %v6035 = vld [vmem:[#allocation3 + $0x48] sm:$0xff]
        %v6036 = vld [vmem:[#allocation3 + $0x50] sm:$0xff]
        %v6037 = vld [vmem:[#allocation3 + $0x58] sm:$0xff]
        %v6038 = vld [vmem:[#allocation3 + $0x60] sm:$0xff]
        %v6039 = vld [vmem:[#allocation3 + $0x68] sm:$0xff]
        %v6040 = vld [vmem:[#allocation3 + $0x70] sm:$0xff]
        %v6041 = vld [vmem:[#allocation3 + $0x78] sm:$0xff]
        %v6042 = vld [vmem:[#allocation3 + $0x80] sm:$0xff]
        %v6043 = vld [vmem:[#allocation3 + $0x88] sm:$0xff]
        %v6044 = vld [vmem:[#allocation3 + $0x90] sm:$0xff]
        %v6045 = vld [vmem:[#allocation3 + $0x98] sm:$0xff]
        %v6046 = vld [vmem:[#allocation3 + $0xa0] sm:$0xff]
        %v6047 = vld [vmem:[#allocation3 + $0xa8] sm:$0xff]
        %v6048 = vld [vmem:[#allocation3 + $0xb0] sm:$0xff]
        %v6049 = vld [vmem:[#allocation3 + $0xb8] sm:$0xff]
        %v6050 = vld [vmem:[#allocation3 + $0xc0] sm:$0xff]
        %v6051 = vld [vmem:[#allocation3 + $0xc8] sm:$0xff]
        %v6052 = vld [vmem:[#allocation3 + $0xd0] sm:$0xff]
        %v6053 = vld [vmem:[#allocation3 + $0xd8] sm:$0xff]
        %v6054 = vld [vmem:[#allocation3 + $0xe0] sm:$0xff]
        %v6055 = vld [vmem:[#allocation3 + $0xe8] sm:$0xff]
        %v6056 = vld [vmem:[#allocation3 + $0xf0] sm:$0xff]
        %v6057 = vld [vmem:[#allocation3 + $0xf8] sm:$0xff]
        %v6058 = vadd.f32 %v6026, %v5947
        %v6059 = vadd.f32 %v6027, %v5949
        %v6060 = vadd.f32 %v6028, %v5952
        %v6061 = vadd.f32 %v6029, %v5954
        %v6062 = vadd.f32 %v6030, %v5957
        %v6063 = vadd.f32 %v6031, %v5959
        %v6064 = vadd.f32 %v6032, %v5962
        %v6065 = vadd.f32 %v6033, %v5964
        %v6066 = vadd.f32 %v6034, %v5967
        %v6067 = vadd.f32 %v6035, %v5969
        %v6068 = vadd.f32 %v6036, %v5972
        %v6069 = vadd.f32 %v6037, %v5974
        %v6070 = vadd.f32 %v6038, %v5977
        %v6071 = vadd.f32 %v6039, %v5979
        %v6072 = vadd.f32 %v6040, %v5982
        %v6073 = vadd.f32 %v6041, %v5984
        %v6074 = vadd.f32 %v6042, %v5987
        %v6075 = vadd.f32 %v6043, %v5989
        %v6076 = vadd.f32 %v6044, %v5992
        %v6077 = vadd.f32 %v6045, %v5994
        %v6078 = vadd.f32 %v6046, %v5997
        %v6079 = vadd.f32 %v6047, %v5999
        %v6080 = vadd.f32 %v6048, %v6002
        %v6081 = vadd.f32 %v6049, %v6004
        %v6082 = vadd.f32 %v6050, %v6007
        %v6083 = vadd.f32 %v6051, %v6009
        %v6084 = vadd.f32 %v6052, %v6012
        %v6085 = vadd.f32 %v6053, %v6014
        %v6086 = vadd.f32 %v6054, %v6017
        %v6087 = vadd.f32 %v6055, %v6019
        %v6088 = vadd.f32 %v6056, %v6022
        %v6089 = vadd.f32 %v6057, %v6024
        %6090 = vst [vmem:[#allocation3] sm:$0xff] %v6058
        %6091 = vst [vmem:[#allocation3 + $0x8] sm:$0xff] %v6059
        %6092 = vst [vmem:[#allocation3 + $0x10] sm:$0xff] %v6060
        %6093 = vst [vmem:[#allocation3 + $0x18] sm:$0xff] %v6061
        %6094 = vst [vmem:[#allocation3 + $0x20] sm:$0xff] %v6062
        %6095 = vst [vmem:[#allocation3 + $0x28] sm:$0xff] %v6063
        %6096 = vst [vmem:[#allocation3 + $0x30] sm:$0xff] %v6064
        %6097 = vst [vmem:[#allocation3 + $0x38] sm:$0xff] %v6065
        %6098 = vst [vmem:[#allocation3 + $0x40] sm:$0xff] %v6066
        %6099 = vst [vmem:[#allocation3 + $0x48] sm:$0xff] %v6067
        %6100 = vst [vmem:[#allocation3 + $0x50] sm:$0xff] %v6068
        %6101 = vst [vmem:[#allocation3 + $0x58] sm:$0xff] %v6069
        %6102 = vst [vmem:[#allocation3 + $0x60] sm:$0xff] %v6070
        %6103 = vst [vmem:[#allocation3 + $0x68] sm:$0xff] %v6071
        %6104 = vst [vmem:[#allocation3 + $0x70] sm:$0xff] %v6072
        %6105 = vst [vmem:[#allocation3 + $0x78] sm:$0xff] %v6073
        %6106 = vst [vmem:[#allocation3 + $0x80] sm:$0xff] %v6074
        %6107 = vst [vmem:[#allocation3 + $0x88] sm:$0xff] %v6075
        %6108 = vst [vmem:[#allocation3 + $0x90] sm:$0xff] %v6076
        %6109 = vst [vmem:[#allocation3 + $0x98] sm:$0xff] %v6077
        %6110 = vst [vmem:[#allocation3 + $0xa0] sm:$0xff] %v6078
        %6111 = vst [vmem:[#allocation3 + $0xa8] sm:$0xff] %v6079
        %6112 = vst [vmem:[#allocation3 + $0xb0] sm:$0xff] %v6080
        %6113 = vst [vmem:[#allocation3 + $0xb8] sm:$0xff] %v6081
        %6114 = vst [vmem:[#allocation3 + $0xc0] sm:$0xff] %v6082
        %6115 = vst [vmem:[#allocation3 + $0xc8] sm:$0xff] %v6083
        %6116 = vst [vmem:[#allocation3 + $0xd0] sm:$0xff] %v6084
        %6117 = vst [vmem:[#allocation3 + $0xd8] sm:$0xff] %v6085
        %6118 = vst [vmem:[#allocation3 + $0xe0] sm:$0xff] %v6086
        %6119 = vst [vmem:[#allocation3 + $0xe8] sm:$0xff] %v6087
        %6120 = vst [vmem:[#allocation3 + $0xf0] sm:$0xff] %v6088
        %6121 = vst [vmem:[#allocation3 + $0xf8] sm:$0xff] %v6089
        %v6122 = vld [vmem:[#allocation3] sm:$0xff]
        %v6123 = vld [vmem:[#allocation3 + $0x8] sm:$0xff]
        %v6124 = vld [vmem:[#allocation3 + $0x10] sm:$0xff]
        %v6125 = vld [vmem:[#allocation3 + $0x18] sm:$0xff]
        %v6126 = vld [vmem:[#allocation3 + $0x20] sm:$0xff]
        %v6127 = vld [vmem:[#allocation3 + $0x28] sm:$0xff]
        %v6128 = vld [vmem:[#allocation3 + $0x30] sm:$0xff]
        %v6129 = vld [vmem:[#allocation3 + $0x38] sm:$0xff]
        %v6130 = vld [vmem:[#allocation3 + $0x40] sm:$0xff]
        %v6131 = vld [vmem:[#allocation3 + $0x48] sm:$0xff]
        %v6132 = vld [vmem:[#allocation3 + $0x50] sm:$0xff]
        %v6133 = vld [vmem:[#allocation3 + $0x58] sm:$0xff]
        %v6134 = vld [vmem:[#allocation3 + $0x60] sm:$0xff]
        %v6135 = vld [vmem:[#allocation3 + $0x68] sm:$0xff]
        %v6136 = vld [vmem:[#allocation3 + $0x70] sm:$0xff]
        %v6137 = vld [vmem:[#allocation3 + $0x78] sm:$0xff]
        %v6138 = vld [vmem:[#allocation3 + $0x80] sm:$0xff]
        %v6139 = vld [vmem:[#allocation3 + $0x88] sm:$0xff]
        %v6140 = vld [vmem:[#allocation3 + $0x90] sm:$0xff]
        %v6141 = vld [vmem:[#allocation3 + $0x98] sm:$0xff]
        %v6142 = vld [vmem:[#allocation3 + $0xa0] sm:$0xff]
        %v6143 = vld [vmem:[#allocation3 + $0xa8] sm:$0xff]
        %v6144 = vld [vmem:[#allocation3 + $0xb0] sm:$0xff]
        %v6145 = vld [vmem:[#allocation3 + $0xb8] sm:$0xff]
        %v6146 = vld [vmem:[#allocation3 + $0xc0] sm:$0xff]
        %v6147 = vld [vmem:[#allocation3 + $0xc8] sm:$0xff]
        %v6148 = vld [vmem:[#allocation3 + $0xd0] sm:$0xff]
        %v6149 = vld [vmem:[#allocation3 + $0xd8] sm:$0xff]
        %v6150 = vld [vmem:[#allocation3 + $0xe0] sm:$0xff]
        %v6151 = vld [vmem:[#allocation3 + $0xe8] sm:$0xff]
        %v6152 = vld [vmem:[#allocation3 + $0xf0] sm:$0xff]
        %v6153 = vld [vmem:[#allocation3 + $0xf8] sm:$0xff]
        %v6154 = vld [vmem:[%s5] sm:$0x1]
        %v6156 = vperm.slane %v6154, 0
        %v6158 = vmul.f32 %v6122, %v6156
        %v6159 = vmul.f32 %v6123, %v6156
        %v6160 = vmul.f32 %v6124, %v6156
        %v6161 = vmul.f32 %v6125, %v6156
        %v6162 = vmul.f32 %v6126, %v6156
        %v6163 = vmul.f32 %v6127, %v6156
        %v6164 = vmul.f32 %v6128, %v6156
        %v6165 = vmul.f32 %v6129, %v6156
        %v6166 = vmul.f32 %v6130, %v6156
        %v6167 = vmul.f32 %v6131, %v6156
        %v6168 = vmul.f32 %v6132, %v6156
        %v6169 = vmul.f32 %v6133, %v6156
        %v6170 = vmul.f32 %v6134, %v6156
        %v6171 = vmul.f32 %v6135, %v6156
        %v6172 = vmul.f32 %v6136, %v6156
        %v6173 = vmul.f32 %v6137, %v6156
        %v6174 = vmul.f32 %v6138, %v6156
        %v6175 = vmul.f32 %v6139, %v6156
        %v6176 = vmul.f32 %v6140, %v6156
        %v6177 = vmul.f32 %v6141, %v6156
        %v6178 = vmul.f32 %v6142, %v6156
        %v6179 = vmul.f32 %v6143, %v6156
        %v6180 = vmul.f32 %v6144, %v6156
        %v6181 = vmul.f32 %v6145, %v6156
        %v6182 = vmul.f32 %v6146, %v6156
        %v6183 = vmul.f32 %v6147, %v6156
        %v6184 = vmul.f32 %v6148, %v6156
        %v6185 = vmul.f32 %v6149, %v6156
        %v6186 = vmul.f32 %v6150, %v6156
        %v6187 = vmul.f32 %v6151, %v6156
        %v6188 = vmul.f32 %v6152, %v6156
        %v6189 = vmul.f32 %v6153, %v6156
        %v6190 = vld [vmem:[%s6] sm:$0x1]
        %v6192 = vperm.slane %v6190, 0
        %v6194 = vadd.f32 %v6158, %v6192
        %v6195 = vadd.f32 %v6159, %v6192
        %v6196 = vadd.f32 %v6160, %v6192
        %v6197 = vadd.f32 %v6161, %v6192
        %v6198 = vadd.f32 %v6162, %v6192
        %v6199 = vadd.f32 %v6163, %v6192
        %v6200 = vadd.f32 %v6164, %v6192
        %v6201 = vadd.f32 %v6165, %v6192
        %v6202 = vadd.f32 %v6166, %v6192
        %v6203 = vadd.f32 %v6167, %v6192
        %v6204 = vadd.f32 %v6168, %v6192
        %v6205 = vadd.f32 %v6169, %v6192
        %v6206 = vadd.f32 %v6170, %v6192
        %v6207 = vadd.f32 %v6171, %v6192
        %v6208 = vadd.f32 %v6172, %v6192
        %v6209 = vadd.f32 %v6173, %v6192
        %v6210 = vadd.f32 %v6174, %v6192
        %v6211 = vadd.f32 %v6175, %v6192
        %v6212 = vadd.f32 %v6176, %v6192
        %v6213 = vadd.f32 %v6177, %v6192
        %v6214 = vadd.f32 %v6178, %v6192
        %v6215 = vadd.f32 %v6179, %v6192
        %v6216 = vadd.f32 %v6180, %v6192
        %v6217 = vadd.f32 %v6181, %v6192
        %v6218 = vadd.f32 %v6182, %v6192
        %v6219 = vadd.f32 %v6183, %v6192
        %v6220 = vadd.f32 %v6184, %v6192
        %v6221 = vadd.f32 %v6185, %v6192
        %v6222 = vadd.f32 %v6186, %v6192
        %v6223 = vadd.f32 %v6187, %v6192
        %v6224 = vadd.f32 %v6188, %v6192
        %v6225 = vadd.f32 %v6189, %v6192
        %v6226 = vmax.f32 %v6194, 0.0
        %v6227 = vmax.f32 %v6195, 0.0
        %v6228 = vmax.f32 %v6196, 0.0
        %v6229 = vmax.f32 %v6197, 0.0
        %v6230 = vmax.f32 %v6198, 0.0
        %v6231 = vmax.f32 %v6199, 0.0
        %v6232 = vmax.f32 %v6200, 0.0
        %v6233 = vmax.f32 %v6201, 0.0
        %v6234 = vmax.f32 %v6202, 0.0
        %v6235 = vmax.f32 %v6203, 0.0
        %v6236 = vmax.f32 %v6204, 0.0
        %v6237 = vmax.f32 %v6205, 0.0
        %v6238 = vmax.f32 %v6206, 0.0
        %v6239 = vmax.f32 %v6207, 0.0
        %v6240 = vmax.f32 %v6208, 0.0
        %v6241 = vmax.f32 %v6209, 0.0
        %v6242 = vmax.f32 %v6210, 0.0
        %v6243 = vmax.f32 %v6211, 0.0
        %v6244 = vmax.f32 %v6212, 0.0
        %v6245 = vmax.f32 %v6213, 0.0
        %v6246 = vmax.f32 %v6214, 0.0
        %v6247 = vmax.f32 %v6215, 0.0
        %v6248 = vmax.f32 %v6216, 0.0
        %v6249 = vmax.f32 %v6217, 0.0
        %v6250 = vmax.f32 %v6218, 0.0
        %v6251 = vmax.f32 %v6219, 0.0
        %v6252 = vmax.f32 %v6220, 0.0
        %v6253 = vmax.f32 %v6221, 0.0
        %v6254 = vmax.f32 %v6222, 0.0
        %v6255 = vmax.f32 %v6223, 0.0
        %v6256 = vmax.f32 %v6224, 0.0
        %v6257 = vmax.f32 %v6225, 0.0
        %v6258 = vpack.c.bf16 %v6227, %v6226
        %v6259 = vpack.c.bf16 %v6229, %v6228
        %v6260 = vpack.c.bf16 %v6231, %v6230
        %v6261 = vpack.c.bf16 %v6233, %v6232
        %v6262 = vpack.c.bf16 %v6235, %v6234
        %v6263 = vpack.c.bf16 %v6237, %v6236
        %v6264 = vpack.c.bf16 %v6239, %v6238
        %v6265 = vpack.c.bf16 %v6241, %v6240
        %v6266 = vpack.c.bf16 %v6243, %v6242
        %v6267 = vpack.c.bf16 %v6245, %v6244
        %v6268 = vpack.c.bf16 %v6247, %v6246
        %v6269 = vpack.c.bf16 %v6249, %v6248
        %v6270 = vpack.c.bf16 %v6251, %v6250
        %v6271 = vpack.c.bf16 %v6253, %v6252
        %v6272 = vpack.c.bf16 %v6255, %v6254
        %v6273 = vpack.c.bf16 %v6257, %v6256
        %v6274 = vld [vmem:[#allocation9] sm:$0xf]
        %v6275 = vld [vmem:[#allocation9 + $0x4] sm:$0xf]
        %v6276 = vld [vmem:[#allocation9 + $0x8] sm:$0xf]
        %v6277 = vld [vmem:[#allocation9 + $0xc] sm:$0xf]
        %v6278 = vld [vmem:[#allocation9 + $0x10] sm:$0xf]
        %v6279 = vld [vmem:[#allocation9 + $0x14] sm:$0xf]
        %v6280 = vld [vmem:[#allocation9 + $0x18] sm:$0xf]
        %v6281 = vld [vmem:[#allocation9 + $0x1c] sm:$0xf]
        %v6282 = vld [vmem:[#allocation9 + $0x20] sm:$0xf]
        %v6283 = vld [vmem:[#allocation9 + $0x24] sm:$0xf]
        %v6284 = vld [vmem:[#allocation9 + $0x28] sm:$0xf]
        %v6285 = vld [vmem:[#allocation9 + $0x2c] sm:$0xf]
        %v6286 = vld [vmem:[#allocation9 + $0x30] sm:$0xf]
        %v6287 = vld [vmem:[#allocation9 + $0x34] sm:$0xf]
        %v6288 = vld [vmem:[#allocation9 + $0x38] sm:$0xf]
        %v6289 = vld [vmem:[#allocation9 + $0x3c] sm:$0xf]
        %v6306 = vunpack.c.l.b16 %v6274
        %v6307 = vunpack.c.l.b16 %v6275
        %v6308 = vunpack.c.l.b16 %v6276
        %v6309 = vunpack.c.l.b16 %v6277
        %v6310 = vunpack.c.l.b16 %v6278
        %v6311 = vunpack.c.l.b16 %v6279
        %v6312 = vunpack.c.l.b16 %v6280
        %v6313 = vunpack.c.l.b16 %v6281
        %v6314 = vunpack.c.l.b16 %v6282
        %v6315 = vunpack.c.l.b16 %v6283
        %v6316 = vunpack.c.l.b16 %v6284
        %v6317 = vunpack.c.l.b16 %v6285
        %v6318 = vunpack.c.l.b16 %v6286
        %v6319 = vunpack.c.l.b16 %v6287
        %v6320 = vunpack.c.l.b16 %v6288
        %v6321 = vunpack.c.l.b16 %v6289
        %v6322 = vpack.c.b16 %v6307, %v6306
        %v6323 = vpack.c.b16 %v6309, %v6308
        %v6324 = vpack.c.b16 %v6311, %v6310
        %v6325 = vpack.c.b16 %v6313, %v6312
        %v6326 = vpack.c.b16 %v6315, %v6314
        %v6327 = vpack.c.b16 %v6317, %v6316
        %v6328 = vpack.c.b16 %v6319, %v6318
        %v6329 = vpack.c.b16 %v6321, %v6320
        %6338 = vmatpush.bf16.msra.mxu0 %v6329
        %6339 = vmatpush.bf16.msra.mxu0 %v6328
        %6340 = vmatpush.bf16.msra.mxu0 %v6327
        %6341 = vmatpush.bf16.msra.mxu0 %v6326
        %6342 = vmatpush.bf16.msra.mxu0 %v6325
        %6343 = vmatpush.bf16.msra.mxu0 %v6324
        %6344 = vmatpush.bf16.msra.mxu0 %v6323
        %6345 = vmatpush.bf16.msra.mxu0 %v6322
        %6346 = vmatmul.bf16.gmra.mxu0 %v6258
        %v6347 = vpop.f32.mrf.mxu0
        %v6348 = vadd.f32 0.0, %v6347
        %v6349 = vpop.f32.mrf.mxu0
        %v6350 = vadd.f32 0.0, %v6349
        %6351 = vmatmul.bf16.gmra.mxu0 %v6259
        %v6352 = vpop.f32.mrf.mxu0
        %v6353 = vadd.f32 0.0, %v6352
        %v6354 = vpop.f32.mrf.mxu0
        %v6355 = vadd.f32 0.0, %v6354
        %6356 = vmatmul.bf16.gmra.mxu0 %v6260
        %v6357 = vpop.f32.mrf.mxu0
        %v6358 = vadd.f32 0.0, %v6357
        %v6359 = vpop.f32.mrf.mxu0
        %v6360 = vadd.f32 0.0, %v6359
        %6361 = vmatmul.bf16.gmra.mxu0 %v6261
        %v6362 = vpop.f32.mrf.mxu0
        %v6363 = vadd.f32 0.0, %v6362
        %v6364 = vpop.f32.mrf.mxu0
        %v6365 = vadd.f32 0.0, %v6364
        %6366 = vmatmul.bf16.gmra.mxu0 %v6262
        %v6367 = vpop.f32.mrf.mxu0
        %v6368 = vadd.f32 0.0, %v6367
        %v6369 = vpop.f32.mrf.mxu0
        %v6370 = vadd.f32 0.0, %v6369
        %6371 = vmatmul.bf16.gmra.mxu0 %v6263
        %v6372 = vpop.f32.mrf.mxu0
        %v6373 = vadd.f32 0.0, %v6372
        %v6374 = vpop.f32.mrf.mxu0
        %v6375 = vadd.f32 0.0, %v6374
        %6376 = vmatmul.bf16.gmra.mxu0 %v6264
        %v6377 = vpop.f32.mrf.mxu0
        %v6378 = vadd.f32 0.0, %v6377
        %v6379 = vpop.f32.mrf.mxu0
        %v6380 = vadd.f32 0.0, %v6379
        %6381 = vmatmul.bf16.gmra.mxu0 %v6265
        %v6382 = vpop.f32.mrf.mxu0
        %v6383 = vadd.f32 0.0, %v6382
        %v6384 = vpop.f32.mrf.mxu0
        %v6385 = vadd.f32 0.0, %v6384
        %6386 = vmatmul.bf16.gmra.mxu0 %v6266
        %v6387 = vpop.f32.mrf.mxu0
        %v6388 = vadd.f32 0.0, %v6387
        %v6389 = vpop.f32.mrf.mxu0
        %v6390 = vadd.f32 0.0, %v6389
        %6391 = vmatmul.bf16.gmra.mxu0 %v6267
        %v6392 = vpop.f32.mrf.mxu0
        %v6393 = vadd.f32 0.0, %v6392
        %v6394 = vpop.f32.mrf.mxu0
        %v6395 = vadd.f32 0.0, %v6394
        %6396 = vmatmul.bf16.gmra.mxu0 %v6268
        %v6397 = vpop.f32.mrf.mxu0
        %v6398 = vadd.f32 0.0, %v6397
        %v6399 = vpop.f32.mrf.mxu0
        %v6400 = vadd.f32 0.0, %v6399
        %6401 = vmatmul.bf16.gmra.mxu0 %v6269
        %v6402 = vpop.f32.mrf.mxu0
        %v6403 = vadd.f32 0.0, %v6402
        %v6404 = vpop.f32.mrf.mxu0
        %v6405 = vadd.f32 0.0, %v6404
        %6406 = vmatmul.bf16.gmra.mxu0 %v6270
        %v6407 = vpop.f32.mrf.mxu0
        %v6408 = vadd.f32 0.0, %v6407
        %v6409 = vpop.f32.mrf.mxu0
        %v6410 = vadd.f32 0.0, %v6409
        %6411 = vmatmul.bf16.gmra.mxu0 %v6271
        %v6412 = vpop.f32.mrf.mxu0
        %v6413 = vadd.f32 0.0, %v6412
        %v6414 = vpop.f32.mrf.mxu0
        %v6415 = vadd.f32 0.0, %v6414
        %6416 = vmatmul.bf16.gmra.mxu0 %v6272
        %v6417 = vpop.f32.mrf.mxu0
        %v6418 = vadd.f32 0.0, %v6417
        %v6419 = vpop.f32.mrf.mxu0
        %v6420 = vadd.f32 0.0, %v6419
        %6421 = vmatmul.bf16.gmra.mxu0 %v6273
        %v6422 = vpop.f32.mrf.mxu0
        %v6423 = vadd.f32 0.0, %v6422
        %v6424 = vpop.f32.mrf.mxu0
        %v6425 = vadd.f32 0.0, %v6424
        %6426 = vdwg.mxu0
        %v6427 = vld [vmem:[%s8] sm:$0x1]
        %v6429 = vperm.slane %v6427, 0
        %v6431 = vmul.f32 %v6348, %v6429
        %v6432 = vmul.f32 %v6350, %v6429
        %v6433 = vmul.f32 %v6353, %v6429
        %v6434 = vmul.f32 %v6355, %v6429
        %v6435 = vmul.f32 %v6358, %v6429
        %v6436 = vmul.f32 %v6360, %v6429
        %v6437 = vmul.f32 %v6363, %v6429
        %v6438 = vmul.f32 %v6365, %v6429
        %v6439 = vmul.f32 %v6368, %v6429
        %v6440 = vmul.f32 %v6370, %v6429
        %v6441 = vmul.f32 %v6373, %v6429
        %v6442 = vmul.f32 %v6375, %v6429
        %v6443 = vmul.f32 %v6378, %v6429
        %v6444 = vmul.f32 %v6380, %v6429
        %v6445 = vmul.f32 %v6383, %v6429
        %v6446 = vmul.f32 %v6385, %v6429
        %v6447 = vmul.f32 %v6388, %v6429
        %v6448 = vmul.f32 %v6390, %v6429
        %v6449 = vmul.f32 %v6393, %v6429
        %v6450 = vmul.f32 %v6395, %v6429
        %v6451 = vmul.f32 %v6398, %v6429
        %v6452 = vmul.f32 %v6400, %v6429
        %v6453 = vmul.f32 %v6403, %v6429
        %v6454 = vmul.f32 %v6405, %v6429
        %v6455 = vmul.f32 %v6408, %v6429
        %v6456 = vmul.f32 %v6410, %v6429
        %v6457 = vmul.f32 %v6413, %v6429
        %v6458 = vmul.f32 %v6415, %v6429
        %v6459 = vmul.f32 %v6418, %v6429
        %v6460 = vmul.f32 %v6420, %v6429
        %v6461 = vmul.f32 %v6423, %v6429
        %v6462 = vmul.f32 %v6425, %v6429
        %v6463 = vld [vmem:[%s9] sm:$0x1]
        %v6465 = vperm.slane %v6463, 0
        %v6467 = vadd.f32 %v6431, %v6465
        %v6468 = vadd.f32 %v6432, %v6465
        %v6469 = vadd.f32 %v6433, %v6465
        %v6470 = vadd.f32 %v6434, %v6465
        %v6471 = vadd.f32 %v6435, %v6465
        %v6472 = vadd.f32 %v6436, %v6465
        %v6473 = vadd.f32 %v6437, %v6465
        %v6474 = vadd.f32 %v6438, %v6465
        %v6475 = vadd.f32 %v6439, %v6465
        %v6476 = vadd.f32 %v6440, %v6465
        %v6477 = vadd.f32 %v6441, %v6465
        %v6478 = vadd.f32 %v6442, %v6465
        %v6479 = vadd.f32 %v6443, %v6465
        %v6480 = vadd.f32 %v6444, %v6465
        %v6481 = vadd.f32 %v6445, %v6465
        %v6482 = vadd.f32 %v6446, %v6465
        %v6483 = vadd.f32 %v6447, %v6465
        %v6484 = vadd.f32 %v6448, %v6465
        %v6485 = vadd.f32 %v6449, %v6465
        %v6486 = vadd.f32 %v6450, %v6465
        %v6487 = vadd.f32 %v6451, %v6465
        %v6488 = vadd.f32 %v6452, %v6465
        %v6489 = vadd.f32 %v6453, %v6465
        %v6490 = vadd.f32 %v6454, %v6465
        %v6491 = vadd.f32 %v6455, %v6465
        %v6492 = vadd.f32 %v6456, %v6465
        %v6493 = vadd.f32 %v6457, %v6465
        %v6494 = vadd.f32 %v6458, %v6465
        %v6495 = vadd.f32 %v6459, %v6465
        %v6496 = vadd.f32 %v6460, %v6465
        %v6497 = vadd.f32 %v6461, %v6465
        %v6498 = vadd.f32 %v6462, %v6465
        %v6499 = vunpack.c.l.bf16 %v490
        %v6500 = vunpack.c.l.bf16 %v491
        %v6501 = vunpack.c.l.bf16 %v492
        %v6502 = vunpack.c.l.bf16 %v493
        %v6503 = vunpack.c.l.bf16 %v494
        %v6504 = vunpack.c.l.bf16 %v495
        %v6505 = vunpack.c.l.bf16 %v496
        %v6506 = vunpack.c.l.bf16 %v497
        %v6507 = vunpack.c.l.bf16 %v498
        %v6508 = vunpack.c.l.bf16 %v499
        %v6509 = vunpack.c.l.bf16 %v500
        %v6510 = vunpack.c.l.bf16 %v501
        %v6511 = vunpack.c.l.bf16 %v502
        %v6512 = vunpack.c.l.bf16 %v503
        %v6513 = vunpack.c.l.bf16 %v504
        %v6514 = vunpack.c.l.bf16 %v505
        %v6515 = vunpack.c.l.bf16 %v506
        %v6516 = vunpack.c.l.bf16 %v507
        %v6517 = vunpack.c.l.bf16 %v508
        %v6518 = vunpack.c.l.bf16 %v509
        %v6519 = vunpack.c.l.bf16 %v510
        %v6520 = vunpack.c.l.bf16 %v511
        %v6521 = vunpack.c.l.bf16 %v512
        %v6522 = vunpack.c.l.bf16 %v513
        %v6523 = vunpack.c.l.bf16 %v514
        %v6524 = vunpack.c.l.bf16 %v515
        %v6525 = vunpack.c.l.bf16 %v516
        %v6526 = vunpack.c.l.bf16 %v517
        %v6527 = vunpack.c.l.bf16 %v518
        %v6528 = vunpack.c.l.bf16 %v519
        %v6529 = vunpack.c.l.bf16 %v520
        %v6530 = vunpack.c.l.bf16 %v521
        %v6531 = vadd.f32 %v6467, %v6499
        %v6532 = vadd.f32 %v6468, %v6500
        %v6533 = vadd.f32 %v6469, %v6501
        %v6534 = vadd.f32 %v6470, %v6502
        %v6535 = vadd.f32 %v6471, %v6503
        %v6536 = vadd.f32 %v6472, %v6504
        %v6537 = vadd.f32 %v6473, %v6505
        %v6538 = vadd.f32 %v6474, %v6506
        %v6539 = vadd.f32 %v6475, %v6507
        %v6540 = vadd.f32 %v6476, %v6508
        %v6541 = vadd.f32 %v6477, %v6509
        %v6542 = vadd.f32 %v6478, %v6510
        %v6543 = vadd.f32 %v6479, %v6511
        %v6544 = vadd.f32 %v6480, %v6512
        %v6545 = vadd.f32 %v6481, %v6513
        %v6546 = vadd.f32 %v6482, %v6514
        %v6547 = vadd.f32 %v6483, %v6515
        %v6548 = vadd.f32 %v6484, %v6516
        %v6549 = vadd.f32 %v6485, %v6517
        %v6550 = vadd.f32 %v6486, %v6518
        %v6551 = vadd.f32 %v6487, %v6519
        %v6552 = vadd.f32 %v6488, %v6520
        %v6553 = vadd.f32 %v6489, %v6521
        %v6554 = vadd.f32 %v6490, %v6522
        %v6555 = vadd.f32 %v6491, %v6523
        %v6556 = vadd.f32 %v6492, %v6524
        %v6557 = vadd.f32 %v6493, %v6525
        %v6558 = vadd.f32 %v6494, %v6526
        %v6559 = vadd.f32 %v6495, %v6527
        %v6560 = vadd.f32 %v6496, %v6528
        %v6561 = vadd.f32 %v6497, %v6529
        %v6562 = vadd.f32 %v6498, %v6530
        %v6563 = vmax.f32 %v6531, 0.0
        %v6564 = vmax.f32 %v6532, 0.0
        %v6565 = vmax.f32 %v6533, 0.0
        %v6566 = vmax.f32 %v6534, 0.0
        %v6567 = vmax.f32 %v6535, 0.0
        %v6568 = vmax.f32 %v6536, 0.0
        %v6569 = vmax.f32 %v6537, 0.0
        %v6570 = vmax.f32 %v6538, 0.0
        %v6571 = vmax.f32 %v6539, 0.0
        %v6572 = vmax.f32 %v6540, 0.0
        %v6573 = vmax.f32 %v6541, 0.0
        %v6574 = vmax.f32 %v6542, 0.0
        %v6575 = vmax.f32 %v6543, 0.0
        %v6576 = vmax.f32 %v6544, 0.0
        %v6577 = vmax.f32 %v6545, 0.0
        %v6578 = vmax.f32 %v6546, 0.0
        %v6579 = vmax.f32 %v6547, 0.0
        %v6580 = vmax.f32 %v6548, 0.0
        %v6581 = vmax.f32 %v6549, 0.0
        %v6582 = vmax.f32 %v6550, 0.0
        %v6583 = vmax.f32 %v6551, 0.0
        %v6584 = vmax.f32 %v6552, 0.0
        %v6585 = vmax.f32 %v6553, 0.0
        %v6586 = vmax.f32 %v6554, 0.0
        %v6587 = vmax.f32 %v6555, 0.0
        %v6588 = vmax.f32 %v6556, 0.0
        %v6589 = vmax.f32 %v6557, 0.0
        %v6590 = vmax.f32 %v6558, 0.0
        %v6591 = vmax.f32 %v6559, 0.0
        %v6592 = vmax.f32 %v6560, 0.0
        %v6593 = vmax.f32 %v6561, 0.0
        %v6594 = vmax.f32 %v6562, 0.0
        %v6595 = vld [vmem:[%s10] sm:$0x1]
        %v6597 = vperm.slane %v6595, 0
        %v6599 = vmul.f32 %v6597, %v6563
        %v6600 = vmul.f32 %v6597, %v6564
        %v6601 = vmul.f32 %v6597, %v6565
        %v6602 = vmul.f32 %v6597, %v6566
        %v6603 = vmul.f32 %v6597, %v6567
        %v6604 = vmul.f32 %v6597, %v6568
        %v6605 = vmul.f32 %v6597, %v6569
        %v6606 = vmul.f32 %v6597, %v6570
        %v6607 = vmul.f32 %v6597, %v6571
        %v6608 = vmul.f32 %v6597, %v6572
        %v6609 = vmul.f32 %v6597, %v6573
        %v6610 = vmul.f32 %v6597, %v6574
        %v6611 = vmul.f32 %v6597, %v6575
        %v6612 = vmul.f32 %v6597, %v6576
        %v6613 = vmul.f32 %v6597, %v6577
        %v6614 = vmul.f32 %v6597, %v6578
        %v6615 = vmul.f32 %v6597, %v6579
        %v6616 = vmul.f32 %v6597, %v6580
        %v6617 = vmul.f32 %v6597, %v6581
        %v6618 = vmul.f32 %v6597, %v6582
        %v6619 = vmul.f32 %v6597, %v6583
        %v6620 = vmul.f32 %v6597, %v6584
        %v6621 = vmul.f32 %v6597, %v6585
        %v6622 = vmul.f32 %v6597, %v6586
        %v6623 = vmul.f32 %v6597, %v6587
        %v6624 = vmul.f32 %v6597, %v6588
        %v6625 = vmul.f32 %v6597, %v6589
        %v6626 = vmul.f32 %v6597, %v6590
        %v6627 = vmul.f32 %v6597, %v6591
        %v6628 = vmul.f32 %v6597, %v6592
        %v6629 = vmul.f32 %v6597, %v6593
        %v6630 = vmul.f32 %v6597, %v6594
        %v6631 = vpack.c.bf16 %v6599, %v6599
        %v6632 = vpack.c.bf16 %v6600, %v6600
        %v6633 = vpack.c.bf16 %v6601, %v6601
        %v6634 = vpack.c.bf16 %v6602, %v6602
        %v6635 = vpack.c.bf16 %v6603, %v6603
        %v6636 = vpack.c.bf16 %v6604, %v6604
        %v6637 = vpack.c.bf16 %v6605, %v6605
        %v6638 = vpack.c.bf16 %v6606, %v6606
        %v6639 = vpack.c.bf16 %v6607, %v6607
        %v6640 = vpack.c.bf16 %v6608, %v6608
        %v6641 = vpack.c.bf16 %v6609, %v6609
        %v6642 = vpack.c.bf16 %v6610, %v6610
        %v6643 = vpack.c.bf16 %v6611, %v6611
        %v6644 = vpack.c.bf16 %v6612, %v6612
        %v6645 = vpack.c.bf16 %v6613, %v6613
        %v6646 = vpack.c.bf16 %v6614, %v6614
        %v6647 = vpack.c.bf16 %v6615, %v6615
        %v6648 = vpack.c.bf16 %v6616, %v6616
        %v6649 = vpack.c.bf16 %v6617, %v6617
        %v6650 = vpack.c.bf16 %v6618, %v6618
        %v6651 = vpack.c.bf16 %v6619, %v6619
        %v6652 = vpack.c.bf16 %v6620, %v6620
        %v6653 = vpack.c.bf16 %v6621, %v6621
        %v6654 = vpack.c.bf16 %v6622, %v6622
        %v6655 = vpack.c.bf16 %v6623, %v6623
        %v6656 = vpack.c.bf16 %v6624, %v6624
        %v6657 = vpack.c.bf16 %v6625, %v6625
        %v6658 = vpack.c.bf16 %v6626, %v6626
        %v6659 = vpack.c.bf16 %v6627, %v6627
        %v6660 = vpack.c.bf16 %v6628, %v6628
        %v6661 = vpack.c.bf16 %v6629, %v6629
        %v6662 = vpack.c.bf16 %v6630, %v6630
        %6663 = vst [vmem:[%s483] sm:$0xf] %v6631
        %6664 = vst [vmem:[%s483 + $0x4] sm:$0xf] %v6632
        %6665 = vst [vmem:[%s483 + $0x8] sm:$0xf] %v6633
        %6666 = vst [vmem:[%s483 + $0xc] sm:$0xf] %v6634
        %6667 = vst [vmem:[%s483 + $0x10] sm:$0xf] %v6635
        %6668 = vst [vmem:[%s483 + $0x14] sm:$0xf] %v6636
        %6669 = vst [vmem:[%s483 + $0x18] sm:$0xf] %v6637
        %6670 = vst [vmem:[%s483 + $0x1c] sm:$0xf] %v6638
        %6671 = vst [vmem:[%s483 + $0x20] sm:$0xf] %v6639
        %6672 = vst [vmem:[%s483 + $0x24] sm:$0xf] %v6640
        %6673 = vst [vmem:[%s483 + $0x28] sm:$0xf] %v6641
        %6674 = vst [vmem:[%s483 + $0x2c] sm:$0xf] %v6642
        %6675 = vst [vmem:[%s483 + $0x30] sm:$0xf] %v6643
        %6676 = vst [vmem:[%s483 + $0x34] sm:$0xf] %v6644
        %6677 = vst [vmem:[%s483 + $0x38] sm:$0xf] %v6645
        %6678 = vst [vmem:[%s483 + $0x3c] sm:$0xf] %v6646
        %6679 = vst [vmem:[%s483 + $0x40] sm:$0xf] %v6647
        %6680 = vst [vmem:[%s483 + $0x44] sm:$0xf] %v6648
        %6681 = vst [vmem:[%s483 + $0x48] sm:$0xf] %v6649
        %6682 = vst [vmem:[%s483 + $0x4c] sm:$0xf] %v6650
        %6683 = vst [vmem:[%s483 + $0x50] sm:$0xf] %v6651
        %6684 = vst [vmem:[%s483 + $0x54] sm:$0xf] %v6652
        %6685 = vst [vmem:[%s483 + $0x58] sm:$0xf] %v6653
        %6686 = vst [vmem:[%s483 + $0x5c] sm:$0xf] %v6654
        %6687 = vst [vmem:[%s483 + $0x60] sm:$0xf] %v6655
        %6688 = vst [vmem:[%s483 + $0x64] sm:$0xf] %v6656
        %6689 = vst [vmem:[%s483 + $0x68] sm:$0xf] %v6657
        %6690 = vst [vmem:[%s483 + $0x6c] sm:$0xf] %v6658
        %6691 = vst [vmem:[%s483 + $0x70] sm:$0xf] %v6659
        %6692 = vst [vmem:[%s483 + $0x74] sm:$0xf] %v6660
        %6693 = vst [vmem:[%s483 + $0x78] sm:$0xf] %v6661
        %6694 = vst [vmem:[%s483 + $0x7c] sm:$0xf] %v6662
        %s6695 = sand.u32 %s315, 1
        %s6696 = scalar_lea.sflag [#allocation6], %s6695
        %s6697 = sand.u32 %s315, 1
        %s6698 = smul.addr %s6697, 128
        %s6699 = scalar_lea.vmem [#allocation10], %s6698
        // Predicated region
        $region85: #{tpu_custom_call.1} parent=71 // pred_check
          %p6700 = pneg %p325
        $region86: #{tpu_custom_call.1} parent=71 // pred_check_branch
          %6702 = sbr.rel (%p6700) target = $region88
        $region87: #{tpu_custom_call.1} parent=71 // pred_region
          %6704 = vsyncadd %s6696, 0
          %s6705 = smul.addr %s29, 32
          %s6706 = smul.addr %s6705, 4
          %s6707 = scalar_lea.hbm %s13, %s6706
          %s6708 = sshll.u32 %s6699, 4
          %s6709 = int_to_ptr.vmem [resolvable:$true] %s6708
          %s6710 = sshll.u32 %s6707, 4
          %s6711 = int_to_ptr.hbm [resolvable:$true] %s6710
          %6716 = dma.vmem_to_hbm [thread:$0]  %s6709, 2048, %s6711, %s6696, 64, 64, 4
        $region88: #{tpu_custom_call.1} parent=71 // pred_fallthru
          _
      $region72: #{tpu_custom_call.1} parent=5 // pred_fallthru
        _
      %p6717 = scmp.le.s32.totalorder 2, %s24
      // Predicated region
      $region89: #{tpu_custom_call.1} parent=5 // pred_check
        %p6718 = pneg %p6717
      $region90: #{tpu_custom_call.1} parent=5 // pred_check_branch
        %6720 = sbr.rel (%p6718) target = $region92
      $region91: #{tpu_custom_call.1} parent=5 // pred_region
        %s6721 = ssub.s32 %s24, 2
        // Predicated region
        $region93: #{tpu_custom_call.1} parent=91 // pred_check
          %p6722 = pneg %p331
        $region94: #{tpu_custom_call.1} parent=91 // pred_check_branch
          %6724 = sbr.rel (%p6722) target = $region96
        $region95: #{tpu_custom_call.1} parent=91 // pred_region
          %s6725 = sand.u32 %s316, 1
          %s6726 = scalar_lea.sflag [#allocation6], %s6725
          %s6727 = sand.u32 %s316, 1
          %s6728 = smul.addr %s6727, 128
          %s6729 = scalar_lea.vmem [#allocation10], %s6728
          %6731 = dma.done %s6726, 2048
        $region96: #{tpu_custom_call.1} parent=91 // pred_fallthru
          _
      $region92: #{tpu_custom_call.1} parent=5 // pred_fallthru
        _
    $region6: #{tpu_custom_call.1} parent=1 // loop_footer
      %s28 = sadd.s32 1, %s24
    $region7: #{tpu_custom_call.1} parent=1 // loop_footer_branch
      %23 = sbr.rel target = $region3
    $region8: #{tpu_custom_call.1} parent=1 // loop_exit
      _
    %6732 = vsyncpa [#allocation5], 1
    %s6733 = scalar_lea.sflag [#allocation5], 1
    %6734 = vsyncpa %s6733, 1
    %6735 = vsyncpa [#allocation8], 1
    %6736 = vsyncpa [#allocation6], 1
    %s6737 = scalar_lea.sflag [#allocation6], 1
    %6738 = vsyncpa %s6737, 1

</llo_original>
